<compile_context>
chip_gen: v7x
topology: tpu7x:2x2x1
jax: 0.10.0
libtpu: 0.0.40
codegen_flags: <defaults>
</compile_context>

<pallas_src>
import jax
import jax.numpy as jnp
from jax import lax
from jax.experimental import pallas as pl
from jax.experimental.pallas import tpu as pltpu

INPUT_SIZE = 16
OUTPUT_SIZE = 16
HIDDEN = 32
LATENT = 8       # latent_size (message length)
DICT = 16        # dictionary_size
BATCH = 8


def _cell_from_gates(gates, cx, H):
    """LSTM cell update from pre-activation gates (PyTorch order i, f, g, o).

    Activations are applied to the full (B, 4H) vreg (2 EUP ops) and the
    i/f/g/o lanes are sliced afterwards.
    """
    sig = jax.nn.sigmoid(gates)
    tnh = jnp.tanh(gates)
    i = sig[:, 0 * H:1 * H]
    f = sig[:, 1 * H:2 * H]
    g = tnh[:, 2 * H:3 * H]
    o = sig[:, 3 * H:4 * H]
    c = f * cx + i * g
    h = o * jnp.tanh(c)
    return h, c


def vae_lstm_kernel(x_ref, w_in_ref, b_in_ref,
                    enc_wf_ref, enc_b0_ref, enc_bf_ref,
                    h2t_w_ref, h2t_b_ref,
                    dec_wf_ref, dec_bf_ref,
                    w_out_ref, b_out_ref,
                    recon_ref, onehot_ref, logits_ref):
    H, D, L = HIDDEN, DICT, LATENT
    B = x_ref.shape[0]

    # Hoist every weight load used inside the unrolled loops (single vld each).
    enc_wf = enc_wf_ref[...]        # (D+H, 4H) fused [t2h_w@W_ih ; W_hh]
    dec_wf = dec_wf_ref[...]        # (D+H, 4H)
    h2t_w = h2t_w_ref[...]          # (H, D)

    # Bias broadcasts hoisted out of the unrolled loops (JAX does not CSE
    # broadcast_in_dim).
    enc_b0 = jnp.broadcast_to(enc_b0_ref[...], (B, 4 * H))   # raw enc bias (step 0)
    enc_bf = jnp.broadcast_to(enc_bf_ref[...], (B, 4 * H))   # t2h-folded enc bias
    dec_bf = jnp.broadcast_to(dec_bf_ref[...], (B, 4 * H))   # t2h-folded dec bias
    h2t_b = jnp.broadcast_to(h2t_b_ref[...], (B, D))

    # ---- encode: input_layer; encoder cx starts as the embedded input ----
    cx = (jnp.dot(x_ref[...], w_in_ref[...], preferred_element_type=jnp.float32)
          + b_in_ref[...])
    hx = jnp.zeros((B, H), jnp.float32)
    hd = jnp.zeros((B, H), jnp.float32)     # decoder state
    cd = jnp.zeros((B, H), jnp.float32)

    lane_iota = lax.broadcasted_iota(jnp.int32, (B, D), 1)

    logits_tiles = []
    onehot_tiles = []

    # TODO(synk): gumbel_softmax sampling (training path) is omitted; this is
    # the deterministic eval / sampling=False path.  softmax is monotone, so
    # argmax(pre_logits) yields the identical straight-through one-hot.
    onehot = None
    for n in range(L):  # static unroll, L = 8
        # --- encoder cell n ---
        # token_to_hidden folded into the gate matmul:
        #   gates = [onehot_{n-1} | hx] @ [[t2h_w@W_ih]; [W_hh]] + (t2h_b@W_ih + b)
        if n == 0:
            # lstm_input = 0 and hx = 0  =>  gates are just the raw LSTM bias.
            gates_e = enc_b0
        else:
            inp_e = jnp.concatenate([onehot, hx], axis=-1)        # (B, D+H)
            gates_e = (jnp.dot(inp_e, enc_wf,
                               preferred_element_type=jnp.float32) + enc_bf)
        hx, cx = _cell_from_gates(gates_e, cx, H)

        pre_logits = (jnp.dot(hx, h2t_w,
                              preferred_element_type=jnp.float32) + h2t_b)
        logits_tiles.append(pre_logits)

        # straight_through_discretize: forward value is the argmax one-hot
        # (first maximal index, matching torch.argmax semantics).
        row_max = jnp.max(pre_logits, axis=-1, keepdims=True)
        idx = jnp.min(jnp.where(pre_logits == row_max, lane_iota, D),
                      axis=-1, keepdims=True)
        onehot = (lane_iota == idx).astype(jnp.float32)
        onehot_tiles.append(onehot)

        # --- decoder cell n (interleaved; independent chain that overlaps
        # with encoder cell n+1) ---
        inp_d = jnp.concatenate([onehot, hd], axis=-1)            # (B, D+H)
        gates_d = (jnp.dot(inp_d, dec_wf,
                           preferred_element_type=jnp.float32) + dec_bf)
        hd, cd = _cell_from_gates(gates_d, cd, H)

    # output_layer on the last decoder hidden state.
    recon_ref[...] = (jnp.dot(hd, w_out_ref[...],
                              preferred_element_type=jnp.float32)
                      + b_out_ref[...])

    # Lane-dense outputs: one (B, L*D) = (8, 128) unmasked store each.
    logits_ref[...] = jnp.concatenate(logits_tiles, axis=-1)
    onehot_ref[...] = jnp.concatenate(onehot_tiles, axis=-1)


def make_params(key):
    ks = jax.random.split(key, 15)

    def w(k, shape, scale=0.1):
        return (scale * jax.random.normal(k, shape)).astype(jnp.float32)

    return dict(
        w_in=w(ks[0], (INPUT_SIZE, HIDDEN)),
        b_in=w(ks[1], (1, HIDDEN)),
        # LSTMCell biases: PyTorch has bias_ih + bias_hh; one combined bias
        # per cell is semantically identical in the forward pass.
        enc_w_ih=w(ks[2], (HIDDEN, 4 * HIDDEN)),
        enc_w_hh=w(ks[3], (HIDDEN, 4 * HIDDEN)),
        enc_b=w(ks[4], (1, 4 * HIDDEN)),
        h2t_w=w(ks[5], (HIDDEN, DICT)),
        h2t_b=w(ks[6], (1, DICT)),
        t2h_w=w(ks[7], (DICT, HIDDEN)),
        t2h_b=w(ks[8], (1, HIDDEN)),
        dec_w_ih=w(ks[9], (HIDDEN, 4 * HIDDEN)),
        dec_w_hh=w(ks[10], (HIDDEN, 4 * HIDDEN)),
        dec_b=w(ks[11], (1, 4 * HIDDEN)),
        w_out=w(ks[12], (HIDDEN, OUTPUT_SIZE)),
        b_out=w(ks[13], (1, OUTPUT_SIZE)),
    )


def _fold_params(params):
    """Fold token_to_hidden into the encoder/decoder gate matmuls (wrapper-side)."""
    enc_wf = jnp.concatenate(
        [jnp.dot(params["t2h_w"], params["enc_w_ih"]), params["enc_w_hh"]],
        axis=0).astype(jnp.float32)                               # (D+H, 4H)
    enc_bf = (jnp.dot(params["t2h_b"], params["enc_w_ih"])
              + params["enc_b"]).astype(jnp.float32)              # (1, 4H)
    dec_wf = jnp.concatenate(
        [jnp.dot(params["t2h_w"], params["dec_w_ih"]), params["dec_w_hh"]],
        axis=0).astype(jnp.float32)                               # (D+H, 4H)
    dec_bf = (jnp.dot(params["t2h_b"], params["dec_w_ih"])
              + params["dec_b"]).astype(jnp.float32)              # (1, 4H)
    return enc_wf, enc_bf, dec_wf, dec_bf


def vae_lstm_forward(x, params):
    B = x.shape[0]
    enc_wf, enc_bf, dec_wf, dec_bf = _fold_params(params)

    vmem = pl.BlockSpec(memory_space=pltpu.MemorySpace.VMEM)
    args = (x,
            params["w_in"], params["b_in"],
            enc_wf, params["enc_b"], enc_bf,
            params["h2t_w"], params["h2t_b"],
            dec_wf, dec_bf,
            params["w_out"], params["b_out"])

    out_shapes = (
        jax.ShapeDtypeStruct((B, OUTPUT_SIZE), jnp.float32),     # recon
        jax.ShapeDtypeStruct((B, LATENT * DICT), jnp.float32),   # one_hot slab
        jax.ShapeDtypeStruct((B, LATENT * DICT), jnp.float32),   # logits slab
    )

    recon, onehot_slab, logits_slab = pl.pallas_call(
        vae_lstm_kernel,
        out_shape=out_shapes,
        in_specs=[vmem] * len(args),
        out_specs=tuple([vmem] * 3),
    )(*args)

    # Free reshapes (contiguous) back to PyTorch conventions: (B, L, D).
    one_hot = onehot_slab.reshape(B, LATENT, DICT)
    logits = logits_slab.reshape(B, LATENT, DICT)
    # messages computed outside the kernel (avoids a fully-masked (·,1) int
    # store).  int32 here vs. PyTorch's int64.
    messages = jnp.argmax(one_hot, axis=-1).astype(jnp.int32)
    return recon, one_hot, logits, messages


# ------------------------- pure-JAX reference check -------------------------
def _ref_cell(gates, cx, H):
    i = jax.nn.sigmoid(gates[:, 0 * H:1 * H])
    f = jax.nn.sigmoid(gates[:, 1 * H:2 * H])
    g = jnp.tanh(gates[:, 2 * H:3 * H])
    o = jax.nn.sigmoid(gates[:, 3 * H:4 * H])
    c = f * cx + i * g
    return o * jnp.tanh(c), c


def reference_teacher_forced(x, params, one_hot):
    """Unfolded PyTorch-equivalent recompute of logits/recon with the kernel's
    one_hot teacher-forced (makes the check insensitive to argmax ties)."""
    H, L = HIDDEN, LATENT
    B = x.shape[0]
    dot = lambda a, b: jnp.dot(a, b, precision=lax.Precision.HIGHEST)
    cx = dot(x, params["w_in"]) + params["b_in"]
    hx = jnp.zeros((B, H), jnp.float32)
    logits = []
    for n in range(L):
        if n == 0:
            inp = jnp.zeros((B, H), jnp.float32)
        else:
            inp = dot(one_hot[:, n - 1], params["t2h_w"]) + params["t2h_b"]
        gates = (dot(inp, params["enc_w_ih"]) + dot(hx, params["enc_w_hh"])
                 + params["enc_b"])
        hx, cx = _ref_cell(gates, cx, H)
        logits.append(dot(hx, params["h2t_w"]) + params["h2t_b"])
    hd = jnp.zeros((B, H), jnp.float32)
    cd = jnp.zeros((B, H), jnp.float32)
    for n in range(L):
        inp = dot(one_hot[:, n], params["t2h_w"]) + params["t2h_b"]
        gates = (dot(inp, params["dec_w_ih"]) + dot(hd, params["dec_w_hh"])
                 + params["dec_b"])
        hd, cd = _ref_cell(gates, cd, H)
    recon = dot(hd, params["w_out"]) + params["b_out"]
    return recon, jnp.stack(logits, axis=1)


if __name__ == "__main__":
    key = jax.random.PRNGKey(0)
    pkey, xkey = jax.random.split(key)
    params = make_params(pkey)
    x = jax.random.normal(xkey, (BATCH, INPUT_SIZE), dtype=jnp.float32)

    forward = jax.jit(vae_lstm_forward)
    recon, one_hot, logits, messages = forward(x, params)
    jax.block_until_ready((recon, one_hot, logits, messages))

    # Structural checks.
    assert recon.shape == (BATCH, OUTPUT_SIZE)
    assert one_hot.shape == (BATCH, LATENT, DICT)
    assert logits.shape == (BATCH, LATENT, DICT)
    assert messages.shape == (BATCH, LATENT)
    assert bool(jnp.all(jnp.sum(one_hot, axis=-1) == 1.0))
    assert bool(jnp.all(messages == jnp.argmax(logits, axis=-1)))

    # Numerical check against a plain-JAX reference (teacher-forced one_hot,
    # so it only verifies the fused-weight math, not argmax tie-breaking).
    recon_chk, logits_chk = reference_teacher_forced(x, params, one_hot)
    assert bool(jnp.allclose(logits, logits_chk, atol=2e-3, rtol=2e-3))
    assert bool(jnp.allclose(recon, recon_chk, atol=2e-3, rtol=2e-3))

    print("KERNEL_OK")
</pallas_src>

<mosaic_0001>
module attributes {stable_mosaic.version = 11 : i64} {
  func.func @vae_lstm_kernel(%arg0: memref<8x16xf32, #tpu.memory_space<vmem>>, %arg1: memref<16x32xf32, #tpu.memory_space<vmem>>, %arg2: memref<1x32xf32, #tpu.memory_space<vmem>>, %arg3: memref<48x128xf32, #tpu.memory_space<vmem>>, %arg4: memref<1x128xf32, #tpu.memory_space<vmem>>, %arg5: memref<1x128xf32, #tpu.memory_space<vmem>>, %arg6: memref<32x16xf32, #tpu.memory_space<vmem>>, %arg7: memref<1x16xf32, #tpu.memory_space<vmem>>, %arg8: memref<48x128xf32, #tpu.memory_space<vmem>>, %arg9: memref<1x128xf32, #tpu.memory_space<vmem>>, %arg10: memref<32x16xf32, #tpu.memory_space<vmem>>, %arg11: memref<1x16xf32, #tpu.memory_space<vmem>>, %arg12: memref<8x16xf32, #tpu.memory_space<vmem>>, %arg13: memref<8x128xf32, #tpu.memory_space<vmem>>, %arg14: memref<8x128xf32, #tpu.memory_space<vmem>>) attributes {dimension_semantics = [], scalar_prefetch = 0 : i64, scratch_operands = 0 : i64, tpu.core_type = #tpu.core_type<tc>} {
    %c0 = arith.constant 0 : index
    %c0_0 = arith.constant 0 : index
    %0 = vector.load %arg3[%c0, %c0_0] : memref<48x128xf32, #tpu.memory_space<vmem>>, vector<48x128xf32>
    %c0_1 = arith.constant 0 : index
    %c0_2 = arith.constant 0 : index
    %1 = vector.load %arg8[%c0_1, %c0_2] : memref<48x128xf32, #tpu.memory_space<vmem>>, vector<48x128xf32>
    %c0_3 = arith.constant 0 : index
    %c0_4 = arith.constant 0 : index
    %2 = vector.load %arg6[%c0_3, %c0_4] : memref<32x16xf32, #tpu.memory_space<vmem>>, vector<32x16xf32>
    %c0_5 = arith.constant 0 : index
    %c0_6 = arith.constant 0 : index
    %3 = vector.load %arg4[%c0_5, %c0_6] : memref<1x128xf32, #tpu.memory_space<vmem>>, vector<1x128xf32>
    %4 = vector.shape_cast %3 : vector<1x128xf32> to vector<1x128xf32>
    %5 = vector.broadcast %4 : vector<1x128xf32> to vector<8x128xf32>
    %c0_7 = arith.constant 0 : index
    %c0_8 = arith.constant 0 : index
    %6 = vector.load %arg5[%c0_7, %c0_8] : memref<1x128xf32, #tpu.memory_space<vmem>>, vector<1x128xf32>
    %7 = vector.shape_cast %6 : vector<1x128xf32> to vector<1x128xf32>
    %8 = vector.broadcast %7 : vector<1x128xf32> to vector<8x128xf32>
    %c0_9 = arith.constant 0 : index
    %c0_10 = arith.constant 0 : index
    %9 = vector.load %arg9[%c0_9, %c0_10] : memref<1x128xf32, #tpu.memory_space<vmem>>, vector<1x128xf32>
    %10 = vector.shape_cast %9 : vector<1x128xf32> to vector<1x128xf32>
    %11 = vector.broadcast %10 : vector<1x128xf32> to vector<8x128xf32>
    %c0_11 = arith.constant 0 : index
    %c0_12 = arith.constant 0 : index
    %12 = vector.load %arg7[%c0_11, %c0_12] : memref<1x16xf32, #tpu.memory_space<vmem>>, vector<1x16xf32>
    %13 = vector.shape_cast %12 : vector<1x16xf32> to vector<1x16xf32>
    %14 = vector.broadcast %13 : vector<1x16xf32> to vector<8x16xf32>
    %c0_13 = arith.constant 0 : index
    %c0_14 = arith.constant 0 : index
    %15 = vector.load %arg0[%c0_13, %c0_14] : memref<8x16xf32, #tpu.memory_space<vmem>>, vector<8x16xf32>
    %c0_15 = arith.constant 0 : index
    %c0_16 = arith.constant 0 : index
    %16 = vector.load %arg1[%c0_15, %c0_16] : memref<16x32xf32, #tpu.memory_space<vmem>>, vector<16x32xf32>
    %cst = arith.constant dense<0.000000e+00> : vector<8x32xf32>
    %17 = tpu.matmul %15, %16, %cst {dimension_numbers = #tpu.dot_dimension_numbers<[1], [0], [0], [1], [0, 0, 1, 1], [], []>} : vector<8x16xf32>, vector<16x32xf32>, vector<8x32xf32> -> vector<8x32xf32>
    %c0_17 = arith.constant 0 : index
    %c0_18 = arith.constant 0 : index
    %18 = vector.load %arg2[%c0_17, %c0_18] : memref<1x32xf32, #tpu.memory_space<vmem>>, vector<1x32xf32>
    %19 = vector.broadcast %18 : vector<1x32xf32> to vector<8x32xf32>
    %20 = arith.addf %17, %19 : vector<8x32xf32>
    %cst_19 = arith.constant 0.000000e+00 : f32
    %21 = vector.broadcast %cst_19 : f32 to vector<8x32xf32>
    %cst_20 = arith.constant 0.000000e+00 : f32
    %22 = vector.broadcast %cst_20 : f32 to vector<8x32xf32>
    %23 = tpu.iota {dimensions = array<i32: 1>} : vector<8x16xi32>
    %24 = arith.negf %5 : vector<8x128xf32>
    %25 = math.exp %24 : vector<8x128xf32>
    %cst_21 = arith.constant 1.000000e+00 : f32
    %26 = vector.broadcast %cst_21 : f32 to vector<8x128xf32>
    %27 = arith.addf %26, %25 : vector<8x128xf32>
    %28 = arith.divf %26, %27 : vector<8x128xf32>
    %29 = math.tanh %5 : vector<8x128xf32>
    %30 = vector.extract_strided_slice %28 {offsets = [0, 0], sizes = [8, 32], strides = [1, 1]} : vector<8x128xf32> to vector<8x32xf32>
    %31 = vector.extract_strided_slice %28 {offsets = [0, 32], sizes = [8, 32], strides = [1, 1]} : vector<8x128xf32> to vector<8x32xf32>
    %32 = vector.extract_strided_slice %29 {offsets = [0, 64], sizes = [8, 32], strides = [1, 1]} : vector<8x128xf32> to vector<8x32xf32>
    %33 = vector.extract_strided_slice %28 {offsets = [0, 96], sizes = [8, 32], strides = [1, 1]} : vector<8x128xf32> to vector<8x32xf32>
    %34 = arith.mulf %31, %20 : vector<8x32xf32>
    %35 = arith.mulf %30, %32 : vector<8x32xf32>
    %36 = arith.addf %34, %35 : vector<8x32xf32>
    %37 = math.tanh %36 : vector<8x32xf32>
    %38 = arith.mulf %33, %37 : vector<8x32xf32>
    %cst_22 = arith.constant dense<0.000000e+00> : vector<8x16xf32>
    %39 = tpu.matmul %38, %2, %cst_22 {dimension_numbers = #tpu.dot_dimension_numbers<[1], [0], [0], [1], [0, 0, 1, 1], [], []>} : vector<8x32xf32>, vector<32x16xf32>, vector<8x16xf32> -> vector<8x16xf32>
    %40 = arith.addf %39, %14 : vector<8x16xf32>
    %cst_23 = arith.constant dense<0xFF800000> : vector<8xf32>
    %41 = vector.multi_reduction <maximumf>, %40, %cst_23 [1] : vector<8x16xf32> to vector<8xf32>
    %42 = vector.shape_cast %41 : vector<8xf32> to vector<8x1xf32>
    %43 = vector.broadcast %42 : vector<8x1xf32> to vector<8x16xf32>
    %44 = arith.cmpf oeq, %40, %43 : vector<8x16xf32>
    %c16_i32 = arith.constant 16 : i32
    %45 = vector.broadcast %c16_i32 : i32 to vector<8x16xi32>
    %46 = arith.select %44, %23, %45 : vector<8x16xi1>, vector<8x16xi32>
    %cst_24 = arith.constant dense<2147483647> : vector<8xi32>
    %47 = vector.multi_reduction <minsi>, %46, %cst_24 [1] : vector<8x16xi32> to vector<8xi32>
    %48 = vector.shape_cast %47 : vector<8xi32> to vector<8x1xi32>
    %49 = vector.broadcast %48 : vector<8x1xi32> to vector<8x16xi32>
    %50 = arith.cmpi eq, %23, %49 : vector<8x16xi32>
    %51 = arith.extui %50 : vector<8x16xi1> to vector<8x16xi32>
    %52 = arith.sitofp %51 : vector<8x16xi32> to vector<8x16xf32>
    %53 = tpu.concatenate %52, %21 in 1 : vector<8x16xf32>, vector<8x32xf32> -> vector<8x48xf32>
    %cst_25 = arith.constant dense<0.000000e+00> : vector<8x128xf32>
    %54 = tpu.matmul %53, %1, %cst_25 {dimension_numbers = #tpu.dot_dimension_numbers<[1], [0], [0], [1], [0, 0, 1, 1], [], []>} : vector<8x48xf32>, vector<48x128xf32>, vector<8x128xf32> -> vector<8x128xf32>
    %55 = arith.addf %54, %11 : vector<8x128xf32>
    %56 = arith.negf %55 : vector<8x128xf32>
    %57 = math.exp %56 : vector<8x128xf32>
    %cst_26 = arith.constant 1.000000e+00 : f32
    %58 = vector.broadcast %cst_26 : f32 to vector<8x128xf32>
    %59 = arith.addf %58, %57 : vector<8x128xf32>
    %60 = arith.divf %58, %59 : vector<8x128xf32>
    %61 = math.tanh %55 : vector<8x128xf32>
    %62 = vector.extract_strided_slice %60 {offsets = [0, 0], sizes = [8, 32], strides = [1, 1]} : vector<8x128xf32> to vector<8x32xf32>
    %63 = vector.extract_strided_slice %60 {offsets = [0, 32], sizes = [8, 32], strides = [1, 1]} : vector<8x128xf32> to vector<8x32xf32>
    %64 = vector.extract_strided_slice %61 {offsets = [0, 64], sizes = [8, 32], strides = [1, 1]} : vector<8x128xf32> to vector<8x32xf32>
    %65 = vector.extract_strided_slice %60 {offsets = [0, 96], sizes = [8, 32], strides = [1, 1]} : vector<8x128xf32> to vector<8x32xf32>
    %66 = arith.mulf %63, %22 : vector<8x32xf32>
    %67 = arith.mulf %62, %64 : vector<8x32xf32>
    %68 = arith.addf %66, %67 : vector<8x32xf32>
    %69 = math.tanh %68 : vector<8x32xf32>
    %70 = arith.mulf %65, %69 : vector<8x32xf32>
    %71 = tpu.concatenate %52, %38 in 1 : vector<8x16xf32>, vector<8x32xf32> -> vector<8x48xf32>
    %cst_27 = arith.constant dense<0.000000e+00> : vector<8x128xf32>
    %72 = tpu.matmul %71, %0, %cst_27 {dimension_numbers = #tpu.dot_dimension_numbers<[1], [0], [0], [1], [0, 0, 1, 1], [], []>} : vector<8x48xf32>, vector<48x128xf32>, vector<8x128xf32> -> vector<8x128xf32>
    %73 = arith.addf %72, %8 : vector<8x128xf32>
    %74 = arith.negf %73 : vector<8x128xf32>
    %75 = math.exp %74 : vector<8x128xf32>
    %cst_28 = arith.constant 1.000000e+00 : f32
    %76 = vector.broadcast %cst_28 : f32 to vector<8x128xf32>
    %77 = arith.addf %76, %75 : vector<8x128xf32>
    %78 = arith.divf %76, %77 : vector<8x128xf32>
    %79 = math.tanh %73 : vector<8x128xf32>
    %80 = vector.extract_strided_slice %78 {offsets = [0, 0], sizes = [8, 32], strides = [1, 1]} : vector<8x128xf32> to vector<8x32xf32>
    %81 = vector.extract_strided_slice %78 {offsets = [0, 32], sizes = [8, 32], strides = [1, 1]} : vector<8x128xf32> to vector<8x32xf32>
    %82 = vector.extract_strided_slice %79 {offsets = [0, 64], sizes = [8, 32], strides = [1, 1]} : vector<8x128xf32> to vector<8x32xf32>
    %83 = vector.extract_strided_slice %78 {offsets = [0, 96], sizes = [8, 32], strides = [1, 1]} : vector<8x128xf32> to vector<8x32xf32>
    %84 = arith.mulf %81, %36 : vector<8x32xf32>
    %85 = arith.mulf %80, %82 : vector<8x32xf32>
    %86 = arith.addf %84, %85 : vector<8x32xf32>
    %87 = math.tanh %86 : vector<8x32xf32>
    %88 = arith.mulf %83, %87 : vector<8x32xf32>
    %cst_29 = arith.constant dense<0.000000e+00> : vector<8x16xf32>
    %89 = tpu.matmul %88, %2, %cst_29 {dimension_numbers = #tpu.dot_dimension_numbers<[1], [0], [0], [1], [0, 0, 1, 1], [], []>} : vector<8x32xf32>, vector<32x16xf32>, vector<8x16xf32> -> vector<8x16xf32>
    %90 = arith.addf %89, %14 : vector<8x16xf32>
    %cst_30 = arith.constant dense<0xFF800000> : vector<8xf32>
    %91 = vector.multi_reduction <maximumf>, %90, %cst_30 [1] : vector<8x16xf32> to vector<8xf32>
    %92 = vector.shape_cast %91 : vector<8xf32> to vector<8x1xf32>
    %93 = vector.broadcast %92 : vector<8x1xf32> to vector<8x16xf32>
    %94 = arith.cmpf oeq, %90, %93 : vector<8x16xf32>
    %c16_i32_31 = arith.constant 16 : i32
    %95 = vector.broadcast %c16_i32_31 : i32 to vector<8x16xi32>
    %96 = arith.select %94, %23, %95 : vector<8x16xi1>, vector<8x16xi32>
    %cst_32 = arith.constant dense<2147483647> : vector<8xi32>
    %97 = vector.multi_reduction <minsi>, %96, %cst_32 [1] : vector<8x16xi32> to vector<8xi32>
    %98 = vector.shape_cast %97 : vector<8xi32> to vector<8x1xi32>
    %99 = vector.broadcast %98 : vector<8x1xi32> to vector<8x16xi32>
    %100 = arith.cmpi eq, %23, %99 : vector<8x16xi32>
    %101 = arith.extui %100 : vector<8x16xi1> to vector<8x16xi32>
    %102 = arith.sitofp %101 : vector<8x16xi32> to vector<8x16xf32>
    %103 = tpu.concatenate %102, %70 in 1 : vector<8x16xf32>, vector<8x32xf32> -> vector<8x48xf32>
    %cst_33 = arith.constant dense<0.000000e+00> : vector<8x128xf32>
    %104 = tpu.matmul %103, %1, %cst_33 {dimension_numbers = #tpu.dot_dimension_numbers<[1], [0], [0], [1], [0, 0, 1, 1], [], []>} : vector<8x48xf32>, vector<48x128xf32>, vector<8x128xf32> -> vector<8x128xf32>
    %105 = arith.addf %104, %11 : vector<8x128xf32>
    %106 = arith.negf %105 : vector<8x128xf32>
    %107 = math.exp %106 : vector<8x128xf32>
    %cst_34 = arith.constant 1.000000e+00 : f32
    %108 = vector.broadcast %cst_34 : f32 to vector<8x128xf32>
    %109 = arith.addf %108, %107 : vector<8x128xf32>
    %110 = arith.divf %108, %109 : vector<8x128xf32>
    %111 = math.tanh %105 : vector<8x128xf32>
    %112 = vector.extract_strided_slice %110 {offsets = [0, 0], sizes = [8, 32], strides = [1, 1]} : vector<8x128xf32> to vector<8x32xf32>
    %113 = vector.extract_strided_slice %110 {offsets = [0, 32], sizes = [8, 32], strides = [1, 1]} : vector<8x128xf32> to vector<8x32xf32>
    %114 = vector.extract_strided_slice %111 {offsets = [0, 64], sizes = [8, 32], strides = [1, 1]} : vector<8x128xf32> to vector<8x32xf32>
    %115 = vector.extract_strided_slice %110 {offsets = [0, 96], sizes = [8, 32], strides = [1, 1]} : vector<8x128xf32> to vector<8x32xf32>
    %116 = arith.mulf %113, %68 : vector<8x32xf32>
    %117 = arith.mulf %112, %114 : vector<8x32xf32>
    %118 = arith.addf %116, %117 : vector<8x32xf32>
    %119 = math.tanh %118 : vector<8x32xf32>
    %120 = arith.mulf %115, %119 : vector<8x32xf32>
    %121 = tpu.concatenate %102, %88 in 1 : vector<8x16xf32>, vector<8x32xf32> -> vector<8x48xf32>
    %cst_35 = arith.constant dense<0.000000e+00> : vector<8x128xf32>
    %122 = tpu.matmul %121, %0, %cst_35 {dimension_numbers = #tpu.dot_dimension_numbers<[1], [0], [0], [1], [0, 0, 1, 1], [], []>} : vector<8x48xf32>, vector<48x128xf32>, vector<8x128xf32> -> vector<8x128xf32>
    %123 = arith.addf %122, %8 : vector<8x128xf32>
    %124 = arith.negf %123 : vector<8x128xf32>
    %125 = math.exp %124 : vector<8x128xf32>
    %cst_36 = arith.constant 1.000000e+00 : f32
    %126 = vector.broadcast %cst_36 : f32 to vector<8x128xf32>
    %127 = arith.addf %126, %125 : vector<8x128xf32>
    %128 = arith.divf %126, %127 : vector<8x128xf32>
    %129 = math.tanh %123 : vector<8x128xf32>
    %130 = vector.extract_strided_slice %128 {offsets = [0, 0], sizes = [8, 32], strides = [1, 1]} : vector<8x128xf32> to vector<8x32xf32>
    %131 = vector.extract_strided_slice %128 {offsets = [0, 32], sizes = [8, 32], strides = [1, 1]} : vector<8x128xf32> to vector<8x32xf32>
    %132 = vector.extract_strided_slice %129 {offsets = [0, 64], sizes = [8, 32], strides = [1, 1]} : vector<8x128xf32> to vector<8x32xf32>
    %133 = vector.extract_strided_slice %128 {offsets = [0, 96], sizes = [8, 32], strides = [1, 1]} : vector<8x128xf32> to vector<8x32xf32>
    %134 = arith.mulf %131, %86 : vector<8x32xf32>
    %135 = arith.mulf %130, %132 : vector<8x32xf32>
    %136 = arith.addf %134, %135 : vector<8x32xf32>
    %137 = math.tanh %136 : vector<8x32xf32>
    %138 = arith.mulf %133, %137 : vector<8x32xf32>
    %cst_37 = arith.constant dense<0.000000e+00> : vector<8x16xf32>
    %139 = tpu.matmul %138, %2, %cst_37 {dimension_numbers = #tpu.dot_dimension_numbers<[1], [0], [0], [1], [0, 0, 1, 1], [], []>} : vector<8x32xf32>, vector<32x16xf32>, vector<8x16xf32> -> vector<8x16xf32>
    %140 = arith.addf %139, %14 : vector<8x16xf32>
    %cst_38 = arith.constant dense<0xFF800000> : vector<8xf32>
    %141 = vector.multi_reduction <maximumf>, %140, %cst_38 [1] : vector<8x16xf32> to vector<8xf32>
    %142 = vector.shape_cast %141 : vector<8xf32> to vector<8x1xf32>
    %143 = vector.broadcast %142 : vector<8x1xf32> to vector<8x16xf32>
    %144 = arith.cmpf oeq, %140, %143 : vector<8x16xf32>
    %c16_i32_39 = arith.constant 16 : i32
    %145 = vector.broadcast %c16_i32_39 : i32 to vector<8x16xi32>
    %146 = arith.select %144, %23, %145 : vector<8x16xi1>, vector<8x16xi32>
    %cst_40 = arith.constant dense<2147483647> : vector<8xi32>
    %147 = vector.multi_reduction <minsi>, %146, %cst_40 [1] : vector<8x16xi32> to vector<8xi32>
    %148 = vector.shape_cast %147 : vector<8xi32> to vector<8x1xi32>
    %149 = vector.broadcast %148 : vector<8x1xi32> to vector<8x16xi32>
    %150 = arith.cmpi eq, %23, %149 : vector<8x16xi32>
    %151 = arith.extui %150 : vector<8x16xi1> to vector<8x16xi32>
    %152 = arith.sitofp %151 : vector<8x16xi32> to vector<8x16xf32>
    %153 = tpu.concatenate %152, %120 in 1 : vector<8x16xf32>, vector<8x32xf32> -> vector<8x48xf32>
    %cst_41 = arith.constant dense<0.000000e+00> : vector<8x128xf32>
    %154 = tpu.matmul %153, %1, %cst_41 {dimension_numbers = #tpu.dot_dimension_numbers<[1], [0], [0], [1], [0, 0, 1, 1], [], []>} : vector<8x48xf32>, vector<48x128xf32>, vector<8x128xf32> -> vector<8x128xf32>
    %155 = arith.addf %154, %11 : vector<8x128xf32>
    %156 = arith.negf %155 : vector<8x128xf32>
    %157 = math.exp %156 : vector<8x128xf32>
    %cst_42 = arith.constant 1.000000e+00 : f32
    %158 = vector.broadcast %cst_42 : f32 to vector<8x128xf32>
    %159 = arith.addf %158, %157 : vector<8x128xf32>
    %160 = arith.divf %158, %159 : vector<8x128xf32>
    %161 = math.tanh %155 : vector<8x128xf32>
    %162 = vector.extract_strided_slice %160 {offsets = [0, 0], sizes = [8, 32], strides = [1, 1]} : vector<8x128xf32> to vector<8x32xf32>
    %163 = vector.extract_strided_slice %160 {offsets = [0, 32], sizes = [8, 32], strides = [1, 1]} : vector<8x128xf32> to vector<8x32xf32>
    %164 = vector.extract_strided_slice %161 {offsets = [0, 64], sizes = [8, 32], strides = [1, 1]} : vector<8x128xf32> to vector<8x32xf32>
    %165 = vector.extract_strided_slice %160 {offsets = [0, 96], sizes = [8, 32], strides = [1, 1]} : vector<8x128xf32> to vector<8x32xf32>
    %166 = arith.mulf %163, %118 : vector<8x32xf32>
    %167 = arith.mulf %162, %164 : vector<8x32xf32>
    %168 = arith.addf %166, %167 : vector<8x32xf32>
    %169 = math.tanh %168 : vector<8x32xf32>
    %170 = arith.mulf %165, %169 : vector<8x32xf32>
    %171 = tpu.concatenate %152, %138 in 1 : vector<8x16xf32>, vector<8x32xf32> -> vector<8x48xf32>
    %cst_43 = arith.constant dense<0.000000e+00> : vector<8x128xf32>
    %172 = tpu.matmul %171, %0, %cst_43 {dimension_numbers = #tpu.dot_dimension_numbers<[1], [0], [0], [1], [0, 0, 1, 1], [], []>} : vector<8x48xf32>, vector<48x128xf32>, vector<8x128xf32> -> vector<8x128xf32>
    %173 = arith.addf %172, %8 : vector<8x128xf32>
    %174 = arith.negf %173 : vector<8x128xf32>
    %175 = math.exp %174 : vector<8x128xf32>
    %cst_44 = arith.constant 1.000000e+00 : f32
    %176 = vector.broadcast %cst_44 : f32 to vector<8x128xf32>
    %177 = arith.addf %176, %175 : vector<8x128xf32>
    %178 = arith.divf %176, %177 : vector<8x128xf32>
    %179 = math.tanh %173 : vector<8x128xf32>
    %180 = vector.extract_strided_slice %178 {offsets = [0, 0], sizes = [8, 32], strides = [1, 1]} : vector<8x128xf32> to vector<8x32xf32>
    %181 = vector.extract_strided_slice %178 {offsets = [0, 32], sizes = [8, 32], strides = [1, 1]} : vector<8x128xf32> to vector<8x32xf32>
    %182 = vector.extract_strided_slice %179 {offsets = [0, 64], sizes = [8, 32], strides = [1, 1]} : vector<8x128xf32> to vector<8x32xf32>
    %183 = vector.extract_strided_slice %178 {offsets = [0, 96], sizes = [8, 32], strides = [1, 1]} : vector<8x128xf32> to vector<8x32xf32>
    %184 = arith.mulf %181, %136 : vector<8x32xf32>
    %185 = arith.mulf %180, %182 : vector<8x32xf32>
    %186 = arith.addf %184, %185 : vector<8x32xf32>
    %187 = math.tanh %186 : vector<8x32xf32>
    %188 = arith.mulf %183, %187 : vector<8x32xf32>
    %cst_45 = arith.constant dense<0.000000e+00> : vector<8x16xf32>
    %189 = tpu.matmul %188, %2, %cst_45 {dimension_numbers = #tpu.dot_dimension_numbers<[1], [0], [0], [1], [0, 0, 1, 1], [], []>} : vector<8x32xf32>, vector<32x16xf32>, vector<8x16xf32> -> vector<8x16xf32>
    %190 = arith.addf %189, %14 : vector<8x16xf32>
    %cst_46 = arith.constant dense<0xFF800000> : vector<8xf32>
    %191 = vector.multi_reduction <maximumf>, %190, %cst_46 [1] : vector<8x16xf32> to vector<8xf32>
    %192 = vector.shape_cast %191 : vector<8xf32> to vector<8x1xf32>
    %193 = vector.broadcast %192 : vector<8x1xf32> to vector<8x16xf32>
    %194 = arith.cmpf oeq, %190, %193 : vector<8x16xf32>
    %c16_i32_47 = arith.constant 16 : i32
    %195 = vector.broadcast %c16_i32_47 : i32 to vector<8x16xi32>
    %196 = arith.select %194, %23, %195 : vector<8x16xi1>, vector<8x16xi32>
    %cst_48 = arith.constant dense<2147483647> : vector<8xi32>
    %197 = vector.multi_reduction <minsi>, %196, %cst_48 [1] : vector<8x16xi32> to vector<8xi32>
    %198 = vector.shape_cast %197 : vector<8xi32> to vector<8x1xi32>
    %199 = vector.broadcast %198 : vector<8x1xi32> to vector<8x16xi32>
    %200 = arith.cmpi eq, %23, %199 : vector<8x16xi32>
    %201 = arith.extui %200 : vector<8x16xi1> to vector<8x16xi32>
    %202 = arith.sitofp %201 : vector<8x16xi32> to vector<8x16xf32>
    %203 = tpu.concatenate %202, %170 in 1 : vector<8x16xf32>, vector<8x32xf32> -> vector<8x48xf32>
    %cst_49 = arith.constant dense<0.000000e+00> : vector<8x128xf32>
    %204 = tpu.matmul %203, %1, %cst_49 {dimension_numbers = #tpu.dot_dimension_numbers<[1], [0], [0], [1], [0, 0, 1, 1], [], []>} : vector<8x48xf32>, vector<48x128xf32>, vector<8x128xf32> -> vector<8x128xf32>
    %205 = arith.addf %204, %11 : vector<8x128xf32>
    %206 = arith.negf %205 : vector<8x128xf32>
    %207 = math.exp %206 : vector<8x128xf32>
    %cst_50 = arith.constant 1.000000e+00 : f32
    %208 = vector.broadcast %cst_50 : f32 to vector<8x128xf32>
    %209 = arith.addf %208, %207 : vector<8x128xf32>
    %210 = arith.divf %208, %209 : vector<8x128xf32>
    %211 = math.tanh %205 : vector<8x128xf32>
    %212 = vector.extract_strided_slice %210 {offsets = [0, 0], sizes = [8, 32], strides = [1, 1]} : vector<8x128xf32> to vector<8x32xf32>
    %213 = vector.extract_strided_slice %210 {offsets = [0, 32], sizes = [8, 32], strides = [1, 1]} : vector<8x128xf32> to vector<8x32xf32>
    %214 = vector.extract_strided_slice %211 {offsets = [0, 64], sizes = [8, 32], strides = [1, 1]} : vector<8x128xf32> to vector<8x32xf32>
    %215 = vector.extract_strided_slice %210 {offsets = [0, 96], sizes = [8, 32], strides = [1, 1]} : vector<8x128xf32> to vector<8x32xf32>
    %216 = arith.mulf %213, %168 : vector<8x32xf32>
    %217 = arith.mulf %212, %214 : vector<8x32xf32>
    %218 = arith.addf %216, %217 : vector<8x32xf32>
    %219 = math.tanh %218 : vector<8x32xf32>
    %220 = arith.mulf %215, %219 : vector<8x32xf32>
    %221 = tpu.concatenate %202, %188 in 1 : vector<8x16xf32>, vector<8x32xf32> -> vector<8x48xf32>
    %cst_51 = arith.constant dense<0.000000e+00> : vector<8x128xf32>
    %222 = tpu.matmul %221, %0, %cst_51 {dimension_numbers = #tpu.dot_dimension_numbers<[1], [0], [0], [1], [0, 0, 1, 1], [], []>} : vector<8x48xf32>, vector<48x128xf32>, vector<8x128xf32> -> vector<8x128xf32>
    %223 = arith.addf %222, %8 : vector<8x128xf32>
    %224 = arith.negf %223 : vector<8x128xf32>
    %225 = math.exp %224 : vector<8x128xf32>
    %cst_52 = arith.constant 1.000000e+00 : f32
    %226 = vector.broadcast %cst_52 : f32 to vector<8x128xf32>
    %227 = arith.addf %226, %225 : vector<8x128xf32>
    %228 = arith.divf %226, %227 : vector<8x128xf32>
    %229 = math.tanh %223 : vector<8x128xf32>
    %230 = vector.extract_strided_slice %228 {offsets = [0, 0], sizes = [8, 32], strides = [1, 1]} : vector<8x128xf32> to vector<8x32xf32>
    %231 = vector.extract_strided_slice %228 {offsets = [0, 32], sizes = [8, 32], strides = [1, 1]} : vector<8x128xf32> to vector<8x32xf32>
    %232 = vector.extract_strided_slice %229 {offsets = [0, 64], sizes = [8, 32], strides = [1, 1]} : vector<8x128xf32> to vector<8x32xf32>
    %233 = vector.extract_strided_slice %228 {offsets = [0, 96], sizes = [8, 32], strides = [1, 1]} : vector<8x128xf32> to vector<8x32xf32>
    %234 = arith.mulf %231, %186 : vector<8x32xf32>
    %235 = arith.mulf %230, %232 : vector<8x32xf32>
    %236 = arith.addf %234, %235 : vector<8x32xf32>
    %237 = math.tanh %236 : vector<8x32xf32>
    %238 = arith.mulf %233, %237 : vector<8x32xf32>
    %cst_53 = arith.constant dense<0.000000e+00> : vector<8x16xf32>
    %239 = tpu.matmul %238, %2, %cst_53 {dimension_numbers = #tpu.dot_dimension_numbers<[1], [0], [0], [1], [0, 0, 1, 1], [], []>} : vector<8x32xf32>, vector<32x16xf32>, vector<8x16xf32> -> vector<8x16xf32>
    %240 = arith.addf %239, %14 : vector<8x16xf32>
    %cst_54 = arith.constant dense<0xFF800000> : vector<8xf32>
    %241 = vector.multi_reduction <maximumf>, %240, %cst_54 [1] : vector<8x16xf32> to vector<8xf32>
    %242 = vector.shape_cast %241 : vector<8xf32> to vector<8x1xf32>
    %243 = vector.broadcast %242 : vector<8x1xf32> to vector<8x16xf32>
    %244 = arith.cmpf oeq, %240, %243 : vector<8x16xf32>
    %c16_i32_55 = arith.constant 16 : i32
    %245 = vector.broadcast %c16_i32_55 : i32 to vector<8x16xi32>
    %246 = arith.select %244, %23, %245 : vector<8x16xi1>, vector<8x16xi32>
    %cst_56 = arith.constant dense<2147483647> : vector<8xi32>
    %247 = vector.multi_reduction <minsi>, %246, %cst_56 [1] : vector<8x16xi32> to vector<8xi32>
    %248 = vector.shape_cast %247 : vector<8xi32> to vector<8x1xi32>
    %249 = vector.broadcast %248 : vector<8x1xi32> to vector<8x16xi32>
    %250 = arith.cmpi eq, %23, %249 : vector<8x16xi32>
    %251 = arith.extui %250 : vector<8x16xi1> to vector<8x16xi32>
    %252 = arith.sitofp %251 : vector<8x16xi32> to vector<8x16xf32>
    %253 = tpu.concatenate %252, %220 in 1 : vector<8x16xf32>, vector<8x32xf32> -> vector<8x48xf32>
    %cst_57 = arith.constant dense<0.000000e+00> : vector<8x128xf32>
    %254 = tpu.matmul %253, %1, %cst_57 {dimension_numbers = #tpu.dot_dimension_numbers<[1], [0], [0], [1], [0, 0, 1, 1], [], []>} : vector<8x48xf32>, vector<48x128xf32>, vector<8x128xf32> -> vector<8x128xf32>
    %255 = arith.addf %254, %11 : vector<8x128xf32>
    %256 = arith.negf %255 : vector<8x128xf32>
    %257 = math.exp %256 : vector<8x128xf32>
    %cst_58 = arith.constant 1.000000e+00 : f32
    %258 = vector.broadcast %cst_58 : f32 to vector<8x128xf32>
    %259 = arith.addf %258, %257 : vector<8x128xf32>
    %260 = arith.divf %258, %259 : vector<8x128xf32>
    %261 = math.tanh %255 : vector<8x128xf32>
    %262 = vector.extract_strided_slice %260 {offsets = [0, 0], sizes = [8, 32], strides = [1, 1]} : vector<8x128xf32> to vector<8x32xf32>
    %263 = vector.extract_strided_slice %260 {offsets = [0, 32], sizes = [8, 32], strides = [1, 1]} : vector<8x128xf32> to vector<8x32xf32>
    %264 = vector.extract_strided_slice %261 {offsets = [0, 64], sizes = [8, 32], strides = [1, 1]} : vector<8x128xf32> to vector<8x32xf32>
    %265 = vector.extract_strided_slice %260 {offsets = [0, 96], sizes = [8, 32], strides = [1, 1]} : vector<8x128xf32> to vector<8x32xf32>
    %266 = arith.mulf %263, %218 : vector<8x32xf32>
    %267 = arith.mulf %262, %264 : vector<8x32xf32>
    %268 = arith.addf %266, %267 : vector<8x32xf32>
    %269 = math.tanh %268 : vector<8x32xf32>
    %270 = arith.mulf %265, %269 : vector<8x32xf32>
    %271 = tpu.concatenate %252, %238 in 1 : vector<8x16xf32>, vector<8x32xf32> -> vector<8x48xf32>
    %cst_59 = arith.constant dense<0.000000e+00> : vector<8x128xf32>
    %272 = tpu.matmul %271, %0, %cst_59 {dimension_numbers = #tpu.dot_dimension_numbers<[1], [0], [0], [1], [0, 0, 1, 1], [], []>} : vector<8x48xf32>, vector<48x128xf32>, vector<8x128xf32> -> vector<8x128xf32>
    %273 = arith.addf %272, %8 : vector<8x128xf32>
    %274 = arith.negf %273 : vector<8x128xf32>
    %275 = math.exp %274 : vector<8x128xf32>
    %cst_60 = arith.constant 1.000000e+00 : f32
    %276 = vector.broadcast %cst_60 : f32 to vector<8x128xf32>
    %277 = arith.addf %276, %275 : vector<8x128xf32>
    %278 = arith.divf %276, %277 : vector<8x128xf32>
    %279 = math.tanh %273 : vector<8x128xf32>
    %280 = vector.extract_strided_slice %278 {offsets = [0, 0], sizes = [8, 32], strides = [1, 1]} : vector<8x128xf32> to vector<8x32xf32>
    %281 = vector.extract_strided_slice %278 {offsets = [0, 32], sizes = [8, 32], strides = [1, 1]} : vector<8x128xf32> to vector<8x32xf32>
    %282 = vector.extract_strided_slice %279 {offsets = [0, 64], sizes = [8, 32], strides = [1, 1]} : vector<8x128xf32> to vector<8x32xf32>
    %283 = vector.extract_strided_slice %278 {offsets = [0, 96], sizes = [8, 32], strides = [1, 1]} : vector<8x128xf32> to vector<8x32xf32>
    %284 = arith.mulf %281, %236 : vector<8x32xf32>
    %285 = arith.mulf %280, %282 : vector<8x32xf32>
    %286 = arith.addf %284, %285 : vector<8x32xf32>
    %287 = math.tanh %286 : vector<8x32xf32>
    %288 = arith.mulf %283, %287 : vector<8x32xf32>
    %cst_61 = arith.constant dense<0.000000e+00> : vector<8x16xf32>
    %289 = tpu.matmul %288, %2, %cst_61 {dimension_numbers = #tpu.dot_dimension_numbers<[1], [0], [0], [1], [0, 0, 1, 1], [], []>} : vector<8x32xf32>, vector<32x16xf32>, vector<8x16xf32> -> vector<8x16xf32>
    %290 = arith.addf %289, %14 : vector<8x16xf32>
    %cst_62 = arith.constant dense<0xFF800000> : vector<8xf32>
    %291 = vector.multi_reduction <maximumf>, %290, %cst_62 [1] : vector<8x16xf32> to vector<8xf32>
    %292 = vector.shape_cast %291 : vector<8xf32> to vector<8x1xf32>
    %293 = vector.broadcast %292 : vector<8x1xf32> to vector<8x16xf32>
    %294 = arith.cmpf oeq, %290, %293 : vector<8x16xf32>
    %c16_i32_63 = arith.constant 16 : i32
    %295 = vector.broadcast %c16_i32_63 : i32 to vector<8x16xi32>
    %296 = arith.select %294, %23, %295 : vector<8x16xi1>, vector<8x16xi32>
    %cst_64 = arith.constant dense<2147483647> : vector<8xi32>
    %297 = vector.multi_reduction <minsi>, %296, %cst_64 [1] : vector<8x16xi32> to vector<8xi32>
    %298 = vector.shape_cast %297 : vector<8xi32> to vector<8x1xi32>
    %299 = vector.broadcast %298 : vector<8x1xi32> to vector<8x16xi32>
    %300 = arith.cmpi eq, %23, %299 : vector<8x16xi32>
    %301 = arith.extui %300 : vector<8x16xi1> to vector<8x16xi32>
    %302 = arith.sitofp %301 : vector<8x16xi32> to vector<8x16xf32>
    %303 = tpu.concatenate %302, %270 in 1 : vector<8x16xf32>, vector<8x32xf32> -> vector<8x48xf32>
    %cst_65 = arith.constant dense<0.000000e+00> : vector<8x128xf32>
    %304 = tpu.matmul %303, %1, %cst_65 {dimension_numbers = #tpu.dot_dimension_numbers<[1], [0], [0], [1], [0, 0, 1, 1], [], []>} : vector<8x48xf32>, vector<48x128xf32>, vector<8x128xf32> -> vector<8x128xf32>
    %305 = arith.addf %304, %11 : vector<8x128xf32>
    %306 = arith.negf %305 : vector<8x128xf32>
    %307 = math.exp %306 : vector<8x128xf32>
    %cst_66 = arith.constant 1.000000e+00 : f32
    %308 = vector.broadcast %cst_66 : f32 to vector<8x128xf32>
    %309 = arith.addf %308, %307 : vector<8x128xf32>
    %310 = arith.divf %308, %309 : vector<8x128xf32>
    %311 = math.tanh %305 : vector<8x128xf32>
    %312 = vector.extract_strided_slice %310 {offsets = [0, 0], sizes = [8, 32], strides = [1, 1]} : vector<8x128xf32> to vector<8x32xf32>
    %313 = vector.extract_strided_slice %310 {offsets = [0, 32], sizes = [8, 32], strides = [1, 1]} : vector<8x128xf32> to vector<8x32xf32>
    %314 = vector.extract_strided_slice %311 {offsets = [0, 64], sizes = [8, 32], strides = [1, 1]} : vector<8x128xf32> to vector<8x32xf32>
    %315 = vector.extract_strided_slice %310 {offsets = [0, 96], sizes = [8, 32], strides = [1, 1]} : vector<8x128xf32> to vector<8x32xf32>
    %316 = arith.mulf %313, %268 : vector<8x32xf32>
    %317 = arith.mulf %312, %314 : vector<8x32xf32>
    %318 = arith.addf %316, %317 : vector<8x32xf32>
    %319 = math.tanh %318 : vector<8x32xf32>
    %320 = arith.mulf %315, %319 : vector<8x32xf32>
    %321 = tpu.concatenate %302, %288 in 1 : vector<8x16xf32>, vector<8x32xf32> -> vector<8x48xf32>
    %cst_67 = arith.constant dense<0.000000e+00> : vector<8x128xf32>
    %322 = tpu.matmul %321, %0, %cst_67 {dimension_numbers = #tpu.dot_dimension_numbers<[1], [0], [0], [1], [0, 0, 1, 1], [], []>} : vector<8x48xf32>, vector<48x128xf32>, vector<8x128xf32> -> vector<8x128xf32>
    %323 = arith.addf %322, %8 : vector<8x128xf32>
    %324 = arith.negf %323 : vector<8x128xf32>
    %325 = math.exp %324 : vector<8x128xf32>
    %cst_68 = arith.constant 1.000000e+00 : f32
    %326 = vector.broadcast %cst_68 : f32 to vector<8x128xf32>
    %327 = arith.addf %326, %325 : vector<8x128xf32>
    %328 = arith.divf %326, %327 : vector<8x128xf32>
    %329 = math.tanh %323 : vector<8x128xf32>
    %330 = vector.extract_strided_slice %328 {offsets = [0, 0], sizes = [8, 32], strides = [1, 1]} : vector<8x128xf32> to vector<8x32xf32>
    %331 = vector.extract_strided_slice %328 {offsets = [0, 32], sizes = [8, 32], strides = [1, 1]} : vector<8x128xf32> to vector<8x32xf32>
    %332 = vector.extract_strided_slice %329 {offsets = [0, 64], sizes = [8, 32], strides = [1, 1]} : vector<8x128xf32> to vector<8x32xf32>
    %333 = vector.extract_strided_slice %328 {offsets = [0, 96], sizes = [8, 32], strides = [1, 1]} : vector<8x128xf32> to vector<8x32xf32>
    %334 = arith.mulf %331, %286 : vector<8x32xf32>
    %335 = arith.mulf %330, %332 : vector<8x32xf32>
    %336 = arith.addf %334, %335 : vector<8x32xf32>
    %337 = math.tanh %336 : vector<8x32xf32>
    %338 = arith.mulf %333, %337 : vector<8x32xf32>
    %cst_69 = arith.constant dense<0.000000e+00> : vector<8x16xf32>
    %339 = tpu.matmul %338, %2, %cst_69 {dimension_numbers = #tpu.dot_dimension_numbers<[1], [0], [0], [1], [0, 0, 1, 1], [], []>} : vector<8x32xf32>, vector<32x16xf32>, vector<8x16xf32> -> vector<8x16xf32>
    %340 = arith.addf %339, %14 : vector<8x16xf32>
    %cst_70 = arith.constant dense<0xFF800000> : vector<8xf32>
    %341 = vector.multi_reduction <maximumf>, %340, %cst_70 [1] : vector<8x16xf32> to vector<8xf32>
    %342 = vector.shape_cast %341 : vector<8xf32> to vector<8x1xf32>
    %343 = vector.broadcast %342 : vector<8x1xf32> to vector<8x16xf32>
    %344 = arith.cmpf oeq, %340, %343 : vector<8x16xf32>
    %c16_i32_71 = arith.constant 16 : i32
    %345 = vector.broadcast %c16_i32_71 : i32 to vector<8x16xi32>
    %346 = arith.select %344, %23, %345 : vector<8x16xi1>, vector<8x16xi32>
    %cst_72 = arith.constant dense<2147483647> : vector<8xi32>
    %347 = vector.multi_reduction <minsi>, %346, %cst_72 [1] : vector<8x16xi32> to vector<8xi32>
    %348 = vector.shape_cast %347 : vector<8xi32> to vector<8x1xi32>
    %349 = vector.broadcast %348 : vector<8x1xi32> to vector<8x16xi32>
    %350 = arith.cmpi eq, %23, %349 : vector<8x16xi32>
    %351 = arith.extui %350 : vector<8x16xi1> to vector<8x16xi32>
    %352 = arith.sitofp %351 : vector<8x16xi32> to vector<8x16xf32>
    %353 = tpu.concatenate %352, %320 in 1 : vector<8x16xf32>, vector<8x32xf32> -> vector<8x48xf32>
    %cst_73 = arith.constant dense<0.000000e+00> : vector<8x128xf32>
    %354 = tpu.matmul %353, %1, %cst_73 {dimension_numbers = #tpu.dot_dimension_numbers<[1], [0], [0], [1], [0, 0, 1, 1], [], []>} : vector<8x48xf32>, vector<48x128xf32>, vector<8x128xf32> -> vector<8x128xf32>
    %355 = arith.addf %354, %11 : vector<8x128xf32>
    %356 = arith.negf %355 : vector<8x128xf32>
    %357 = math.exp %356 : vector<8x128xf32>
    %cst_74 = arith.constant 1.000000e+00 : f32
    %358 = vector.broadcast %cst_74 : f32 to vector<8x128xf32>
    %359 = arith.addf %358, %357 : vector<8x128xf32>
    %360 = arith.divf %358, %359 : vector<8x128xf32>
    %361 = math.tanh %355 : vector<8x128xf32>
    %362 = vector.extract_strided_slice %360 {offsets = [0, 0], sizes = [8, 32], strides = [1, 1]} : vector<8x128xf32> to vector<8x32xf32>
    %363 = vector.extract_strided_slice %360 {offsets = [0, 32], sizes = [8, 32], strides = [1, 1]} : vector<8x128xf32> to vector<8x32xf32>
    %364 = vector.extract_strided_slice %361 {offsets = [0, 64], sizes = [8, 32], strides = [1, 1]} : vector<8x128xf32> to vector<8x32xf32>
    %365 = vector.extract_strided_slice %360 {offsets = [0, 96], sizes = [8, 32], strides = [1, 1]} : vector<8x128xf32> to vector<8x32xf32>
    %366 = arith.mulf %363, %318 : vector<8x32xf32>
    %367 = arith.mulf %362, %364 : vector<8x32xf32>
    %368 = arith.addf %366, %367 : vector<8x32xf32>
    %369 = math.tanh %368 : vector<8x32xf32>
    %370 = arith.mulf %365, %369 : vector<8x32xf32>
    %371 = tpu.concatenate %352, %338 in 1 : vector<8x16xf32>, vector<8x32xf32> -> vector<8x48xf32>
    %cst_75 = arith.constant dense<0.000000e+00> : vector<8x128xf32>
    %372 = tpu.matmul %371, %0, %cst_75 {dimension_numbers = #tpu.dot_dimension_numbers<[1], [0], [0], [1], [0, 0, 1, 1], [], []>} : vector<8x48xf32>, vector<48x128xf32>, vector<8x128xf32> -> vector<8x128xf32>
    %373 = arith.addf %372, %8 : vector<8x128xf32>
    %374 = arith.negf %373 : vector<8x128xf32>
    %375 = math.exp %374 : vector<8x128xf32>
    %cst_76 = arith.constant 1.000000e+00 : f32
    %376 = vector.broadcast %cst_76 : f32 to vector<8x128xf32>
    %377 = arith.addf %376, %375 : vector<8x128xf32>
    %378 = arith.divf %376, %377 : vector<8x128xf32>
    %379 = math.tanh %373 : vector<8x128xf32>
    %380 = vector.extract_strided_slice %378 {offsets = [0, 0], sizes = [8, 32], strides = [1, 1]} : vector<8x128xf32> to vector<8x32xf32>
    %381 = vector.extract_strided_slice %378 {offsets = [0, 32], sizes = [8, 32], strides = [1, 1]} : vector<8x128xf32> to vector<8x32xf32>
    %382 = vector.extract_strided_slice %379 {offsets = [0, 64], sizes = [8, 32], strides = [1, 1]} : vector<8x128xf32> to vector<8x32xf32>
    %383 = vector.extract_strided_slice %378 {offsets = [0, 96], sizes = [8, 32], strides = [1, 1]} : vector<8x128xf32> to vector<8x32xf32>
    %384 = arith.mulf %381, %336 : vector<8x32xf32>
    %385 = arith.mulf %380, %382 : vector<8x32xf32>
    %386 = arith.addf %384, %385 : vector<8x32xf32>
    %387 = math.tanh %386 : vector<8x32xf32>
    %388 = arith.mulf %383, %387 : vector<8x32xf32>
    %cst_77 = arith.constant dense<0.000000e+00> : vector<8x16xf32>
    %389 = tpu.matmul %388, %2, %cst_77 {dimension_numbers = #tpu.dot_dimension_numbers<[1], [0], [0], [1], [0, 0, 1, 1], [], []>} : vector<8x32xf32>, vector<32x16xf32>, vector<8x16xf32> -> vector<8x16xf32>
    %390 = arith.addf %389, %14 : vector<8x16xf32>
    %cst_78 = arith.constant dense<0xFF800000> : vector<8xf32>
    %391 = vector.multi_reduction <maximumf>, %390, %cst_78 [1] : vector<8x16xf32> to vector<8xf32>
    %392 = vector.shape_cast %391 : vector<8xf32> to vector<8x1xf32>
    %393 = vector.broadcast %392 : vector<8x1xf32> to vector<8x16xf32>
    %394 = arith.cmpf oeq, %390, %393 : vector<8x16xf32>
    %c16_i32_79 = arith.constant 16 : i32
    %395 = vector.broadcast %c16_i32_79 : i32 to vector<8x16xi32>
    %396 = arith.select %394, %23, %395 : vector<8x16xi1>, vector<8x16xi32>
    %cst_80 = arith.constant dense<2147483647> : vector<8xi32>
    %397 = vector.multi_reduction <minsi>, %396, %cst_80 [1] : vector<8x16xi32> to vector<8xi32>
    %398 = vector.shape_cast %397 : vector<8xi32> to vector<8x1xi32>
    %399 = vector.broadcast %398 : vector<8x1xi32> to vector<8x16xi32>
    %400 = arith.cmpi eq, %23, %399 : vector<8x16xi32>
    %401 = arith.extui %400 : vector<8x16xi1> to vector<8x16xi32>
    %402 = arith.sitofp %401 : vector<8x16xi32> to vector<8x16xf32>
    %403 = tpu.concatenate %402, %370 in 1 : vector<8x16xf32>, vector<8x32xf32> -> vector<8x48xf32>
    %cst_81 = arith.constant dense<0.000000e+00> : vector<8x128xf32>
    %404 = tpu.matmul %403, %1, %cst_81 {dimension_numbers = #tpu.dot_dimension_numbers<[1], [0], [0], [1], [0, 0, 1, 1], [], []>} : vector<8x48xf32>, vector<48x128xf32>, vector<8x128xf32> -> vector<8x128xf32>
    %405 = arith.addf %404, %11 : vector<8x128xf32>
    %406 = arith.negf %405 : vector<8x128xf32>
    %407 = math.exp %406 : vector<8x128xf32>
    %cst_82 = arith.constant 1.000000e+00 : f32
    %408 = vector.broadcast %cst_82 : f32 to vector<8x128xf32>
    %409 = arith.addf %408, %407 : vector<8x128xf32>
    %410 = arith.divf %408, %409 : vector<8x128xf32>
    %411 = math.tanh %405 : vector<8x128xf32>
    %412 = vector.extract_strided_slice %410 {offsets = [0, 0], sizes = [8, 32], strides = [1, 1]} : vector<8x128xf32> to vector<8x32xf32>
    %413 = vector.extract_strided_slice %410 {offsets = [0, 32], sizes = [8, 32], strides = [1, 1]} : vector<8x128xf32> to vector<8x32xf32>
    %414 = vector.extract_strided_slice %411 {offsets = [0, 64], sizes = [8, 32], strides = [1, 1]} : vector<8x128xf32> to vector<8x32xf32>
    %415 = vector.extract_strided_slice %410 {offsets = [0, 96], sizes = [8, 32], strides = [1, 1]} : vector<8x128xf32> to vector<8x32xf32>
    %416 = arith.mulf %413, %368 : vector<8x32xf32>
    %417 = arith.mulf %412, %414 : vector<8x32xf32>
    %418 = arith.addf %416, %417 : vector<8x32xf32>
    %419 = math.tanh %418 : vector<8x32xf32>
    %420 = arith.mulf %415, %419 : vector<8x32xf32>
    %c0_83 = arith.constant 0 : index
    %c0_84 = arith.constant 0 : index
    %421 = vector.load %arg10[%c0_83, %c0_84] : memref<32x16xf32, #tpu.memory_space<vmem>>, vector<32x16xf32>
    %cst_85 = arith.constant dense<0.000000e+00> : vector<8x16xf32>
    %422 = tpu.matmul %420, %421, %cst_85 {dimension_numbers = #tpu.dot_dimension_numbers<[1], [0], [0], [1], [0, 0, 1, 1], [], []>} : vector<8x32xf32>, vector<32x16xf32>, vector<8x16xf32> -> vector<8x16xf32>
    %c0_86 = arith.constant 0 : index
    %c0_87 = arith.constant 0 : index
    %423 = vector.load %arg11[%c0_86, %c0_87] : memref<1x16xf32, #tpu.memory_space<vmem>>, vector<1x16xf32>
    %424 = vector.broadcast %423 : vector<1x16xf32> to vector<8x16xf32>
    %425 = arith.addf %422, %424 : vector<8x16xf32>
    %c0_88 = arith.constant 0 : index
    %c0_89 = arith.constant 0 : index
    %426 = vector.load %arg12[%c0_88, %c0_89] : memref<8x16xf32, #tpu.memory_space<vmem>>, vector<8x16xf32>
    tpu.vector_store %arg12[%c0_88, %c0_89], %425 {strides = array<i32>} : memref<8x16xf32, #tpu.memory_space<vmem>>, vector<8x16xf32>,
    %427 = tpu.concatenate %40, %90, %140, %190, %240, %290, %340, %390 in 1 : vector<8x16xf32>, vector<8x16xf32>, vector<8x16xf32>, vector<8x16xf32>, vector<8x16xf32>, vector<8x16xf32>, vector<8x16xf32>, vector<8x16xf32> -> vector<8x128xf32>
    %c0_90 = arith.constant 0 : index
    %c0_91 = arith.constant 0 : index
    %428 = vector.load %arg14[%c0_90, %c0_91] : memref<8x128xf32, #tpu.memory_space<vmem>>, vector<8x128xf32>
    tpu.vector_store %arg14[%c0_90, %c0_91], %427 {strides = array<i32>} : memref<8x128xf32, #tpu.memory_space<vmem>>, vector<8x128xf32>,
    %429 = tpu.concatenate %52, %102, %152, %202, %252, %302, %352, %402 in 1 : vector<8x16xf32>, vector<8x16xf32>, vector<8x16xf32>, vector<8x16xf32>, vector<8x16xf32>, vector<8x16xf32>, vector<8x16xf32>, vector<8x16xf32> -> vector<8x128xf32>
    %c0_92 = arith.constant 0 : index
    %c0_93 = arith.constant 0 : index
    %430 = vector.load %arg13[%c0_92, %c0_93] : memref<8x128xf32, #tpu.memory_space<vmem>>, vector<8x128xf32>
    tpu.vector_store %arg13[%c0_92, %c0_93], %429 {strides = array<i32>} : memref<8x128xf32, #tpu.memory_space<vmem>>, vector<8x128xf32>,
    return
  }
}

</mosaic_0001>

<llo_original>
// kernel: vae_lstm_forward.1
$region0: #{vae_lstm_forward.1}
  #allocation0 [shape = 'u32[]', space=smem, size = 0x4, offset = 0x4, fixed_abs, tag = 'smem constant byte address 0x4 - core index']
  #allocation1 [shape = 'u32[144,128]{1,0:T(1,128)}', space=vmem, size = 0x12000, scoped, tag = 'internal scratch']
  %s0 = inlined_call_operand.vmem [shape: f32[8,16], index: 0, kind: input, shape index: {}]
  %s1 = inlined_call_operand.vmem [shape: f32[16,32], index: 1, kind: input, shape index: {}]
  %s2 = inlined_call_operand.vmem [shape: f32[1,32], index: 2, kind: input, shape index: {}]
  %s3 = inlined_call_operand.vmem [shape: f32[48,128], index: 3, kind: input, shape index: {}]
  %s4 = inlined_call_operand.vmem [shape: f32[1,128], index: 4, kind: input, shape index: {}]
  %s5 = inlined_call_operand.vmem [shape: f32[1,128], index: 5, kind: input, shape index: {}]
  %s6 = inlined_call_operand.vmem [shape: f32[32,16], index: 6, kind: input, shape index: {}]
  %s7 = inlined_call_operand.vmem [shape: f32[1,16], index: 7, kind: input, shape index: {}]
  %s8 = inlined_call_operand.vmem [shape: f32[48,128], index: 8, kind: input, shape index: {}]
  %s9 = inlined_call_operand.vmem [shape: f32[1,128], index: 9, kind: input, shape index: {}]
  %s10 = inlined_call_operand.vmem [shape: f32[32,16], index: 10, kind: input, shape index: {}]
  %s11 = inlined_call_operand.vmem [shape: f32[1,16], index: 11, kind: input, shape index: {}]
  %s12 = inlined_call_operand.hbm [shape: f32[8,16], index: 12, kind: output, shape index: {0}]
  %s13 = inlined_call_operand.vmem [shape: f32[8,128], index: 13, kind: output, shape index: {1}]
  %s14 = inlined_call_operand.vmem [shape: f32[8,128], index: 14, kind: output, shape index: {2}]
  %15 = xla_tuple %s12, %s13, %s14
  %s16 = sld [smem:[#allocation0]]
  $region74: #{vae_lstm_forward.1} parent=0
    _
  %s18 = ssub.s32 1, %s16
  %s19 = scalar_select 0, %s18, %s16
  $region1: #{vae_lstm_forward.1} parent=0
    #allocation2 [shape = 'u8[4096]{0}', space=vmem, size = 0x1000, scoped, tag = 'output window, operand 0, single buffered']
    #allocation3 [shape = 's32[1]{0}', space=sflag, size = 0x4, scoped, tag = 'scoped memory for vae_lstm_forward.1']
    %20 = vsyncpa [#allocation3], 0
    // Predicated region
    $region2: #{vae_lstm_forward.1} parent=1 // pred_check
      _
    $region3: #{vae_lstm_forward.1} parent=1 // pred_check_branch
      %22 = sbr.rel (0) target = $region5
    $region4: #{vae_lstm_forward.1} parent=1 // pred_region
      _
    $region5: #{vae_lstm_forward.1} parent=1 // pred_fallthru
      _
    // Predicated region
    $region6: #{vae_lstm_forward.1} parent=1 // pred_check
      _
    $region7: #{vae_lstm_forward.1} parent=1 // pred_check_branch
      %24 = sbr.rel (0) target = $region9
    $region8: #{vae_lstm_forward.1} parent=1 // pred_region
      _
    $region9: #{vae_lstm_forward.1} parent=1 // pred_fallthru
      _
    // Predicated region
    $region10: #{vae_lstm_forward.1} parent=1 // pred_check
      _
    $region11: #{vae_lstm_forward.1} parent=1 // pred_check_branch
      %26 = sbr.rel (0) target = $region13
    $region12: #{vae_lstm_forward.1} parent=1 // pred_region
      _
    $region13: #{vae_lstm_forward.1} parent=1 // pred_fallthru
      _
    // Predicated region
    $region14: #{vae_lstm_forward.1} parent=1 // pred_check
      _
    $region15: #{vae_lstm_forward.1} parent=1 // pred_check_branch
      %28 = sbr.rel (0) target = $region17
    $region16: #{vae_lstm_forward.1} parent=1 // pred_region
      _
    $region17: #{vae_lstm_forward.1} parent=1 // pred_fallthru
      _
    // Predicated region
    $region18: #{vae_lstm_forward.1} parent=1 // pred_check
      _
    $region19: #{vae_lstm_forward.1} parent=1 // pred_check_branch
      %30 = sbr.rel (0) target = $region21
    $region20: #{vae_lstm_forward.1} parent=1 // pred_region
      _
    $region21: #{vae_lstm_forward.1} parent=1 // pred_fallthru
      _
    // Predicated region
    $region22: #{vae_lstm_forward.1} parent=1 // pred_check
      _
    $region23: #{vae_lstm_forward.1} parent=1 // pred_check_branch
      %32 = sbr.rel (0) target = $region25
    $region24: #{vae_lstm_forward.1} parent=1 // pred_region
      _
    $region25: #{vae_lstm_forward.1} parent=1 // pred_fallthru
      _
    // Predicated region
    $region26: #{vae_lstm_forward.1} parent=1 // pred_check
      _
    $region27: #{vae_lstm_forward.1} parent=1 // pred_check_branch
      %34 = sbr.rel (0) target = $region29
    $region28: #{vae_lstm_forward.1} parent=1 // pred_region
      _
    $region29: #{vae_lstm_forward.1} parent=1 // pred_fallthru
      _
    // Predicated region
    $region30: #{vae_lstm_forward.1} parent=1 // pred_check
      _
    $region31: #{vae_lstm_forward.1} parent=1 // pred_check_branch
      %36 = sbr.rel (0) target = $region33
    $region32: #{vae_lstm_forward.1} parent=1 // pred_region
      _
    $region33: #{vae_lstm_forward.1} parent=1 // pred_fallthru
      _
    // Predicated region
    $region34: #{vae_lstm_forward.1} parent=1 // pred_check
      _
    $region35: #{vae_lstm_forward.1} parent=1 // pred_check_branch
      %38 = sbr.rel (0) target = $region37
    $region36: #{vae_lstm_forward.1} parent=1 // pred_region
      _
    $region37: #{vae_lstm_forward.1} parent=1 // pred_fallthru
      _
    // Predicated region
    $region38: #{vae_lstm_forward.1} parent=1 // pred_check
      _
    $region39: #{vae_lstm_forward.1} parent=1 // pred_check_branch
      %40 = sbr.rel (0) target = $region41
    $region40: #{vae_lstm_forward.1} parent=1 // pred_region
      _
    $region41: #{vae_lstm_forward.1} parent=1 // pred_fallthru
      _
    // Predicated region
    $region42: #{vae_lstm_forward.1} parent=1 // pred_check
      _
    $region43: #{vae_lstm_forward.1} parent=1 // pred_check_branch
      %42 = sbr.rel (0) target = $region45
    $region44: #{vae_lstm_forward.1} parent=1 // pred_region
      _
    $region45: #{vae_lstm_forward.1} parent=1 // pred_fallthru
      _
    // Predicated region
    $region46: #{vae_lstm_forward.1} parent=1 // pred_check
      _
    $region47: #{vae_lstm_forward.1} parent=1 // pred_check_branch
      %44 = sbr.rel (0) target = $region49
    $region48: #{vae_lstm_forward.1} parent=1 // pred_region
      _
    $region49: #{vae_lstm_forward.1} parent=1 // pred_fallthru
      _
    %v45 = vld [vmem:[%s3] sm:$0xff]
    %v46 = vld [vmem:[%s3 + $0x8] sm:$0xff]
    %v47 = vld [vmem:[%s3 + $0x10] sm:$0xff]
    %v48 = vld [vmem:[%s3 + $0x18] sm:$0xff]
    %v49 = vld [vmem:[%s3 + $0x20] sm:$0xff]
    %v50 = vld [vmem:[%s3 + $0x28] sm:$0xff]
    %v51 = vld [vmem:[%s8] sm:$0xff]
    %v52 = vld [vmem:[%s8 + $0x8] sm:$0xff]
    %v53 = vld [vmem:[%s8 + $0x10] sm:$0xff]
    %v54 = vld [vmem:[%s8 + $0x18] sm:$0xff]
    %v55 = vld [vmem:[%s8 + $0x20] sm:$0xff]
    %v56 = vld [vmem:[%s8 + $0x28] sm:$0xff]
    %v57 = vld [vmem:[%s6] sm:$0xff]
    %v58 = vld [vmem:[%s6 + $0x8] sm:$0xff]
    %v59 = vld [vmem:[%s6 + $0x10] sm:$0xff]
    %v60 = vld [vmem:[%s6 + $0x18] sm:$0xff]
    %v61 = vld [vmem:[%s4] sm:$0x1]
    %v63 = vlaneseq
    %v64 = vshrl.u32 %v63, 7
    %v65 = vsub.s32 0, %v64
    %v66 = vrot.slane %v61, %v65
    %v68 = vld [vmem:[%s5] sm:$0x1]
    %v70 = vlaneseq
    %v71 = vshrl.u32 %v70, 7
    %v72 = vsub.s32 0, %v71
    %v73 = vrot.slane %v68, %v72
    %v75 = vld [vmem:[%s9] sm:$0x1]
    %v77 = vlaneseq
    %v78 = vshrl.u32 %v77, 7
    %v79 = vsub.s32 0, %v78
    %v80 = vrot.slane %v75, %v79
    %v82 = vld [vmem:[%s7] sm:$0x1]
    %v84 = vlaneseq
    %v85 = vshrl.u32 %v84, 7
    %v86 = vsub.s32 0, %v85
    %v87 = vrot.slane %v82, %v86
    %v89 = vld [vmem:[%s0] sm:$0xff]
    %v90 = vld [vmem:[%s1] sm:$0xff]
    %v91 = vld [vmem:[%s1 + $0x8] sm:$0xff]
    %v92 = vld [vmem:[%s2] sm:$0x1]
    %v94 = vlaneseq
    %v95 = vshrl.u32 %v94, 7
    %v96 = vsub.s32 0, %v95
    %v97 = vrot.slane %v92, %v96
    %vm99 = vcmask 130048
    %v101 = vsel %vm99, %v89, 0
    %103 = vmatprep.subr.mxu0 0.0
    %104 = vmatpush1.msra.mxu0 %v90
    %105 = vmatprep.subr.mxu0 0.0
    %106 = vmatpush1.msra.mxu0 %v91
    %107 = vmatprep.subr.mxu0 0.0
    %108 = vmatpush1.msra.mxu0 0.0
    %109 = vmatprep.subr.mxu0 0.0
    %110 = vmatpush1.msra.mxu0 0.0
    %111 = vmatprep.subr.mxu0 0.0
    %112 = vmatpush1.msra.mxu0 0.0
    %113 = vmatprep.subr.mxu0 0.0
    %114 = vmatpush1.msra.mxu0 0.0
    %115 = vmatprep.subr.mxu0 0.0
    %116 = vmatpush1.msra.mxu0 0.0
    %117 = vmatprep.subr.mxu0 0.0
    %118 = vmatpush1.msra.mxu0 0.0
    %119 = vmatprep.subr.mxu0 0.0
    %120 = vmatpush1.msra.mxu0 0.0
    %121 = vmatprep.subr.mxu0 0.0
    %122 = vmatpush1.msra.mxu0 0.0
    %123 = vmatprep.subr.mxu0 0.0
    %124 = vmatpush1.msra.mxu0 0.0
    %125 = vmatprep.subr.mxu0 0.0
    %126 = vmatpush1.msra.mxu0 0.0
    %127 = vmatprep.subr.mxu0 0.0
    %128 = vmatpush1.msra.mxu0 0.0
    %129 = vmatprep.subr.mxu0 0.0
    %130 = vmatpush1.msra.mxu0 0.0
    %131 = vmatprep.subr.mxu0 0.0
    %132 = vmatpush1.msra.mxu0 0.0
    %133 = vmatprep.subr.mxu0 0.0
    %134 = vmatpush1.msra.mxu0 0.0
    %135 = vmatprep.subr.mxu0 0.0
    %136 = vmatpush1.msra.mxu0 0.0
    %137 = vmatprep.subr.mxu0 0.0
    %138 = vmatpush1.msra.mxu0 0.0
    %139 = vmatprep.subr.mxu0 0.0
    %140 = vmatpush1.msra.mxu0 0.0
    %141 = vmatprep.subr.mxu0 0.0
    %142 = vmatpush1.msra.mxu0 0.0
    %143 = vmatprep.subr.mxu0 0.0
    %144 = vmatpush1.msra.mxu0 0.0
    %145 = vmatprep.subr.mxu0 0.0
    %146 = vmatpush1.msra.mxu0 0.0
    %147 = vmatprep.subr.mxu0 0.0
    %148 = vmatpush1.msra.mxu0 0.0
    %149 = vmatprep.subr.mxu0 0.0
    %150 = vmatpush1.msra.mxu0 0.0
    %151 = vmatprep.subr.mxu0 0.0
    %152 = vmatpush1.msra.mxu0 0.0
    %153 = vmatprep.subr.mxu0 0.0
    %154 = vmatpush1.msra.mxu0 0.0
    %155 = vmatprep.subr.mxu0 0.0
    %156 = vmatpush1.msra.mxu0 0.0
    %157 = vmatprep.subr.mxu0 0.0
    %158 = vmatpush1.msra.mxu0 0.0
    %159 = vmatprep.subr.mxu0 0.0
    %160 = vmatpush1.msra.mxu0 0.0
    %161 = vmatprep.subr.mxu0 0.0
    %162 = vmatpush1.msra.mxu0 0.0
    %163 = vmatprep.subr.mxu0 0.0
    %164 = vmatpush1.msra.mxu0 0.0
    %165 = vmatprep.subr.mxu0 0.0
    %166 = vmatpush1.msra.mxu0 0.0
    %167 = vmatprep.mubr.f32.mxu0 0.0
    %168 = vmatmul.mubr.f32.gmra.mrb[0].mxu0 %v101
    %v169 = vpop.f32.mrb[0].mxu0
    %v170 = vadd.f32 %v97, %v169
    %v171 = vpop.f32.mrb[0].mxu0
    %172 = vdwg.mxu0
    %v173 = vlaneseq
    %v174 = vand.u32 %v173, 127
    %v175 = vxor.u32 %v66, 2147483648
    %v176 = vmul.f32 %v175, 1.442695
    %v177 = vpow.pop %v176
    %v178 = vadd.f32 %v177, 1.0
    %v179 = vrcp.pop %v178
    %v180 = vmul.f32 1.0, %v179
    %v181 = vtanh.pop %v66
    %183 = vrot.lane.b32.xlu0 %v170, 32
    %v184 = vpop.permute.xlu0 %183
    %v186 = vmul.f32 %v180, %v184
    %188 = vrot.lane.b32.xlu0 %v181, 64
    %v189 = vpop.permute.xlu0 %188
    %v191 = vmul.f32 %v180, %v189
    %193 = vrot.lane.b32.xlu0 %v191, 32
    %v194 = vpop.permute.xlu0 %193
    %v196 = vadd.f32 %v186, %v194
    %v197 = vtanh.pop %v196
    %199 = vrot.lane.b32.xlu0 %v197, 64
    %v200 = vpop.permute.xlu0 %199
    %v202 = vmul.f32 %v180, %v200
    %204 = vrot.lane.b32.xlu0 %v202, 32
    %v205 = vpop.permute.xlu0 %204
    %vm206 = vcmask 261120
    %v207 = vsel %vm206, %v205, 0
    %209 = vmatprep.subr.mxu0 0.0
    %210 = vmatpush1.msra.mxu0 %v57
    %211 = vmatprep.subr.mxu0 0.0
    %212 = vmatpush1.msra.mxu0 %v58
    %213 = vmatprep.subr.mxu0 0.0
    %214 = vmatpush1.msra.mxu0 %v59
    %215 = vmatprep.subr.mxu0 0.0
    %216 = vmatpush1.msra.mxu0 %v60
    %217 = vmatprep.subr.mxu0 0.0
    %218 = vmatpush1.msra.mxu0 0.0
    %219 = vmatprep.subr.mxu0 0.0
    %220 = vmatpush1.msra.mxu0 0.0
    %221 = vmatprep.subr.mxu0 0.0
    %222 = vmatpush1.msra.mxu0 0.0
    %223 = vmatprep.subr.mxu0 0.0
    %224 = vmatpush1.msra.mxu0 0.0
    %225 = vmatprep.subr.mxu0 0.0
    %226 = vmatpush1.msra.mxu0 0.0
    %227 = vmatprep.subr.mxu0 0.0
    %228 = vmatpush1.msra.mxu0 0.0
    %229 = vmatprep.subr.mxu0 0.0
    %230 = vmatpush1.msra.mxu0 0.0
    %231 = vmatprep.subr.mxu0 0.0
    %232 = vmatpush1.msra.mxu0 0.0
    %233 = vmatprep.subr.mxu0 0.0
    %234 = vmatpush1.msra.mxu0 0.0
    %235 = vmatprep.subr.mxu0 0.0
    %236 = vmatpush1.msra.mxu0 0.0
    %237 = vmatprep.subr.mxu0 0.0
    %238 = vmatpush1.msra.mxu0 0.0
    %239 = vmatprep.subr.mxu0 0.0
    %240 = vmatpush1.msra.mxu0 0.0
    %241 = vmatprep.subr.mxu0 0.0
    %242 = vmatpush1.msra.mxu0 0.0
    %243 = vmatprep.subr.mxu0 0.0
    %244 = vmatpush1.msra.mxu0 0.0
    %245 = vmatprep.subr.mxu0 0.0
    %246 = vmatpush1.msra.mxu0 0.0
    %247 = vmatprep.subr.mxu0 0.0
    %248 = vmatpush1.msra.mxu0 0.0
    %249 = vmatprep.subr.mxu0 0.0
    %250 = vmatpush1.msra.mxu0 0.0
    %251 = vmatprep.subr.mxu0 0.0
    %252 = vmatpush1.msra.mxu0 0.0
    %253 = vmatprep.subr.mxu0 0.0
    %254 = vmatpush1.msra.mxu0 0.0
    %255 = vmatprep.subr.mxu0 0.0
    %256 = vmatpush1.msra.mxu0 0.0
    %257 = vmatprep.subr.mxu0 0.0
    %258 = vmatpush1.msra.mxu0 0.0
    %259 = vmatprep.subr.mxu0 0.0
    %260 = vmatpush1.msra.mxu0 0.0
    %261 = vmatprep.subr.mxu0 0.0
    %262 = vmatpush1.msra.mxu0 0.0
    %263 = vmatprep.subr.mxu0 0.0
    %264 = vmatpush1.msra.mxu0 0.0
    %265 = vmatprep.subr.mxu0 0.0
    %266 = vmatpush1.msra.mxu0 0.0
    %267 = vmatprep.subr.mxu0 0.0
    %268 = vmatpush1.msra.mxu0 0.0
    %269 = vmatprep.subr.mxu0 0.0
    %270 = vmatpush1.msra.mxu0 0.0
    %271 = vmatprep.subr.mxu0 0.0
    %272 = vmatpush1.msra.mxu0 0.0
    %273 = vmatprep.mubr.f32.mxu0 0.0
    %274 = vmatmul.mubr.f32.gmra.mrb[0].mxu0 %v207
    %v275 = vpop.f32.mrb[0].mxu0
    %v276 = vadd.f32 %v87, %v275
    %v277 = vpop.f32.mrb[0].mxu0
    %278 = vdwg.mxu0
    %v279 = vsel %vm99, %v276, -inf
    %280 = vmax.xlane.f32.xlu0 %v279
    %v281 = vpop.xlane.xlu0 %280
    %vm282 = vcmp.eq.f32.partialorder %v276, %v281
    %v283 = vsel %vm282, %v174, 16
    %v284 = vsel %vm99, %v283, 2147483647
    %v285 = vand.u32 %v284, 65535
    %v286 = vshra.s32 %v284, 16
    %v287 = vcvt.s32.f32 %v285
    %v288 = vcvt.s32.f32 %v286
    %289 = vmin.xlane.f32.xlu0 %v288
    %v290 = vpop.xlane.xlu0 %289
    %vm291 = vcmp.eq.f32.partialorder %v288, %v290
    %v292 = vsel %vm291, %v287, inf
    %293 = vmin.xlane.f32.xlu0 %v292
    %v294 = vpop.xlane.xlu0 %293
    %v295 = vcvt.f32.s32 %v294
    %v296 = vcvt.f32.s32 %v290
    %v297 = vshll.u32 %v296, 16
    %v298 = vadd.s32 %v297, %v295
    %vm299 = vcmp.eq.s32.totalorder %v174, %v298
    %v300 = vsel %vm299, 1, 0
    %v301 = vcvt.s32.f32 %v300
    %v302 = vsel %vm99, %v301, 0.0
    %vm303 = vcmask 392192
    %v305 = vsel %vm303, %v302, 0
    %307 = vmatprep.subr.mxu0 0.0
    %308 = vmatpush1.msra.mxu0 %v51
    %309 = vmatprep.subr.mxu0 0.0
    %310 = vmatpush1.msra.mxu0 %v52
    %311 = vmatprep.subr.mxu0 0.0
    %312 = vmatpush1.msra.mxu0 %v53
    %313 = vmatprep.subr.mxu0 0.0
    %314 = vmatpush1.msra.mxu0 %v54
    %315 = vmatprep.subr.mxu0 0.0
    %316 = vmatpush1.msra.mxu0 %v55
    %317 = vmatprep.subr.mxu0 0.0
    %318 = vmatpush1.msra.mxu0 %v56
    %319 = vmatprep.subr.mxu0 0.0
    %320 = vmatpush1.msra.mxu0 0.0
    %321 = vmatprep.subr.mxu0 0.0
    %322 = vmatpush1.msra.mxu0 0.0
    %323 = vmatprep.subr.mxu0 0.0
    %324 = vmatpush1.msra.mxu0 0.0
    %325 = vmatprep.subr.mxu0 0.0
    %326 = vmatpush1.msra.mxu0 0.0
    %327 = vmatprep.subr.mxu0 0.0
    %328 = vmatpush1.msra.mxu0 0.0
    %329 = vmatprep.subr.mxu0 0.0
    %330 = vmatpush1.msra.mxu0 0.0
    %331 = vmatprep.subr.mxu0 0.0
    %332 = vmatpush1.msra.mxu0 0.0
    %333 = vmatprep.subr.mxu0 0.0
    %334 = vmatpush1.msra.mxu0 0.0
    %335 = vmatprep.subr.mxu0 0.0
    %336 = vmatpush1.msra.mxu0 0.0
    %337 = vmatprep.subr.mxu0 0.0
    %338 = vmatpush1.msra.mxu0 0.0
    %339 = vmatprep.subr.mxu0 0.0
    %340 = vmatpush1.msra.mxu0 0.0
    %341 = vmatprep.subr.mxu0 0.0
    %342 = vmatpush1.msra.mxu0 0.0
    %343 = vmatprep.subr.mxu0 0.0
    %344 = vmatpush1.msra.mxu0 0.0
    %345 = vmatprep.subr.mxu0 0.0
    %346 = vmatpush1.msra.mxu0 0.0
    %347 = vmatprep.subr.mxu0 0.0
    %348 = vmatpush1.msra.mxu0 0.0
    %349 = vmatprep.subr.mxu0 0.0
    %350 = vmatpush1.msra.mxu0 0.0
    %351 = vmatprep.subr.mxu0 0.0
    %352 = vmatpush1.msra.mxu0 0.0
    %353 = vmatprep.subr.mxu0 0.0
    %354 = vmatpush1.msra.mxu0 0.0
    %355 = vmatprep.subr.mxu0 0.0
    %356 = vmatpush1.msra.mxu0 0.0
    %357 = vmatprep.subr.mxu0 0.0
    %358 = vmatpush1.msra.mxu0 0.0
    %359 = vmatprep.subr.mxu0 0.0
    %360 = vmatpush1.msra.mxu0 0.0
    %361 = vmatprep.subr.mxu0 0.0
    %362 = vmatpush1.msra.mxu0 0.0
    %363 = vmatprep.subr.mxu0 0.0
    %364 = vmatpush1.msra.mxu0 0.0
    %365 = vmatprep.subr.mxu0 0.0
    %366 = vmatpush1.msra.mxu0 0.0
    %367 = vmatprep.subr.mxu0 0.0
    %368 = vmatpush1.msra.mxu0 0.0
    %369 = vmatprep.subr.mxu0 0.0
    %370 = vmatpush1.msra.mxu0 0.0
    %371 = vmatprep.mubr.f32.mxu0 0.0
    %372 = vmatmul.mubr.f32.gmra.mrb[0].mxu0 %v305
    %v373 = vpop.f32.mrb[0].mxu0
    %v374 = vadd.f32 %v80, %v373
    %v375 = vpop.f32.mrb[0].mxu0
    %376 = vdwg.mxu0
    %v377 = vxor.u32 %v374, 2147483648
    %v378 = vmul.f32 %v377, 1.442695
    %v379 = vpow.pop %v378
    %v380 = vadd.f32 %v379, 1.0
    %v381 = vrcp.pop %v380
    %v382 = vmul.f32 1.0, %v381
    %v383 = vtanh.pop %v374
    %v384 = vmul.f32 %v382, 0.0
    %386 = vrot.lane.b32.xlu0 %v383, 64
    %v387 = vpop.permute.xlu0 %386
    %v389 = vmul.f32 %v382, %v387
    %391 = vrot.lane.b32.xlu0 %v389, 32
    %v392 = vpop.permute.xlu0 %391
    %v394 = vadd.f32 %v384, %v392
    %v395 = vtanh.pop %v394
    %397 = vrot.lane.b32.xlu0 %v395, 64
    %v398 = vpop.permute.xlu0 %397
    %v400 = vmul.f32 %v382, %v398
    %401 = vrot.lane.b32.xlu0 %v202, 48
    %v402 = vpop.permute.xlu0 %401
    %v404 = vsel %vm99, %v301, %v402
    %v406 = vsel %vm303, %v404, 0
    %408 = vmatprep.subr.mxu0 0.0
    %409 = vmatpush1.msra.mxu0 %v45
    %410 = vmatprep.subr.mxu0 0.0
    %411 = vmatpush1.msra.mxu0 %v46
    %412 = vmatprep.subr.mxu0 0.0
    %413 = vmatpush1.msra.mxu0 %v47
    %414 = vmatprep.subr.mxu0 0.0
    %415 = vmatpush1.msra.mxu0 %v48
    %416 = vmatprep.subr.mxu0 0.0
    %417 = vmatpush1.msra.mxu0 %v49
    %418 = vmatprep.subr.mxu0 0.0
    %419 = vmatpush1.msra.mxu0 %v50
    %420 = vmatprep.subr.mxu0 0.0
    %421 = vmatpush1.msra.mxu0 0.0
    %422 = vmatprep.subr.mxu0 0.0
    %423 = vmatpush1.msra.mxu0 0.0
    %424 = vmatprep.subr.mxu0 0.0
    %425 = vmatpush1.msra.mxu0 0.0
    %426 = vmatprep.subr.mxu0 0.0
    %427 = vmatpush1.msra.mxu0 0.0
    %428 = vmatprep.subr.mxu0 0.0
    %429 = vmatpush1.msra.mxu0 0.0
    %430 = vmatprep.subr.mxu0 0.0
    %431 = vmatpush1.msra.mxu0 0.0
    %432 = vmatprep.subr.mxu0 0.0
    %433 = vmatpush1.msra.mxu0 0.0
    %434 = vmatprep.subr.mxu0 0.0
    %435 = vmatpush1.msra.mxu0 0.0
    %436 = vmatprep.subr.mxu0 0.0
    %437 = vmatpush1.msra.mxu0 0.0
    %438 = vmatprep.subr.mxu0 0.0
    %439 = vmatpush1.msra.mxu0 0.0
    %440 = vmatprep.subr.mxu0 0.0
    %441 = vmatpush1.msra.mxu0 0.0
    %442 = vmatprep.subr.mxu0 0.0
    %443 = vmatpush1.msra.mxu0 0.0
    %444 = vmatprep.subr.mxu0 0.0
    %445 = vmatpush1.msra.mxu0 0.0
    %446 = vmatprep.subr.mxu0 0.0
    %447 = vmatpush1.msra.mxu0 0.0
    %448 = vmatprep.subr.mxu0 0.0
    %449 = vmatpush1.msra.mxu0 0.0
    %450 = vmatprep.subr.mxu0 0.0
    %451 = vmatpush1.msra.mxu0 0.0
    %452 = vmatprep.subr.mxu0 0.0
    %453 = vmatpush1.msra.mxu0 0.0
    %454 = vmatprep.subr.mxu0 0.0
    %455 = vmatpush1.msra.mxu0 0.0
    %456 = vmatprep.subr.mxu0 0.0
    %457 = vmatpush1.msra.mxu0 0.0
    %458 = vmatprep.subr.mxu0 0.0
    %459 = vmatpush1.msra.mxu0 0.0
    %460 = vmatprep.subr.mxu0 0.0
    %461 = vmatpush1.msra.mxu0 0.0
    %462 = vmatprep.subr.mxu0 0.0
    %463 = vmatpush1.msra.mxu0 0.0
    %464 = vmatprep.subr.mxu0 0.0
    %465 = vmatpush1.msra.mxu0 0.0
    %466 = vmatprep.subr.mxu0 0.0
    %467 = vmatpush1.msra.mxu0 0.0
    %468 = vmatprep.subr.mxu0 0.0
    %469 = vmatpush1.msra.mxu0 0.0
    %470 = vmatprep.subr.mxu0 0.0
    %471 = vmatpush1.msra.mxu0 0.0
    %472 = vmatprep.mubr.f32.mxu0 0.0
    %473 = vmatmul.mubr.f32.gmra.mrb[0].mxu0 %v406
    %v474 = vpop.f32.mrb[0].mxu0
    %v475 = vadd.f32 %v73, %v474
    %v476 = vpop.f32.mrb[0].mxu0
    %477 = vdwg.mxu0
    %v478 = vxor.u32 %v475, 2147483648
    %v479 = vmul.f32 %v478, 1.442695
    %v480 = vpow.pop %v479
    %v481 = vadd.f32 %v480, 1.0
    %v482 = vrcp.pop %v481
    %v483 = vmul.f32 1.0, %v482
    %v484 = vtanh.pop %v475
    %v485 = vmul.f32 %v483, %v196
    %487 = vrot.lane.b32.xlu0 %v484, 64
    %v488 = vpop.permute.xlu0 %487
    %v490 = vmul.f32 %v483, %v488
    %492 = vrot.lane.b32.xlu0 %v490, 32
    %v493 = vpop.permute.xlu0 %492
    %v495 = vadd.f32 %v485, %v493
    %v496 = vtanh.pop %v495
    %498 = vrot.lane.b32.xlu0 %v496, 64
    %v499 = vpop.permute.xlu0 %498
    %v501 = vmul.f32 %v483, %v499
    %503 = vrot.lane.b32.xlu0 %v501, 32
    %v504 = vpop.permute.xlu0 %503
    %v505 = vsel %vm206, %v504, 0
    %507 = vmatprep.subr.mxu0 0.0
    %508 = vmatpush1.msra.mxu0 %v57
    %509 = vmatprep.subr.mxu0 0.0
    %510 = vmatpush1.msra.mxu0 %v58
    %511 = vmatprep.subr.mxu0 0.0
    %512 = vmatpush1.msra.mxu0 %v59
    %513 = vmatprep.subr.mxu0 0.0
    %514 = vmatpush1.msra.mxu0 %v60
    %515 = vmatprep.subr.mxu0 0.0
    %516 = vmatpush1.msra.mxu0 0.0
    %517 = vmatprep.subr.mxu0 0.0
    %518 = vmatpush1.msra.mxu0 0.0
    %519 = vmatprep.subr.mxu0 0.0
    %520 = vmatpush1.msra.mxu0 0.0
    %521 = vmatprep.subr.mxu0 0.0
    %522 = vmatpush1.msra.mxu0 0.0
    %523 = vmatprep.subr.mxu0 0.0
    %524 = vmatpush1.msra.mxu0 0.0
    %525 = vmatprep.subr.mxu0 0.0
    %526 = vmatpush1.msra.mxu0 0.0
    %527 = vmatprep.subr.mxu0 0.0
    %528 = vmatpush1.msra.mxu0 0.0
    %529 = vmatprep.subr.mxu0 0.0
    %530 = vmatpush1.msra.mxu0 0.0
    %531 = vmatprep.subr.mxu0 0.0
    %532 = vmatpush1.msra.mxu0 0.0
    %533 = vmatprep.subr.mxu0 0.0
    %534 = vmatpush1.msra.mxu0 0.0
    %535 = vmatprep.subr.mxu0 0.0
    %536 = vmatpush1.msra.mxu0 0.0
    %537 = vmatprep.subr.mxu0 0.0
    %538 = vmatpush1.msra.mxu0 0.0
    %539 = vmatprep.subr.mxu0 0.0
    %540 = vmatpush1.msra.mxu0 0.0
    %541 = vmatprep.subr.mxu0 0.0
    %542 = vmatpush1.msra.mxu0 0.0
    %543 = vmatprep.subr.mxu0 0.0
    %544 = vmatpush1.msra.mxu0 0.0
    %545 = vmatprep.subr.mxu0 0.0
    %546 = vmatpush1.msra.mxu0 0.0
    %547 = vmatprep.subr.mxu0 0.0
    %548 = vmatpush1.msra.mxu0 0.0
    %549 = vmatprep.subr.mxu0 0.0
    %550 = vmatpush1.msra.mxu0 0.0
    %551 = vmatprep.subr.mxu0 0.0
    %552 = vmatpush1.msra.mxu0 0.0
    %553 = vmatprep.subr.mxu0 0.0
    %554 = vmatpush1.msra.mxu0 0.0
    %555 = vmatprep.subr.mxu0 0.0
    %556 = vmatpush1.msra.mxu0 0.0
    %557 = vmatprep.subr.mxu0 0.0
    %558 = vmatpush1.msra.mxu0 0.0
    %559 = vmatprep.subr.mxu0 0.0
    %560 = vmatpush1.msra.mxu0 0.0
    %561 = vmatprep.subr.mxu0 0.0
    %562 = vmatpush1.msra.mxu0 0.0
    %563 = vmatprep.subr.mxu0 0.0
    %564 = vmatpush1.msra.mxu0 0.0
    %565 = vmatprep.subr.mxu0 0.0
    %566 = vmatpush1.msra.mxu0 0.0
    %567 = vmatprep.subr.mxu0 0.0
    %568 = vmatpush1.msra.mxu0 0.0
    %569 = vmatprep.subr.mxu0 0.0
    %570 = vmatpush1.msra.mxu0 0.0
    %571 = vmatprep.mubr.f32.mxu0 0.0
    %572 = vmatmul.mubr.f32.gmra.mrb[0].mxu0 %v505
    %v573 = vpop.f32.mrb[0].mxu0
    %v574 = vadd.f32 %v87, %v573
    %v575 = vpop.f32.mrb[0].mxu0
    %576 = vdwg.mxu0
    %v577 = vsel %vm99, %v574, -inf
    %578 = vmax.xlane.f32.xlu0 %v577
    %v579 = vpop.xlane.xlu0 %578
    %vm580 = vcmp.eq.f32.partialorder %v574, %v579
    %v581 = vsel %vm580, %v174, 16
    %v582 = vsel %vm99, %v581, 2147483647
    %v583 = vand.u32 %v582, 65535
    %v584 = vshra.s32 %v582, 16
    %v585 = vcvt.s32.f32 %v583
    %v586 = vcvt.s32.f32 %v584
    %587 = vmin.xlane.f32.xlu0 %v586
    %v588 = vpop.xlane.xlu0 %587
    %vm589 = vcmp.eq.f32.partialorder %v586, %v588
    %v590 = vsel %vm589, %v585, inf
    %591 = vmin.xlane.f32.xlu0 %v590
    %v592 = vpop.xlane.xlu0 %591
    %v593 = vcvt.f32.s32 %v592
    %v594 = vcvt.f32.s32 %v588
    %v595 = vshll.u32 %v594, 16
    %v596 = vadd.s32 %v595, %v593
    %vm597 = vcmp.eq.s32.totalorder %v174, %v596
    %v598 = vsel %vm597, 1, 0
    %v599 = vcvt.s32.f32 %v598
    %601 = vrot.lane.b32.xlu0 %v400, 48
    %v602 = vpop.permute.xlu0 %601
    %v604 = vsel %vm99, %v599, %v602
    %v606 = vsel %vm303, %v604, 0
    %608 = vmatprep.subr.mxu0 0.0
    %609 = vmatpush1.msra.mxu0 %v51
    %610 = vmatprep.subr.mxu0 0.0
    %611 = vmatpush1.msra.mxu0 %v52
    %612 = vmatprep.subr.mxu0 0.0
    %613 = vmatpush1.msra.mxu0 %v53
    %614 = vmatprep.subr.mxu0 0.0
    %615 = vmatpush1.msra.mxu0 %v54
    %616 = vmatprep.subr.mxu0 0.0
    %617 = vmatpush1.msra.mxu0 %v55
    %618 = vmatprep.subr.mxu0 0.0
    %619 = vmatpush1.msra.mxu0 %v56
    %620 = vmatprep.subr.mxu0 0.0
    %621 = vmatpush1.msra.mxu0 0.0
    %622 = vmatprep.subr.mxu0 0.0
    %623 = vmatpush1.msra.mxu0 0.0
    %624 = vmatprep.subr.mxu0 0.0
    %625 = vmatpush1.msra.mxu0 0.0
    %626 = vmatprep.subr.mxu0 0.0
    %627 = vmatpush1.msra.mxu0 0.0
    %628 = vmatprep.subr.mxu0 0.0
    %629 = vmatpush1.msra.mxu0 0.0
    %630 = vmatprep.subr.mxu0 0.0
    %631 = vmatpush1.msra.mxu0 0.0
    %632 = vmatprep.subr.mxu0 0.0
    %633 = vmatpush1.msra.mxu0 0.0
    %634 = vmatprep.subr.mxu0 0.0
    %635 = vmatpush1.msra.mxu0 0.0
    %636 = vmatprep.subr.mxu0 0.0
    %637 = vmatpush1.msra.mxu0 0.0
    %638 = vmatprep.subr.mxu0 0.0
    %639 = vmatpush1.msra.mxu0 0.0
    %640 = vmatprep.subr.mxu0 0.0
    %641 = vmatpush1.msra.mxu0 0.0
    %642 = vmatprep.subr.mxu0 0.0
    %643 = vmatpush1.msra.mxu0 0.0
    %644 = vmatprep.subr.mxu0 0.0
    %645 = vmatpush1.msra.mxu0 0.0
    %646 = vmatprep.subr.mxu0 0.0
    %647 = vmatpush1.msra.mxu0 0.0
    %648 = vmatprep.subr.mxu0 0.0
    %649 = vmatpush1.msra.mxu0 0.0
    %650 = vmatprep.subr.mxu0 0.0
    %651 = vmatpush1.msra.mxu0 0.0
    %652 = vmatprep.subr.mxu0 0.0
    %653 = vmatpush1.msra.mxu0 0.0
    %654 = vmatprep.subr.mxu0 0.0
    %655 = vmatpush1.msra.mxu0 0.0
    %656 = vmatprep.subr.mxu0 0.0
    %657 = vmatpush1.msra.mxu0 0.0
    %658 = vmatprep.subr.mxu0 0.0
    %659 = vmatpush1.msra.mxu0 0.0
    %660 = vmatprep.subr.mxu0 0.0
    %661 = vmatpush1.msra.mxu0 0.0
    %662 = vmatprep.subr.mxu0 0.0
    %663 = vmatpush1.msra.mxu0 0.0
    %664 = vmatprep.subr.mxu0 0.0
    %665 = vmatpush1.msra.mxu0 0.0
    %666 = vmatprep.subr.mxu0 0.0
    %667 = vmatpush1.msra.mxu0 0.0
    %668 = vmatprep.subr.mxu0 0.0
    %669 = vmatpush1.msra.mxu0 0.0
    %670 = vmatprep.subr.mxu0 0.0
    %671 = vmatpush1.msra.mxu0 0.0
    %672 = vmatprep.mubr.f32.mxu0 0.0
    %673 = vmatmul.mubr.f32.gmra.mrb[0].mxu0 %v606
    %v674 = vpop.f32.mrb[0].mxu0
    %v675 = vadd.f32 %v80, %v674
    %v676 = vpop.f32.mrb[0].mxu0
    %677 = vdwg.mxu0
    %v678 = vxor.u32 %v675, 2147483648
    %v679 = vmul.f32 %v678, 1.442695
    %v680 = vpow.pop %v679
    %v681 = vadd.f32 %v680, 1.0
    %v682 = vrcp.pop %v681
    %v683 = vmul.f32 1.0, %v682
    %v684 = vtanh.pop %v675
    %v685 = vmul.f32 %v683, %v394
    %687 = vrot.lane.b32.xlu0 %v684, 64
    %v688 = vpop.permute.xlu0 %687
    %v690 = vmul.f32 %v683, %v688
    %692 = vrot.lane.b32.xlu0 %v690, 32
    %v693 = vpop.permute.xlu0 %692
    %v695 = vadd.f32 %v685, %v693
    %v696 = vtanh.pop %v695
    %698 = vrot.lane.b32.xlu0 %v696, 64
    %v699 = vpop.permute.xlu0 %698
    %v701 = vmul.f32 %v683, %v699
    %702 = vrot.lane.b32.xlu0 %v501, 48
    %v703 = vpop.permute.xlu0 %702
    %v705 = vsel %vm99, %v599, %v703
    %v707 = vsel %vm303, %v705, 0
    %709 = vmatprep.subr.mxu0 0.0
    %710 = vmatpush1.msra.mxu0 %v45
    %711 = vmatprep.subr.mxu0 0.0
    %712 = vmatpush1.msra.mxu0 %v46
    %713 = vmatprep.subr.mxu0 0.0
    %714 = vmatpush1.msra.mxu0 %v47
    %715 = vmatprep.subr.mxu0 0.0
    %716 = vmatpush1.msra.mxu0 %v48
    %717 = vmatprep.subr.mxu0 0.0
    %718 = vmatpush1.msra.mxu0 %v49
    %719 = vmatprep.subr.mxu0 0.0
    %720 = vmatpush1.msra.mxu0 %v50
    %721 = vmatprep.subr.mxu0 0.0
    %722 = vmatpush1.msra.mxu0 0.0
    %723 = vmatprep.subr.mxu0 0.0
    %724 = vmatpush1.msra.mxu0 0.0
    %725 = vmatprep.subr.mxu0 0.0
    %726 = vmatpush1.msra.mxu0 0.0
    %727 = vmatprep.subr.mxu0 0.0
    %728 = vmatpush1.msra.mxu0 0.0
    %729 = vmatprep.subr.mxu0 0.0
    %730 = vmatpush1.msra.mxu0 0.0
    %731 = vmatprep.subr.mxu0 0.0
    %732 = vmatpush1.msra.mxu0 0.0
    %733 = vmatprep.subr.mxu0 0.0
    %734 = vmatpush1.msra.mxu0 0.0
    %735 = vmatprep.subr.mxu0 0.0
    %736 = vmatpush1.msra.mxu0 0.0
    %737 = vmatprep.subr.mxu0 0.0
    %738 = vmatpush1.msra.mxu0 0.0
    %739 = vmatprep.subr.mxu0 0.0
    %740 = vmatpush1.msra.mxu0 0.0
    %741 = vmatprep.subr.mxu0 0.0
    %742 = vmatpush1.msra.mxu0 0.0
    %743 = vmatprep.subr.mxu0 0.0
    %744 = vmatpush1.msra.mxu0 0.0
    %745 = vmatprep.subr.mxu0 0.0
    %746 = vmatpush1.msra.mxu0 0.0
    %747 = vmatprep.subr.mxu0 0.0
    %748 = vmatpush1.msra.mxu0 0.0
    %749 = vmatprep.subr.mxu0 0.0
    %750 = vmatpush1.msra.mxu0 0.0
    %751 = vmatprep.subr.mxu0 0.0
    %752 = vmatpush1.msra.mxu0 0.0
    %753 = vmatprep.subr.mxu0 0.0
    %754 = vmatpush1.msra.mxu0 0.0
    %755 = vmatprep.subr.mxu0 0.0
    %756 = vmatpush1.msra.mxu0 0.0
    %757 = vmatprep.subr.mxu0 0.0
    %758 = vmatpush1.msra.mxu0 0.0
    %759 = vmatprep.subr.mxu0 0.0
    %760 = vmatpush1.msra.mxu0 0.0
    %761 = vmatprep.subr.mxu0 0.0
    %762 = vmatpush1.msra.mxu0 0.0
    %763 = vmatprep.subr.mxu0 0.0
    %764 = vmatpush1.msra.mxu0 0.0
    %765 = vmatprep.subr.mxu0 0.0
    %766 = vmatpush1.msra.mxu0 0.0
    %767 = vmatprep.subr.mxu0 0.0
    %768 = vmatpush1.msra.mxu0 0.0
    %769 = vmatprep.subr.mxu0 0.0
    %770 = vmatpush1.msra.mxu0 0.0
    %771 = vmatprep.subr.mxu0 0.0
    %772 = vmatpush1.msra.mxu0 0.0
    %773 = vmatprep.mubr.f32.mxu0 0.0
    %774 = vmatmul.mubr.f32.gmra.mrb[0].mxu0 %v707
    %v775 = vpop.f32.mrb[0].mxu0
    %v776 = vadd.f32 %v73, %v775
    %v777 = vpop.f32.mrb[0].mxu0
    %778 = vdwg.mxu0
    %v779 = vxor.u32 %v776, 2147483648
    %v780 = vmul.f32 %v779, 1.442695
    %v781 = vpow.pop %v780
    %v782 = vadd.f32 %v781, 1.0
    %v783 = vrcp.pop %v782
    %v784 = vmul.f32 1.0, %v783
    %v785 = vtanh.pop %v776
    %v786 = vmul.f32 %v784, %v495
    %788 = vrot.lane.b32.xlu0 %v785, 64
    %v789 = vpop.permute.xlu0 %788
    %v791 = vmul.f32 %v784, %v789
    %793 = vrot.lane.b32.xlu0 %v791, 32
    %v794 = vpop.permute.xlu0 %793
    %v796 = vadd.f32 %v786, %v794
    %v797 = vtanh.pop %v796
    %799 = vrot.lane.b32.xlu0 %v797, 64
    %v800 = vpop.permute.xlu0 %799
    %v802 = vmul.f32 %v784, %v800
    %804 = vrot.lane.b32.xlu0 %v802, 32
    %v805 = vpop.permute.xlu0 %804
    %v806 = vsel %vm206, %v805, 0
    %808 = vmatprep.subr.mxu0 0.0
    %809 = vmatpush1.msra.mxu0 %v57
    %810 = vmatprep.subr.mxu0 0.0
    %811 = vmatpush1.msra.mxu0 %v58
    %812 = vmatprep.subr.mxu0 0.0
    %813 = vmatpush1.msra.mxu0 %v59
    %814 = vmatprep.subr.mxu0 0.0
    %815 = vmatpush1.msra.mxu0 %v60
    %816 = vmatprep.subr.mxu0 0.0
    %817 = vmatpush1.msra.mxu0 0.0
    %818 = vmatprep.subr.mxu0 0.0
    %819 = vmatpush1.msra.mxu0 0.0
    %820 = vmatprep.subr.mxu0 0.0
    %821 = vmatpush1.msra.mxu0 0.0
    %822 = vmatprep.subr.mxu0 0.0
    %823 = vmatpush1.msra.mxu0 0.0
    %824 = vmatprep.subr.mxu0 0.0
    %825 = vmatpush1.msra.mxu0 0.0
    %826 = vmatprep.subr.mxu0 0.0
    %827 = vmatpush1.msra.mxu0 0.0
    %828 = vmatprep.subr.mxu0 0.0
    %829 = vmatpush1.msra.mxu0 0.0
    %830 = vmatprep.subr.mxu0 0.0
    %831 = vmatpush1.msra.mxu0 0.0
    %832 = vmatprep.subr.mxu0 0.0
    %833 = vmatpush1.msra.mxu0 0.0
    %834 = vmatprep.subr.mxu0 0.0
    %835 = vmatpush1.msra.mxu0 0.0
    %836 = vmatprep.subr.mxu0 0.0
    %837 = vmatpush1.msra.mxu0 0.0
    %838 = vmatprep.subr.mxu0 0.0
    %839 = vmatpush1.msra.mxu0 0.0
    %840 = vmatprep.subr.mxu0 0.0
    %841 = vmatpush1.msra.mxu0 0.0
    %842 = vmatprep.subr.mxu0 0.0
    %843 = vmatpush1.msra.mxu0 0.0
    %844 = vmatprep.subr.mxu0 0.0
    %845 = vmatpush1.msra.mxu0 0.0
    %846 = vmatprep.subr.mxu0 0.0
    %847 = vmatpush1.msra.mxu0 0.0
    %848 = vmatprep.subr.mxu0 0.0
    %849 = vmatpush1.msra.mxu0 0.0
    %850 = vmatprep.subr.mxu0 0.0
    %851 = vmatpush1.msra.mxu0 0.0
    %852 = vmatprep.subr.mxu0 0.0
    %853 = vmatpush1.msra.mxu0 0.0
    %854 = vmatprep.subr.mxu0 0.0
    %855 = vmatpush1.msra.mxu0 0.0
    %856 = vmatprep.subr.mxu0 0.0
    %857 = vmatpush1.msra.mxu0 0.0
    %858 = vmatprep.subr.mxu0 0.0
    %859 = vmatpush1.msra.mxu0 0.0
    %860 = vmatprep.subr.mxu0 0.0
    %861 = vmatpush1.msra.mxu0 0.0
    %862 = vmatprep.subr.mxu0 0.0
    %863 = vmatpush1.msra.mxu0 0.0
    %864 = vmatprep.subr.mxu0 0.0
    %865 = vmatpush1.msra.mxu0 0.0
    %866 = vmatprep.subr.mxu0 0.0
    %867 = vmatpush1.msra.mxu0 0.0
    %868 = vmatprep.subr.mxu0 0.0
    %869 = vmatpush1.msra.mxu0 0.0
    %870 = vmatprep.subr.mxu0 0.0
    %871 = vmatpush1.msra.mxu0 0.0
    %872 = vmatprep.mubr.f32.mxu0 0.0
    %873 = vmatmul.mubr.f32.gmra.mrb[0].mxu0 %v806
    %v874 = vpop.f32.mrb[0].mxu0
    %v875 = vadd.f32 %v87, %v874
    %v876 = vpop.f32.mrb[0].mxu0
    %877 = vdwg.mxu0
    %v878 = vsel %vm99, %v875, -inf
    %879 = vmax.xlane.f32.xlu0 %v878
    %v880 = vpop.xlane.xlu0 %879
    %vm881 = vcmp.eq.f32.partialorder %v875, %v880
    %v882 = vsel %vm881, %v174, 16
    %v883 = vsel %vm99, %v882, 2147483647
    %v884 = vand.u32 %v883, 65535
    %v885 = vshra.s32 %v883, 16
    %v886 = vcvt.s32.f32 %v884
    %v887 = vcvt.s32.f32 %v885
    %888 = vmin.xlane.f32.xlu0 %v887
    %v889 = vpop.xlane.xlu0 %888
    %vm890 = vcmp.eq.f32.partialorder %v887, %v889
    %v891 = vsel %vm890, %v886, inf
    %892 = vmin.xlane.f32.xlu0 %v891
    %v893 = vpop.xlane.xlu0 %892
    %v894 = vcvt.f32.s32 %v893
    %v895 = vcvt.f32.s32 %v889
    %v896 = vshll.u32 %v895, 16
    %v897 = vadd.s32 %v896, %v894
    %vm898 = vcmp.eq.s32.totalorder %v174, %v897
    %v899 = vsel %vm898, 1, 0
    %v900 = vcvt.s32.f32 %v899
    %902 = vrot.lane.b32.xlu0 %v701, 48
    %v903 = vpop.permute.xlu0 %902
    %v905 = vsel %vm99, %v900, %v903
    %v907 = vsel %vm303, %v905, 0
    %909 = vmatprep.subr.mxu0 0.0
    %910 = vmatpush1.msra.mxu0 %v51
    %911 = vmatprep.subr.mxu0 0.0
    %912 = vmatpush1.msra.mxu0 %v52
    %913 = vmatprep.subr.mxu0 0.0
    %914 = vmatpush1.msra.mxu0 %v53
    %915 = vmatprep.subr.mxu0 0.0
    %916 = vmatpush1.msra.mxu0 %v54
    %917 = vmatprep.subr.mxu0 0.0
    %918 = vmatpush1.msra.mxu0 %v55
    %919 = vmatprep.subr.mxu0 0.0
    %920 = vmatpush1.msra.mxu0 %v56
    %921 = vmatprep.subr.mxu0 0.0
    %922 = vmatpush1.msra.mxu0 0.0
    %923 = vmatprep.subr.mxu0 0.0
    %924 = vmatpush1.msra.mxu0 0.0
    %925 = vmatprep.subr.mxu0 0.0
    %926 = vmatpush1.msra.mxu0 0.0
    %927 = vmatprep.subr.mxu0 0.0
    %928 = vmatpush1.msra.mxu0 0.0
    %929 = vmatprep.subr.mxu0 0.0
    %930 = vmatpush1.msra.mxu0 0.0
    %931 = vmatprep.subr.mxu0 0.0
    %932 = vmatpush1.msra.mxu0 0.0
    %933 = vmatprep.subr.mxu0 0.0
    %934 = vmatpush1.msra.mxu0 0.0
    %935 = vmatprep.subr.mxu0 0.0
    %936 = vmatpush1.msra.mxu0 0.0
    %937 = vmatprep.subr.mxu0 0.0
    %938 = vmatpush1.msra.mxu0 0.0
    %939 = vmatprep.subr.mxu0 0.0
    %940 = vmatpush1.msra.mxu0 0.0
    %941 = vmatprep.subr.mxu0 0.0
    %942 = vmatpush1.msra.mxu0 0.0
    %943 = vmatprep.subr.mxu0 0.0
    %944 = vmatpush1.msra.mxu0 0.0
    %945 = vmatprep.subr.mxu0 0.0
    %946 = vmatpush1.msra.mxu0 0.0
    %947 = vmatprep.subr.mxu0 0.0
    %948 = vmatpush1.msra.mxu0 0.0
    %949 = vmatprep.subr.mxu0 0.0
    %950 = vmatpush1.msra.mxu0 0.0
    %951 = vmatprep.subr.mxu0 0.0
    %952 = vmatpush1.msra.mxu0 0.0
    %953 = vmatprep.subr.mxu0 0.0
    %954 = vmatpush1.msra.mxu0 0.0
    %955 = vmatprep.subr.mxu0 0.0
    %956 = vmatpush1.msra.mxu0 0.0
    %957 = vmatprep.subr.mxu0 0.0
    %958 = vmatpush1.msra.mxu0 0.0
    %959 = vmatprep.subr.mxu0 0.0
    %960 = vmatpush1.msra.mxu0 0.0
    %961 = vmatprep.subr.mxu0 0.0
    %962 = vmatpush1.msra.mxu0 0.0
    %963 = vmatprep.subr.mxu0 0.0
    %964 = vmatpush1.msra.mxu0 0.0
    %965 = vmatprep.subr.mxu0 0.0
    %966 = vmatpush1.msra.mxu0 0.0
    %967 = vmatprep.subr.mxu0 0.0
    %968 = vmatpush1.msra.mxu0 0.0
    %969 = vmatprep.subr.mxu0 0.0
    %970 = vmatpush1.msra.mxu0 0.0
    %971 = vmatprep.subr.mxu0 0.0
    %972 = vmatpush1.msra.mxu0 0.0
    %973 = vmatprep.mubr.f32.mxu0 0.0
    %974 = vmatmul.mubr.f32.gmra.mrb[0].mxu0 %v907
    %v975 = vpop.f32.mrb[0].mxu0
    %v976 = vadd.f32 %v80, %v975
    %v977 = vpop.f32.mrb[0].mxu0
    %978 = vdwg.mxu0
    %v979 = vxor.u32 %v976, 2147483648
    %v980 = vmul.f32 %v979, 1.442695
    %v981 = vpow.pop %v980
    %v982 = vadd.f32 %v981, 1.0
    %v983 = vrcp.pop %v982
    %v984 = vmul.f32 1.0, %v983
    %v985 = vtanh.pop %v976
    %v986 = vmul.f32 %v984, %v695
    %988 = vrot.lane.b32.xlu0 %v985, 64
    %v989 = vpop.permute.xlu0 %988
    %v991 = vmul.f32 %v984, %v989
    %993 = vrot.lane.b32.xlu0 %v991, 32
    %v994 = vpop.permute.xlu0 %993
    %v996 = vadd.f32 %v986, %v994
    %v997 = vtanh.pop %v996
    %999 = vrot.lane.b32.xlu0 %v997, 64
    %v1000 = vpop.permute.xlu0 %999
    %v1002 = vmul.f32 %v984, %v1000
    %1003 = vrot.lane.b32.xlu0 %v802, 48
    %v1004 = vpop.permute.xlu0 %1003
    %v1006 = vsel %vm99, %v900, %v1004
    %v1008 = vsel %vm303, %v1006, 0
    %1010 = vmatprep.subr.mxu0 0.0
    %1011 = vmatpush1.msra.mxu0 %v45
    %1012 = vmatprep.subr.mxu0 0.0
    %1013 = vmatpush1.msra.mxu0 %v46
    %1014 = vmatprep.subr.mxu0 0.0
    %1015 = vmatpush1.msra.mxu0 %v47
    %1016 = vmatprep.subr.mxu0 0.0
    %1017 = vmatpush1.msra.mxu0 %v48
    %1018 = vmatprep.subr.mxu0 0.0
    %1019 = vmatpush1.msra.mxu0 %v49
    %1020 = vmatprep.subr.mxu0 0.0
    %1021 = vmatpush1.msra.mxu0 %v50
    %1022 = vmatprep.subr.mxu0 0.0
    %1023 = vmatpush1.msra.mxu0 0.0
    %1024 = vmatprep.subr.mxu0 0.0
    %1025 = vmatpush1.msra.mxu0 0.0
    %1026 = vmatprep.subr.mxu0 0.0
    %1027 = vmatpush1.msra.mxu0 0.0
    %1028 = vmatprep.subr.mxu0 0.0
    %1029 = vmatpush1.msra.mxu0 0.0
    %1030 = vmatprep.subr.mxu0 0.0
    %1031 = vmatpush1.msra.mxu0 0.0
    %1032 = vmatprep.subr.mxu0 0.0
    %1033 = vmatpush1.msra.mxu0 0.0
    %1034 = vmatprep.subr.mxu0 0.0
    %1035 = vmatpush1.msra.mxu0 0.0
    %1036 = vmatprep.subr.mxu0 0.0
    %1037 = vmatpush1.msra.mxu0 0.0
    %1038 = vmatprep.subr.mxu0 0.0
    %1039 = vmatpush1.msra.mxu0 0.0
    %1040 = vmatprep.subr.mxu0 0.0
    %1041 = vmatpush1.msra.mxu0 0.0
    %1042 = vmatprep.subr.mxu0 0.0
    %1043 = vmatpush1.msra.mxu0 0.0
    %1044 = vmatprep.subr.mxu0 0.0
    %1045 = vmatpush1.msra.mxu0 0.0
    %1046 = vmatprep.subr.mxu0 0.0
    %1047 = vmatpush1.msra.mxu0 0.0
    %1048 = vmatprep.subr.mxu0 0.0
    %1049 = vmatpush1.msra.mxu0 0.0
    %1050 = vmatprep.subr.mxu0 0.0
    %1051 = vmatpush1.msra.mxu0 0.0
    %1052 = vmatprep.subr.mxu0 0.0
    %1053 = vmatpush1.msra.mxu0 0.0
    %1054 = vmatprep.subr.mxu0 0.0
    %1055 = vmatpush1.msra.mxu0 0.0
    %1056 = vmatprep.subr.mxu0 0.0
    %1057 = vmatpush1.msra.mxu0 0.0
    %1058 = vmatprep.subr.mxu0 0.0
    %1059 = vmatpush1.msra.mxu0 0.0
    %1060 = vmatprep.subr.mxu0 0.0
    %1061 = vmatpush1.msra.mxu0 0.0
    %1062 = vmatprep.subr.mxu0 0.0
    %1063 = vmatpush1.msra.mxu0 0.0
    %1064 = vmatprep.subr.mxu0 0.0
    %1065 = vmatpush1.msra.mxu0 0.0
    %1066 = vmatprep.subr.mxu0 0.0
    %1067 = vmatpush1.msra.mxu0 0.0
    %1068 = vmatprep.subr.mxu0 0.0
    %1069 = vmatpush1.msra.mxu0 0.0
    %1070 = vmatprep.subr.mxu0 0.0
    %1071 = vmatpush1.msra.mxu0 0.0
    %1072 = vmatprep.subr.mxu0 0.0
    %1073 = vmatpush1.msra.mxu0 0.0
    %1074 = vmatprep.mubr.f32.mxu0 0.0
    %1075 = vmatmul.mubr.f32.gmra.mrb[0].mxu0 %v1008
    %v1076 = vpop.f32.mrb[0].mxu0
    %v1077 = vadd.f32 %v73, %v1076
    %v1078 = vpop.f32.mrb[0].mxu0
    %1079 = vdwg.mxu0
    %v1080 = vxor.u32 %v1077, 2147483648
    %v1081 = vmul.f32 %v1080, 1.442695
    %v1082 = vpow.pop %v1081
    %v1083 = vadd.f32 %v1082, 1.0
    %v1084 = vrcp.pop %v1083
    %v1085 = vmul.f32 1.0, %v1084
    %v1086 = vtanh.pop %v1077
    %v1087 = vmul.f32 %v1085, %v796
    %1089 = vrot.lane.b32.xlu0 %v1086, 64
    %v1090 = vpop.permute.xlu0 %1089
    %v1092 = vmul.f32 %v1085, %v1090
    %1094 = vrot.lane.b32.xlu0 %v1092, 32
    %v1095 = vpop.permute.xlu0 %1094
    %v1097 = vadd.f32 %v1087, %v1095
    %v1098 = vtanh.pop %v1097
    %1100 = vrot.lane.b32.xlu0 %v1098, 64
    %v1101 = vpop.permute.xlu0 %1100
    %v1103 = vmul.f32 %v1085, %v1101
    %1105 = vrot.lane.b32.xlu0 %v1103, 32
    %v1106 = vpop.permute.xlu0 %1105
    %v1107 = vsel %vm206, %v1106, 0
    %1109 = vmatprep.subr.mxu0 0.0
    %1110 = vmatpush1.msra.mxu0 %v57
    %1111 = vmatprep.subr.mxu0 0.0
    %1112 = vmatpush1.msra.mxu0 %v58
    %1113 = vmatprep.subr.mxu0 0.0
    %1114 = vmatpush1.msra.mxu0 %v59
    %1115 = vmatprep.subr.mxu0 0.0
    %1116 = vmatpush1.msra.mxu0 %v60
    %1117 = vmatprep.subr.mxu0 0.0
    %1118 = vmatpush1.msra.mxu0 0.0
    %1119 = vmatprep.subr.mxu0 0.0
    %1120 = vmatpush1.msra.mxu0 0.0
    %1121 = vmatprep.subr.mxu0 0.0
    %1122 = vmatpush1.msra.mxu0 0.0
    %1123 = vmatprep.subr.mxu0 0.0
    %1124 = vmatpush1.msra.mxu0 0.0
    %1125 = vmatprep.subr.mxu0 0.0
    %1126 = vmatpush1.msra.mxu0 0.0
    %1127 = vmatprep.subr.mxu0 0.0
    %1128 = vmatpush1.msra.mxu0 0.0
    %1129 = vmatprep.subr.mxu0 0.0
    %1130 = vmatpush1.msra.mxu0 0.0
    %1131 = vmatprep.subr.mxu0 0.0
    %1132 = vmatpush1.msra.mxu0 0.0
    %1133 = vmatprep.subr.mxu0 0.0
    %1134 = vmatpush1.msra.mxu0 0.0
    %1135 = vmatprep.subr.mxu0 0.0
    %1136 = vmatpush1.msra.mxu0 0.0
    %1137 = vmatprep.subr.mxu0 0.0
    %1138 = vmatpush1.msra.mxu0 0.0
    %1139 = vmatprep.subr.mxu0 0.0
    %1140 = vmatpush1.msra.mxu0 0.0
    %1141 = vmatprep.subr.mxu0 0.0
    %1142 = vmatpush1.msra.mxu0 0.0
    %1143 = vmatprep.subr.mxu0 0.0
    %1144 = vmatpush1.msra.mxu0 0.0
    %1145 = vmatprep.subr.mxu0 0.0
    %1146 = vmatpush1.msra.mxu0 0.0
    %1147 = vmatprep.subr.mxu0 0.0
    %1148 = vmatpush1.msra.mxu0 0.0
    %1149 = vmatprep.subr.mxu0 0.0
    %1150 = vmatpush1.msra.mxu0 0.0
    %1151 = vmatprep.subr.mxu0 0.0
    %1152 = vmatpush1.msra.mxu0 0.0
    %1153 = vmatprep.subr.mxu0 0.0
    %1154 = vmatpush1.msra.mxu0 0.0
    %1155 = vmatprep.subr.mxu0 0.0
    %1156 = vmatpush1.msra.mxu0 0.0
    %1157 = vmatprep.subr.mxu0 0.0
    %1158 = vmatpush1.msra.mxu0 0.0
    %1159 = vmatprep.subr.mxu0 0.0
    %1160 = vmatpush1.msra.mxu0 0.0
    %1161 = vmatprep.subr.mxu0 0.0
    %1162 = vmatpush1.msra.mxu0 0.0
    %1163 = vmatprep.subr.mxu0 0.0
    %1164 = vmatpush1.msra.mxu0 0.0
    %1165 = vmatprep.subr.mxu0 0.0
    %1166 = vmatpush1.msra.mxu0 0.0
    %1167 = vmatprep.subr.mxu0 0.0
    %1168 = vmatpush1.msra.mxu0 0.0
    %1169 = vmatprep.subr.mxu0 0.0
    %1170 = vmatpush1.msra.mxu0 0.0
    %1171 = vmatprep.subr.mxu0 0.0
    %1172 = vmatpush1.msra.mxu0 0.0
    %1173 = vmatprep.mubr.f32.mxu0 0.0
    %1174 = vmatmul.mubr.f32.gmra.mrb[0].mxu0 %v1107
    %v1175 = vpop.f32.mrb[0].mxu0
    %v1176 = vadd.f32 %v87, %v1175
    %v1177 = vpop.f32.mrb[0].mxu0
    %1178 = vdwg.mxu0
    %v1179 = vsel %vm99, %v1176, -inf
    %1180 = vmax.xlane.f32.xlu0 %v1179
    %v1181 = vpop.xlane.xlu0 %1180
    %vm1182 = vcmp.eq.f32.partialorder %v1176, %v1181
    %v1183 = vsel %vm1182, %v174, 16
    %v1184 = vsel %vm99, %v1183, 2147483647
    %v1185 = vand.u32 %v1184, 65535
    %v1186 = vshra.s32 %v1184, 16
    %v1187 = vcvt.s32.f32 %v1185
    %v1188 = vcvt.s32.f32 %v1186
    %1189 = vmin.xlane.f32.xlu0 %v1188
    %v1190 = vpop.xlane.xlu0 %1189
    %vm1191 = vcmp.eq.f32.partialorder %v1188, %v1190
    %v1192 = vsel %vm1191, %v1187, inf
    %1193 = vmin.xlane.f32.xlu0 %v1192
    %v1194 = vpop.xlane.xlu0 %1193
    %v1195 = vcvt.f32.s32 %v1194
    %v1196 = vcvt.f32.s32 %v1190
    %v1197 = vshll.u32 %v1196, 16
    %v1198 = vadd.s32 %v1197, %v1195
    %vm1199 = vcmp.eq.s32.totalorder %v174, %v1198
    %v1200 = vsel %vm1199, 1, 0
    %v1201 = vcvt.s32.f32 %v1200
    %1203 = vrot.lane.b32.xlu0 %v1002, 48
    %v1204 = vpop.permute.xlu0 %1203
    %v1206 = vsel %vm99, %v1201, %v1204
    %v1208 = vsel %vm303, %v1206, 0
    %1210 = vmatprep.subr.mxu0 0.0
    %1211 = vmatpush1.msra.mxu0 %v51
    %1212 = vmatprep.subr.mxu0 0.0
    %1213 = vmatpush1.msra.mxu0 %v52
    %1214 = vmatprep.subr.mxu0 0.0
    %1215 = vmatpush1.msra.mxu0 %v53
    %1216 = vmatprep.subr.mxu0 0.0
    %1217 = vmatpush1.msra.mxu0 %v54
    %1218 = vmatprep.subr.mxu0 0.0
    %1219 = vmatpush1.msra.mxu0 %v55
    %1220 = vmatprep.subr.mxu0 0.0
    %1221 = vmatpush1.msra.mxu0 %v56
    %1222 = vmatprep.subr.mxu0 0.0
    %1223 = vmatpush1.msra.mxu0 0.0
    %1224 = vmatprep.subr.mxu0 0.0
    %1225 = vmatpush1.msra.mxu0 0.0
    %1226 = vmatprep.subr.mxu0 0.0
    %1227 = vmatpush1.msra.mxu0 0.0
    %1228 = vmatprep.subr.mxu0 0.0
    %1229 = vmatpush1.msra.mxu0 0.0
    %1230 = vmatprep.subr.mxu0 0.0
    %1231 = vmatpush1.msra.mxu0 0.0
    %1232 = vmatprep.subr.mxu0 0.0
    %1233 = vmatpush1.msra.mxu0 0.0
    %1234 = vmatprep.subr.mxu0 0.0
    %1235 = vmatpush1.msra.mxu0 0.0
    %1236 = vmatprep.subr.mxu0 0.0
    %1237 = vmatpush1.msra.mxu0 0.0
    %1238 = vmatprep.subr.mxu0 0.0
    %1239 = vmatpush1.msra.mxu0 0.0
    %1240 = vmatprep.subr.mxu0 0.0
    %1241 = vmatpush1.msra.mxu0 0.0
    %1242 = vmatprep.subr.mxu0 0.0
    %1243 = vmatpush1.msra.mxu0 0.0
    %1244 = vmatprep.subr.mxu0 0.0
    %1245 = vmatpush1.msra.mxu0 0.0
    %1246 = vmatprep.subr.mxu0 0.0
    %1247 = vmatpush1.msra.mxu0 0.0
    %1248 = vmatprep.subr.mxu0 0.0
    %1249 = vmatpush1.msra.mxu0 0.0
    %1250 = vmatprep.subr.mxu0 0.0
    %1251 = vmatpush1.msra.mxu0 0.0
    %1252 = vmatprep.subr.mxu0 0.0
    %1253 = vmatpush1.msra.mxu0 0.0
    %1254 = vmatprep.subr.mxu0 0.0
    %1255 = vmatpush1.msra.mxu0 0.0
    %1256 = vmatprep.subr.mxu0 0.0
    %1257 = vmatpush1.msra.mxu0 0.0
    %1258 = vmatprep.subr.mxu0 0.0
    %1259 = vmatpush1.msra.mxu0 0.0
    %1260 = vmatprep.subr.mxu0 0.0
    %1261 = vmatpush1.msra.mxu0 0.0
    %1262 = vmatprep.subr.mxu0 0.0
    %1263 = vmatpush1.msra.mxu0 0.0
    %1264 = vmatprep.subr.mxu0 0.0
    %1265 = vmatpush1.msra.mxu0 0.0
    %1266 = vmatprep.subr.mxu0 0.0
    %1267 = vmatpush1.msra.mxu0 0.0
    %1268 = vmatprep.subr.mxu0 0.0
    %1269 = vmatpush1.msra.mxu0 0.0
    %1270 = vmatprep.subr.mxu0 0.0
    %1271 = vmatpush1.msra.mxu0 0.0
    %1272 = vmatprep.subr.mxu0 0.0
    %1273 = vmatpush1.msra.mxu0 0.0
    %1274 = vmatprep.mubr.f32.mxu0 0.0
    %1275 = vmatmul.mubr.f32.gmra.mrb[0].mxu0 %v1208
    %v1276 = vpop.f32.mrb[0].mxu0
    %v1277 = vadd.f32 %v80, %v1276
    %v1278 = vpop.f32.mrb[0].mxu0
    %1279 = vdwg.mxu0
    %v1280 = vxor.u32 %v1277, 2147483648
    %v1281 = vmul.f32 %v1280, 1.442695
    %v1282 = vpow.pop %v1281
    %v1283 = vadd.f32 %v1282, 1.0
    %v1284 = vrcp.pop %v1283
    %v1285 = vmul.f32 1.0, %v1284
    %v1286 = vtanh.pop %v1277
    %v1287 = vmul.f32 %v1285, %v996
    %1289 = vrot.lane.b32.xlu0 %v1286, 64
    %v1290 = vpop.permute.xlu0 %1289
    %v1292 = vmul.f32 %v1285, %v1290
    %1294 = vrot.lane.b32.xlu0 %v1292, 32
    %v1295 = vpop.permute.xlu0 %1294
    %v1297 = vadd.f32 %v1287, %v1295
    %v1298 = vtanh.pop %v1297
    %1300 = vrot.lane.b32.xlu0 %v1298, 64
    %v1301 = vpop.permute.xlu0 %1300
    %v1303 = vmul.f32 %v1285, %v1301
    %1304 = vrot.lane.b32.xlu0 %v1103, 48
    %v1305 = vpop.permute.xlu0 %1304
    %v1307 = vsel %vm99, %v1201, %v1305
    %v1309 = vsel %vm303, %v1307, 0
    %1311 = vmatprep.subr.mxu0 0.0
    %1312 = vmatpush1.msra.mxu0 %v45
    %1313 = vmatprep.subr.mxu0 0.0
    %1314 = vmatpush1.msra.mxu0 %v46
    %1315 = vmatprep.subr.mxu0 0.0
    %1316 = vmatpush1.msra.mxu0 %v47
    %1317 = vmatprep.subr.mxu0 0.0
    %1318 = vmatpush1.msra.mxu0 %v48
    %1319 = vmatprep.subr.mxu0 0.0
    %1320 = vmatpush1.msra.mxu0 %v49
    %1321 = vmatprep.subr.mxu0 0.0
    %1322 = vmatpush1.msra.mxu0 %v50
    %1323 = vmatprep.subr.mxu0 0.0
    %1324 = vmatpush1.msra.mxu0 0.0
    %1325 = vmatprep.subr.mxu0 0.0
    %1326 = vmatpush1.msra.mxu0 0.0
    %1327 = vmatprep.subr.mxu0 0.0
    %1328 = vmatpush1.msra.mxu0 0.0
    %1329 = vmatprep.subr.mxu0 0.0
    %1330 = vmatpush1.msra.mxu0 0.0
    %1331 = vmatprep.subr.mxu0 0.0
    %1332 = vmatpush1.msra.mxu0 0.0
    %1333 = vmatprep.subr.mxu0 0.0
    %1334 = vmatpush1.msra.mxu0 0.0
    %1335 = vmatprep.subr.mxu0 0.0
    %1336 = vmatpush1.msra.mxu0 0.0
    %1337 = vmatprep.subr.mxu0 0.0
    %1338 = vmatpush1.msra.mxu0 0.0
    %1339 = vmatprep.subr.mxu0 0.0
    %1340 = vmatpush1.msra.mxu0 0.0
    %1341 = vmatprep.subr.mxu0 0.0
    %1342 = vmatpush1.msra.mxu0 0.0
    %1343 = vmatprep.subr.mxu0 0.0
    %1344 = vmatpush1.msra.mxu0 0.0
    %1345 = vmatprep.subr.mxu0 0.0
    %1346 = vmatpush1.msra.mxu0 0.0
    %1347 = vmatprep.subr.mxu0 0.0
    %1348 = vmatpush1.msra.mxu0 0.0
    %1349 = vmatprep.subr.mxu0 0.0
    %1350 = vmatpush1.msra.mxu0 0.0
    %1351 = vmatprep.subr.mxu0 0.0
    %1352 = vmatpush1.msra.mxu0 0.0
    %1353 = vmatprep.subr.mxu0 0.0
    %1354 = vmatpush1.msra.mxu0 0.0
    %1355 = vmatprep.subr.mxu0 0.0
    %1356 = vmatpush1.msra.mxu0 0.0
    %1357 = vmatprep.subr.mxu0 0.0
    %1358 = vmatpush1.msra.mxu0 0.0
    %1359 = vmatprep.subr.mxu0 0.0
    %1360 = vmatpush1.msra.mxu0 0.0
    %1361 = vmatprep.subr.mxu0 0.0
    %1362 = vmatpush1.msra.mxu0 0.0
    %1363 = vmatprep.subr.mxu0 0.0
    %1364 = vmatpush1.msra.mxu0 0.0
    %1365 = vmatprep.subr.mxu0 0.0
    %1366 = vmatpush1.msra.mxu0 0.0
    %1367 = vmatprep.subr.mxu0 0.0
    %1368 = vmatpush1.msra.mxu0 0.0
    %1369 = vmatprep.subr.mxu0 0.0
    %1370 = vmatpush1.msra.mxu0 0.0
    %1371 = vmatprep.subr.mxu0 0.0
    %1372 = vmatpush1.msra.mxu0 0.0
    %1373 = vmatprep.subr.mxu0 0.0
    %1374 = vmatpush1.msra.mxu0 0.0
    %1375 = vmatprep.mubr.f32.mxu0 0.0
    %1376 = vmatmul.mubr.f32.gmra.mrb[0].mxu0 %v1309
    %v1377 = vpop.f32.mrb[0].mxu0
    %v1378 = vadd.f32 %v73, %v1377
    %v1379 = vpop.f32.mrb[0].mxu0
    %1380 = vdwg.mxu0
    %v1381 = vxor.u32 %v1378, 2147483648
    %v1382 = vmul.f32 %v1381, 1.442695
    %v1383 = vpow.pop %v1382
    %v1384 = vadd.f32 %v1383, 1.0
    %v1385 = vrcp.pop %v1384
    %v1386 = vmul.f32 1.0, %v1385
    %v1387 = vtanh.pop %v1378
    %v1388 = vmul.f32 %v1386, %v1097
    %1390 = vrot.lane.b32.xlu0 %v1387, 64
    %v1391 = vpop.permute.xlu0 %1390
    %v1393 = vmul.f32 %v1386, %v1391
    %1395 = vrot.lane.b32.xlu0 %v1393, 32
    %v1396 = vpop.permute.xlu0 %1395
    %v1398 = vadd.f32 %v1388, %v1396
    %v1399 = vtanh.pop %v1398
    %1401 = vrot.lane.b32.xlu0 %v1399, 64
    %v1402 = vpop.permute.xlu0 %1401
    %v1404 = vmul.f32 %v1386, %v1402
    %1406 = vrot.lane.b32.xlu0 %v1404, 32
    %v1407 = vpop.permute.xlu0 %1406
    %v1408 = vsel %vm206, %v1407, 0
    %1410 = vmatprep.subr.mxu0 0.0
    %1411 = vmatpush1.msra.mxu0 %v57
    %1412 = vmatprep.subr.mxu0 0.0
    %1413 = vmatpush1.msra.mxu0 %v58
    %1414 = vmatprep.subr.mxu0 0.0
    %1415 = vmatpush1.msra.mxu0 %v59
    %1416 = vmatprep.subr.mxu0 0.0
    %1417 = vmatpush1.msra.mxu0 %v60
    %1418 = vmatprep.subr.mxu0 0.0
    %1419 = vmatpush1.msra.mxu0 0.0
    %1420 = vmatprep.subr.mxu0 0.0
    %1421 = vmatpush1.msra.mxu0 0.0
    %1422 = vmatprep.subr.mxu0 0.0
    %1423 = vmatpush1.msra.mxu0 0.0
    %1424 = vmatprep.subr.mxu0 0.0
    %1425 = vmatpush1.msra.mxu0 0.0
    %1426 = vmatprep.subr.mxu0 0.0
    %1427 = vmatpush1.msra.mxu0 0.0
    %1428 = vmatprep.subr.mxu0 0.0
    %1429 = vmatpush1.msra.mxu0 0.0
    %1430 = vmatprep.subr.mxu0 0.0
    %1431 = vmatpush1.msra.mxu0 0.0
    %1432 = vmatprep.subr.mxu0 0.0
    %1433 = vmatpush1.msra.mxu0 0.0
    %1434 = vmatprep.subr.mxu0 0.0
    %1435 = vmatpush1.msra.mxu0 0.0
    %1436 = vmatprep.subr.mxu0 0.0
    %1437 = vmatpush1.msra.mxu0 0.0
    %1438 = vmatprep.subr.mxu0 0.0
    %1439 = vmatpush1.msra.mxu0 0.0
    %1440 = vmatprep.subr.mxu0 0.0
    %1441 = vmatpush1.msra.mxu0 0.0
    %1442 = vmatprep.subr.mxu0 0.0
    %1443 = vmatpush1.msra.mxu0 0.0
    %1444 = vmatprep.subr.mxu0 0.0
    %1445 = vmatpush1.msra.mxu0 0.0
    %1446 = vmatprep.subr.mxu0 0.0
    %1447 = vmatpush1.msra.mxu0 0.0
    %1448 = vmatprep.subr.mxu0 0.0
    %1449 = vmatpush1.msra.mxu0 0.0
    %1450 = vmatprep.subr.mxu0 0.0
    %1451 = vmatpush1.msra.mxu0 0.0
    %1452 = vmatprep.subr.mxu0 0.0
    %1453 = vmatpush1.msra.mxu0 0.0
    %1454 = vmatprep.subr.mxu0 0.0
    %1455 = vmatpush1.msra.mxu0 0.0
    %1456 = vmatprep.subr.mxu0 0.0
    %1457 = vmatpush1.msra.mxu0 0.0
    %1458 = vmatprep.subr.mxu0 0.0
    %1459 = vmatpush1.msra.mxu0 0.0
    %1460 = vmatprep.subr.mxu0 0.0
    %1461 = vmatpush1.msra.mxu0 0.0
    %1462 = vmatprep.subr.mxu0 0.0
    %1463 = vmatpush1.msra.mxu0 0.0
    %1464 = vmatprep.subr.mxu0 0.0
    %1465 = vmatpush1.msra.mxu0 0.0
    %1466 = vmatprep.subr.mxu0 0.0
    %1467 = vmatpush1.msra.mxu0 0.0
    %1468 = vmatprep.subr.mxu0 0.0
    %1469 = vmatpush1.msra.mxu0 0.0
    %1470 = vmatprep.subr.mxu0 0.0
    %1471 = vmatpush1.msra.mxu0 0.0
    %1472 = vmatprep.subr.mxu0 0.0
    %1473 = vmatpush1.msra.mxu0 0.0
    %1474 = vmatprep.mubr.f32.mxu0 0.0
    %1475 = vmatmul.mubr.f32.gmra.mrb[0].mxu0 %v1408
    %v1476 = vpop.f32.mrb[0].mxu0
    %v1477 = vadd.f32 %v87, %v1476
    %v1478 = vpop.f32.mrb[0].mxu0
    %1479 = vdwg.mxu0
    %v1480 = vsel %vm99, %v1477, -inf
    %1481 = vmax.xlane.f32.xlu0 %v1480
    %v1482 = vpop.xlane.xlu0 %1481
    %vm1483 = vcmp.eq.f32.partialorder %v1477, %v1482
    %v1484 = vsel %vm1483, %v174, 16
    %v1485 = vsel %vm99, %v1484, 2147483647
    %v1486 = vand.u32 %v1485, 65535
    %v1487 = vshra.s32 %v1485, 16
    %v1488 = vcvt.s32.f32 %v1486
    %v1489 = vcvt.s32.f32 %v1487
    %1490 = vmin.xlane.f32.xlu0 %v1489
    %v1491 = vpop.xlane.xlu0 %1490
    %vm1492 = vcmp.eq.f32.partialorder %v1489, %v1491
    %v1493 = vsel %vm1492, %v1488, inf
    %1494 = vmin.xlane.f32.xlu0 %v1493
    %v1495 = vpop.xlane.xlu0 %1494
    %v1496 = vcvt.f32.s32 %v1495
    %v1497 = vcvt.f32.s32 %v1491
    %v1498 = vshll.u32 %v1497, 16
    %v1499 = vadd.s32 %v1498, %v1496
    %vm1500 = vcmp.eq.s32.totalorder %v174, %v1499
    %v1501 = vsel %vm1500, 1, 0
    %v1502 = vcvt.s32.f32 %v1501
    %1504 = vrot.lane.b32.xlu0 %v1303, 48
    %v1505 = vpop.permute.xlu0 %1504
    %v1507 = vsel %vm99, %v1502, %v1505
    %v1509 = vsel %vm303, %v1507, 0
    %1511 = vmatprep.subr.mxu0 0.0
    %1512 = vmatpush1.msra.mxu0 %v51
    %1513 = vmatprep.subr.mxu0 0.0
    %1514 = vmatpush1.msra.mxu0 %v52
    %1515 = vmatprep.subr.mxu0 0.0
    %1516 = vmatpush1.msra.mxu0 %v53
    %1517 = vmatprep.subr.mxu0 0.0
    %1518 = vmatpush1.msra.mxu0 %v54
    %1519 = vmatprep.subr.mxu0 0.0
    %1520 = vmatpush1.msra.mxu0 %v55
    %1521 = vmatprep.subr.mxu0 0.0
    %1522 = vmatpush1.msra.mxu0 %v56
    %1523 = vmatprep.subr.mxu0 0.0
    %1524 = vmatpush1.msra.mxu0 0.0
    %1525 = vmatprep.subr.mxu0 0.0
    %1526 = vmatpush1.msra.mxu0 0.0
    %1527 = vmatprep.subr.mxu0 0.0
    %1528 = vmatpush1.msra.mxu0 0.0
    %1529 = vmatprep.subr.mxu0 0.0
    %1530 = vmatpush1.msra.mxu0 0.0
    %1531 = vmatprep.subr.mxu0 0.0
    %1532 = vmatpush1.msra.mxu0 0.0
    %1533 = vmatprep.subr.mxu0 0.0
    %1534 = vmatpush1.msra.mxu0 0.0
    %1535 = vmatprep.subr.mxu0 0.0
    %1536 = vmatpush1.msra.mxu0 0.0
    %1537 = vmatprep.subr.mxu0 0.0
    %1538 = vmatpush1.msra.mxu0 0.0
    %1539 = vmatprep.subr.mxu0 0.0
    %1540 = vmatpush1.msra.mxu0 0.0
    %1541 = vmatprep.subr.mxu0 0.0
    %1542 = vmatpush1.msra.mxu0 0.0
    %1543 = vmatprep.subr.mxu0 0.0
    %1544 = vmatpush1.msra.mxu0 0.0
    %1545 = vmatprep.subr.mxu0 0.0
    %1546 = vmatpush1.msra.mxu0 0.0
    %1547 = vmatprep.subr.mxu0 0.0
    %1548 = vmatpush1.msra.mxu0 0.0
    %1549 = vmatprep.subr.mxu0 0.0
    %1550 = vmatpush1.msra.mxu0 0.0
    %1551 = vmatprep.subr.mxu0 0.0
    %1552 = vmatpush1.msra.mxu0 0.0
    %1553 = vmatprep.subr.mxu0 0.0
    %1554 = vmatpush1.msra.mxu0 0.0
    %1555 = vmatprep.subr.mxu0 0.0
    %1556 = vmatpush1.msra.mxu0 0.0
    %1557 = vmatprep.subr.mxu0 0.0
    %1558 = vmatpush1.msra.mxu0 0.0
    %1559 = vmatprep.subr.mxu0 0.0
    %1560 = vmatpush1.msra.mxu0 0.0
    %1561 = vmatprep.subr.mxu0 0.0
    %1562 = vmatpush1.msra.mxu0 0.0
    %1563 = vmatprep.subr.mxu0 0.0
    %1564 = vmatpush1.msra.mxu0 0.0
    %1565 = vmatprep.subr.mxu0 0.0
    %1566 = vmatpush1.msra.mxu0 0.0
    %1567 = vmatprep.subr.mxu0 0.0
    %1568 = vmatpush1.msra.mxu0 0.0
    %1569 = vmatprep.subr.mxu0 0.0
    %1570 = vmatpush1.msra.mxu0 0.0
    %1571 = vmatprep.subr.mxu0 0.0
    %1572 = vmatpush1.msra.mxu0 0.0
    %1573 = vmatprep.subr.mxu0 0.0
    %1574 = vmatpush1.msra.mxu0 0.0
    %1575 = vmatprep.mubr.f32.mxu0 0.0
    %1576 = vmatmul.mubr.f32.gmra.mrb[0].mxu0 %v1509
    %v1577 = vpop.f32.mrb[0].mxu0
    %v1578 = vadd.f32 %v80, %v1577
    %v1579 = vpop.f32.mrb[0].mxu0
    %1580 = vdwg.mxu0
    %v1581 = vxor.u32 %v1578, 2147483648
    %v1582 = vmul.f32 %v1581, 1.442695
    %v1583 = vpow.pop %v1582
    %v1584 = vadd.f32 %v1583, 1.0
    %v1585 = vrcp.pop %v1584
    %v1586 = vmul.f32 1.0, %v1585
    %v1587 = vtanh.pop %v1578
    %v1588 = vmul.f32 %v1586, %v1297
    %1590 = vrot.lane.b32.xlu0 %v1587, 64
    %v1591 = vpop.permute.xlu0 %1590
    %v1593 = vmul.f32 %v1586, %v1591
    %1595 = vrot.lane.b32.xlu0 %v1593, 32
    %v1596 = vpop.permute.xlu0 %1595
    %v1598 = vadd.f32 %v1588, %v1596
    %v1599 = vtanh.pop %v1598
    %1601 = vrot.lane.b32.xlu0 %v1599, 64
    %v1602 = vpop.permute.xlu0 %1601
    %v1604 = vmul.f32 %v1586, %v1602
    %1605 = vrot.lane.b32.xlu0 %v1404, 48
    %v1606 = vpop.permute.xlu0 %1605
    %v1608 = vsel %vm99, %v1502, %v1606
    %v1610 = vsel %vm303, %v1608, 0
    %1612 = vmatprep.subr.mxu0 0.0
    %1613 = vmatpush1.msra.mxu0 %v45
    %1614 = vmatprep.subr.mxu0 0.0
    %1615 = vmatpush1.msra.mxu0 %v46
    %1616 = vmatprep.subr.mxu0 0.0
    %1617 = vmatpush1.msra.mxu0 %v47
    %1618 = vmatprep.subr.mxu0 0.0
    %1619 = vmatpush1.msra.mxu0 %v48
    %1620 = vmatprep.subr.mxu0 0.0
    %1621 = vmatpush1.msra.mxu0 %v49
    %1622 = vmatprep.subr.mxu0 0.0
    %1623 = vmatpush1.msra.mxu0 %v50
    %1624 = vmatprep.subr.mxu0 0.0
    %1625 = vmatpush1.msra.mxu0 0.0
    %1626 = vmatprep.subr.mxu0 0.0
    %1627 = vmatpush1.msra.mxu0 0.0
    %1628 = vmatprep.subr.mxu0 0.0
    %1629 = vmatpush1.msra.mxu0 0.0
    %1630 = vmatprep.subr.mxu0 0.0
    %1631 = vmatpush1.msra.mxu0 0.0
    %1632 = vmatprep.subr.mxu0 0.0
    %1633 = vmatpush1.msra.mxu0 0.0
    %1634 = vmatprep.subr.mxu0 0.0
    %1635 = vmatpush1.msra.mxu0 0.0
    %1636 = vmatprep.subr.mxu0 0.0
    %1637 = vmatpush1.msra.mxu0 0.0
    %1638 = vmatprep.subr.mxu0 0.0
    %1639 = vmatpush1.msra.mxu0 0.0
    %1640 = vmatprep.subr.mxu0 0.0
    %1641 = vmatpush1.msra.mxu0 0.0
    %1642 = vmatprep.subr.mxu0 0.0
    %1643 = vmatpush1.msra.mxu0 0.0
    %1644 = vmatprep.subr.mxu0 0.0
    %1645 = vmatpush1.msra.mxu0 0.0
    %1646 = vmatprep.subr.mxu0 0.0
    %1647 = vmatpush1.msra.mxu0 0.0
    %1648 = vmatprep.subr.mxu0 0.0
    %1649 = vmatpush1.msra.mxu0 0.0
    %1650 = vmatprep.subr.mxu0 0.0
    %1651 = vmatpush1.msra.mxu0 0.0
    %1652 = vmatprep.subr.mxu0 0.0
    %1653 = vmatpush1.msra.mxu0 0.0
    %1654 = vmatprep.subr.mxu0 0.0
    %1655 = vmatpush1.msra.mxu0 0.0
    %1656 = vmatprep.subr.mxu0 0.0
    %1657 = vmatpush1.msra.mxu0 0.0
    %1658 = vmatprep.subr.mxu0 0.0
    %1659 = vmatpush1.msra.mxu0 0.0
    %1660 = vmatprep.subr.mxu0 0.0
    %1661 = vmatpush1.msra.mxu0 0.0
    %1662 = vmatprep.subr.mxu0 0.0
    %1663 = vmatpush1.msra.mxu0 0.0
    %1664 = vmatprep.subr.mxu0 0.0
    %1665 = vmatpush1.msra.mxu0 0.0
    %1666 = vmatprep.subr.mxu0 0.0
    %1667 = vmatpush1.msra.mxu0 0.0
    %1668 = vmatprep.subr.mxu0 0.0
    %1669 = vmatpush1.msra.mxu0 0.0
    %1670 = vmatprep.subr.mxu0 0.0
    %1671 = vmatpush1.msra.mxu0 0.0
    %1672 = vmatprep.subr.mxu0 0.0
    %1673 = vmatpush1.msra.mxu0 0.0
    %1674 = vmatprep.subr.mxu0 0.0
    %1675 = vmatpush1.msra.mxu0 0.0
    %1676 = vmatprep.mubr.f32.mxu0 0.0
    %1677 = vmatmul.mubr.f32.gmra.mrb[0].mxu0 %v1610
    %v1678 = vpop.f32.mrb[0].mxu0
    %v1679 = vadd.f32 %v73, %v1678
    %v1680 = vpop.f32.mrb[0].mxu0
    %1681 = vdwg.mxu0
    %v1682 = vxor.u32 %v1679, 2147483648
    %v1683 = vmul.f32 %v1682, 1.442695
    %v1684 = vpow.pop %v1683
    %v1685 = vadd.f32 %v1684, 1.0
    %v1686 = vrcp.pop %v1685
    %v1687 = vmul.f32 1.0, %v1686
    %v1688 = vtanh.pop %v1679
    %v1689 = vmul.f32 %v1687, %v1398
    %1691 = vrot.lane.b32.xlu0 %v1688, 64
    %v1692 = vpop.permute.xlu0 %1691
    %v1694 = vmul.f32 %v1687, %v1692
    %1696 = vrot.lane.b32.xlu0 %v1694, 32
    %v1697 = vpop.permute.xlu0 %1696
    %v1699 = vadd.f32 %v1689, %v1697
    %v1700 = vtanh.pop %v1699
    %1702 = vrot.lane.b32.xlu0 %v1700, 64
    %v1703 = vpop.permute.xlu0 %1702
    %v1705 = vmul.f32 %v1687, %v1703
    %1707 = vrot.lane.b32.xlu0 %v1705, 32
    %v1708 = vpop.permute.xlu0 %1707
    %v1709 = vsel %vm206, %v1708, 0
    %1711 = vmatprep.subr.mxu0 0.0
    %1712 = vmatpush1.msra.mxu0 %v57
    %1713 = vmatprep.subr.mxu0 0.0
    %1714 = vmatpush1.msra.mxu0 %v58
    %1715 = vmatprep.subr.mxu0 0.0
    %1716 = vmatpush1.msra.mxu0 %v59
    %1717 = vmatprep.subr.mxu0 0.0
    %1718 = vmatpush1.msra.mxu0 %v60
    %1719 = vmatprep.subr.mxu0 0.0
    %1720 = vmatpush1.msra.mxu0 0.0
    %1721 = vmatprep.subr.mxu0 0.0
    %1722 = vmatpush1.msra.mxu0 0.0
    %1723 = vmatprep.subr.mxu0 0.0
    %1724 = vmatpush1.msra.mxu0 0.0
    %1725 = vmatprep.subr.mxu0 0.0
    %1726 = vmatpush1.msra.mxu0 0.0
    %1727 = vmatprep.subr.mxu0 0.0
    %1728 = vmatpush1.msra.mxu0 0.0
    %1729 = vmatprep.subr.mxu0 0.0
    %1730 = vmatpush1.msra.mxu0 0.0
    %1731 = vmatprep.subr.mxu0 0.0
    %1732 = vmatpush1.msra.mxu0 0.0
    %1733 = vmatprep.subr.mxu0 0.0
    %1734 = vmatpush1.msra.mxu0 0.0
    %1735 = vmatprep.subr.mxu0 0.0
    %1736 = vmatpush1.msra.mxu0 0.0
    %1737 = vmatprep.subr.mxu0 0.0
    %1738 = vmatpush1.msra.mxu0 0.0
    %1739 = vmatprep.subr.mxu0 0.0
    %1740 = vmatpush1.msra.mxu0 0.0
    %1741 = vmatprep.subr.mxu0 0.0
    %1742 = vmatpush1.msra.mxu0 0.0
    %1743 = vmatprep.subr.mxu0 0.0
    %1744 = vmatpush1.msra.mxu0 0.0
    %1745 = vmatprep.subr.mxu0 0.0
    %1746 = vmatpush1.msra.mxu0 0.0
    %1747 = vmatprep.subr.mxu0 0.0
    %1748 = vmatpush1.msra.mxu0 0.0
    %1749 = vmatprep.subr.mxu0 0.0
    %1750 = vmatpush1.msra.mxu0 0.0
    %1751 = vmatprep.subr.mxu0 0.0
    %1752 = vmatpush1.msra.mxu0 0.0
    %1753 = vmatprep.subr.mxu0 0.0
    %1754 = vmatpush1.msra.mxu0 0.0
    %1755 = vmatprep.subr.mxu0 0.0
    %1756 = vmatpush1.msra.mxu0 0.0
    %1757 = vmatprep.subr.mxu0 0.0
    %1758 = vmatpush1.msra.mxu0 0.0
    %1759 = vmatprep.subr.mxu0 0.0
    %1760 = vmatpush1.msra.mxu0 0.0
    %1761 = vmatprep.subr.mxu0 0.0
    %1762 = vmatpush1.msra.mxu0 0.0
    %1763 = vmatprep.subr.mxu0 0.0
    %1764 = vmatpush1.msra.mxu0 0.0
    %1765 = vmatprep.subr.mxu0 0.0
    %1766 = vmatpush1.msra.mxu0 0.0
    %1767 = vmatprep.subr.mxu0 0.0
    %1768 = vmatpush1.msra.mxu0 0.0
    %1769 = vmatprep.subr.mxu0 0.0
    %1770 = vmatpush1.msra.mxu0 0.0
    %1771 = vmatprep.subr.mxu0 0.0
    %1772 = vmatpush1.msra.mxu0 0.0
    %1773 = vmatprep.subr.mxu0 0.0
    %1774 = vmatpush1.msra.mxu0 0.0
    %1775 = vmatprep.mubr.f32.mxu0 0.0
    %1776 = vmatmul.mubr.f32.gmra.mrb[0].mxu0 %v1709
    %v1777 = vpop.f32.mrb[0].mxu0
    %v1778 = vadd.f32 %v87, %v1777
    %v1779 = vpop.f32.mrb[0].mxu0
    %1780 = vdwg.mxu0
    %v1781 = vsel %vm99, %v1778, -inf
    %1782 = vmax.xlane.f32.xlu0 %v1781
    %v1783 = vpop.xlane.xlu0 %1782
    %vm1784 = vcmp.eq.f32.partialorder %v1778, %v1783
    %v1785 = vsel %vm1784, %v174, 16
    %v1786 = vsel %vm99, %v1785, 2147483647
    %v1787 = vand.u32 %v1786, 65535
    %v1788 = vshra.s32 %v1786, 16
    %v1789 = vcvt.s32.f32 %v1787
    %v1790 = vcvt.s32.f32 %v1788
    %1791 = vmin.xlane.f32.xlu0 %v1790
    %v1792 = vpop.xlane.xlu0 %1791
    %vm1793 = vcmp.eq.f32.partialorder %v1790, %v1792
    %v1794 = vsel %vm1793, %v1789, inf
    %1795 = vmin.xlane.f32.xlu0 %v1794
    %v1796 = vpop.xlane.xlu0 %1795
    %v1797 = vcvt.f32.s32 %v1796
    %v1798 = vcvt.f32.s32 %v1792
    %v1799 = vshll.u32 %v1798, 16
    %v1800 = vadd.s32 %v1799, %v1797
    %vm1801 = vcmp.eq.s32.totalorder %v174, %v1800
    %v1802 = vsel %vm1801, 1, 0
    %v1803 = vcvt.s32.f32 %v1802
    %1805 = vrot.lane.b32.xlu0 %v1604, 48
    %v1806 = vpop.permute.xlu0 %1805
    %v1808 = vsel %vm99, %v1803, %v1806
    %v1810 = vsel %vm303, %v1808, 0
    %1812 = vmatprep.subr.mxu0 0.0
    %1813 = vmatpush1.msra.mxu0 %v51
    %1814 = vmatprep.subr.mxu0 0.0
    %1815 = vmatpush1.msra.mxu0 %v52
    %1816 = vmatprep.subr.mxu0 0.0
    %1817 = vmatpush1.msra.mxu0 %v53
    %1818 = vmatprep.subr.mxu0 0.0
    %1819 = vmatpush1.msra.mxu0 %v54
    %1820 = vmatprep.subr.mxu0 0.0
    %1821 = vmatpush1.msra.mxu0 %v55
    %1822 = vmatprep.subr.mxu0 0.0
    %1823 = vmatpush1.msra.mxu0 %v56
    %1824 = vmatprep.subr.mxu0 0.0
    %1825 = vmatpush1.msra.mxu0 0.0
    %1826 = vmatprep.subr.mxu0 0.0
    %1827 = vmatpush1.msra.mxu0 0.0
    %1828 = vmatprep.subr.mxu0 0.0
    %1829 = vmatpush1.msra.mxu0 0.0
    %1830 = vmatprep.subr.mxu0 0.0
    %1831 = vmatpush1.msra.mxu0 0.0
    %1832 = vmatprep.subr.mxu0 0.0
    %1833 = vmatpush1.msra.mxu0 0.0
    %1834 = vmatprep.subr.mxu0 0.0
    %1835 = vmatpush1.msra.mxu0 0.0
    %1836 = vmatprep.subr.mxu0 0.0
    %1837 = vmatpush1.msra.mxu0 0.0
    %1838 = vmatprep.subr.mxu0 0.0
    %1839 = vmatpush1.msra.mxu0 0.0
    %1840 = vmatprep.subr.mxu0 0.0
    %1841 = vmatpush1.msra.mxu0 0.0
    %1842 = vmatprep.subr.mxu0 0.0
    %1843 = vmatpush1.msra.mxu0 0.0
    %1844 = vmatprep.subr.mxu0 0.0
    %1845 = vmatpush1.msra.mxu0 0.0
    %1846 = vmatprep.subr.mxu0 0.0
    %1847 = vmatpush1.msra.mxu0 0.0
    %1848 = vmatprep.subr.mxu0 0.0
    %1849 = vmatpush1.msra.mxu0 0.0
    %1850 = vmatprep.subr.mxu0 0.0
    %1851 = vmatpush1.msra.mxu0 0.0
    %1852 = vmatprep.subr.mxu0 0.0
    %1853 = vmatpush1.msra.mxu0 0.0
    %1854 = vmatprep.subr.mxu0 0.0
    %1855 = vmatpush1.msra.mxu0 0.0
    %1856 = vmatprep.subr.mxu0 0.0
    %1857 = vmatpush1.msra.mxu0 0.0
    %1858 = vmatprep.subr.mxu0 0.0
    %1859 = vmatpush1.msra.mxu0 0.0
    %1860 = vmatprep.subr.mxu0 0.0
    %1861 = vmatpush1.msra.mxu0 0.0
    %1862 = vmatprep.subr.mxu0 0.0
    %1863 = vmatpush1.msra.mxu0 0.0
    %1864 = vmatprep.subr.mxu0 0.0
    %1865 = vmatpush1.msra.mxu0 0.0
    %1866 = vmatprep.subr.mxu0 0.0
    %1867 = vmatpush1.msra.mxu0 0.0
    %1868 = vmatprep.subr.mxu0 0.0
    %1869 = vmatpush1.msra.mxu0 0.0
    %1870 = vmatprep.subr.mxu0 0.0
    %1871 = vmatpush1.msra.mxu0 0.0
    %1872 = vmatprep.subr.mxu0 0.0
    %1873 = vmatpush1.msra.mxu0 0.0
    %1874 = vmatprep.subr.mxu0 0.0
    %1875 = vmatpush1.msra.mxu0 0.0
    %1876 = vmatprep.mubr.f32.mxu0 0.0
    %1877 = vmatmul.mubr.f32.gmra.mrb[0].mxu0 %v1810
    %v1878 = vpop.f32.mrb[0].mxu0
    %v1879 = vadd.f32 %v80, %v1878
    %v1880 = vpop.f32.mrb[0].mxu0
    %1881 = vdwg.mxu0
    %v1882 = vxor.u32 %v1879, 2147483648
    %v1883 = vmul.f32 %v1882, 1.442695
    %v1884 = vpow.pop %v1883
    %v1885 = vadd.f32 %v1884, 1.0
    %v1886 = vrcp.pop %v1885
    %v1887 = vmul.f32 1.0, %v1886
    %v1888 = vtanh.pop %v1879
    %v1889 = vmul.f32 %v1887, %v1598
    %1891 = vrot.lane.b32.xlu0 %v1888, 64
    %v1892 = vpop.permute.xlu0 %1891
    %v1894 = vmul.f32 %v1887, %v1892
    %1896 = vrot.lane.b32.xlu0 %v1894, 32
    %v1897 = vpop.permute.xlu0 %1896
    %v1899 = vadd.f32 %v1889, %v1897
    %v1900 = vtanh.pop %v1899
    %1902 = vrot.lane.b32.xlu0 %v1900, 64
    %v1903 = vpop.permute.xlu0 %1902
    %v1905 = vmul.f32 %v1887, %v1903
    %1906 = vrot.lane.b32.xlu0 %v1705, 48
    %v1907 = vpop.permute.xlu0 %1906
    %v1909 = vsel %vm99, %v1803, %v1907
    %v1911 = vsel %vm303, %v1909, 0
    %1913 = vmatprep.subr.mxu0 0.0
    %1914 = vmatpush1.msra.mxu0 %v45
    %1915 = vmatprep.subr.mxu0 0.0
    %1916 = vmatpush1.msra.mxu0 %v46
    %1917 = vmatprep.subr.mxu0 0.0
    %1918 = vmatpush1.msra.mxu0 %v47
    %1919 = vmatprep.subr.mxu0 0.0
    %1920 = vmatpush1.msra.mxu0 %v48
    %1921 = vmatprep.subr.mxu0 0.0
    %1922 = vmatpush1.msra.mxu0 %v49
    %1923 = vmatprep.subr.mxu0 0.0
    %1924 = vmatpush1.msra.mxu0 %v50
    %1925 = vmatprep.subr.mxu0 0.0
    %1926 = vmatpush1.msra.mxu0 0.0
    %1927 = vmatprep.subr.mxu0 0.0
    %1928 = vmatpush1.msra.mxu0 0.0
    %1929 = vmatprep.subr.mxu0 0.0
    %1930 = vmatpush1.msra.mxu0 0.0
    %1931 = vmatprep.subr.mxu0 0.0
    %1932 = vmatpush1.msra.mxu0 0.0
    %1933 = vmatprep.subr.mxu0 0.0
    %1934 = vmatpush1.msra.mxu0 0.0
    %1935 = vmatprep.subr.mxu0 0.0
    %1936 = vmatpush1.msra.mxu0 0.0
    %1937 = vmatprep.subr.mxu0 0.0
    %1938 = vmatpush1.msra.mxu0 0.0
    %1939 = vmatprep.subr.mxu0 0.0
    %1940 = vmatpush1.msra.mxu0 0.0
    %1941 = vmatprep.subr.mxu0 0.0
    %1942 = vmatpush1.msra.mxu0 0.0
    %1943 = vmatprep.subr.mxu0 0.0
    %1944 = vmatpush1.msra.mxu0 0.0
    %1945 = vmatprep.subr.mxu0 0.0
    %1946 = vmatpush1.msra.mxu0 0.0
    %1947 = vmatprep.subr.mxu0 0.0
    %1948 = vmatpush1.msra.mxu0 0.0
    %1949 = vmatprep.subr.mxu0 0.0
    %1950 = vmatpush1.msra.mxu0 0.0
    %1951 = vmatprep.subr.mxu0 0.0
    %1952 = vmatpush1.msra.mxu0 0.0
    %1953 = vmatprep.subr.mxu0 0.0
    %1954 = vmatpush1.msra.mxu0 0.0
    %1955 = vmatprep.subr.mxu0 0.0
    %1956 = vmatpush1.msra.mxu0 0.0
    %1957 = vmatprep.subr.mxu0 0.0
    %1958 = vmatpush1.msra.mxu0 0.0
    %1959 = vmatprep.subr.mxu0 0.0
    %1960 = vmatpush1.msra.mxu0 0.0
    %1961 = vmatprep.subr.mxu0 0.0
    %1962 = vmatpush1.msra.mxu0 0.0
    %1963 = vmatprep.subr.mxu0 0.0
    %1964 = vmatpush1.msra.mxu0 0.0
    %1965 = vmatprep.subr.mxu0 0.0
    %1966 = vmatpush1.msra.mxu0 0.0
    %1967 = vmatprep.subr.mxu0 0.0
    %1968 = vmatpush1.msra.mxu0 0.0
    %1969 = vmatprep.subr.mxu0 0.0
    %1970 = vmatpush1.msra.mxu0 0.0
    %1971 = vmatprep.subr.mxu0 0.0
    %1972 = vmatpush1.msra.mxu0 0.0
    %1973 = vmatprep.subr.mxu0 0.0
    %1974 = vmatpush1.msra.mxu0 0.0
    %1975 = vmatprep.subr.mxu0 0.0
    %1976 = vmatpush1.msra.mxu0 0.0
    %1977 = vmatprep.mubr.f32.mxu0 0.0
    %1978 = vmatmul.mubr.f32.gmra.mrb[0].mxu0 %v1911
    %v1979 = vpop.f32.mrb[0].mxu0
    %v1980 = vadd.f32 %v73, %v1979
    %v1981 = vpop.f32.mrb[0].mxu0
    %1982 = vdwg.mxu0
    %v1983 = vxor.u32 %v1980, 2147483648
    %v1984 = vmul.f32 %v1983, 1.442695
    %v1985 = vpow.pop %v1984
    %v1986 = vadd.f32 %v1985, 1.0
    %v1987 = vrcp.pop %v1986
    %v1988 = vmul.f32 1.0, %v1987
    %v1989 = vtanh.pop %v1980
    %v1990 = vmul.f32 %v1988, %v1699
    %1992 = vrot.lane.b32.xlu0 %v1989, 64
    %v1993 = vpop.permute.xlu0 %1992
    %v1995 = vmul.f32 %v1988, %v1993
    %1997 = vrot.lane.b32.xlu0 %v1995, 32
    %v1998 = vpop.permute.xlu0 %1997
    %v2000 = vadd.f32 %v1990, %v1998
    %v2001 = vtanh.pop %v2000
    %2003 = vrot.lane.b32.xlu0 %v2001, 64
    %v2004 = vpop.permute.xlu0 %2003
    %v2006 = vmul.f32 %v1988, %v2004
    %2008 = vrot.lane.b32.xlu0 %v2006, 32
    %v2009 = vpop.permute.xlu0 %2008
    %v2010 = vsel %vm206, %v2009, 0
    %2012 = vmatprep.subr.mxu0 0.0
    %2013 = vmatpush1.msra.mxu0 %v57
    %2014 = vmatprep.subr.mxu0 0.0
    %2015 = vmatpush1.msra.mxu0 %v58
    %2016 = vmatprep.subr.mxu0 0.0
    %2017 = vmatpush1.msra.mxu0 %v59
    %2018 = vmatprep.subr.mxu0 0.0
    %2019 = vmatpush1.msra.mxu0 %v60
    %2020 = vmatprep.subr.mxu0 0.0
    %2021 = vmatpush1.msra.mxu0 0.0
    %2022 = vmatprep.subr.mxu0 0.0
    %2023 = vmatpush1.msra.mxu0 0.0
    %2024 = vmatprep.subr.mxu0 0.0
    %2025 = vmatpush1.msra.mxu0 0.0
    %2026 = vmatprep.subr.mxu0 0.0
    %2027 = vmatpush1.msra.mxu0 0.0
    %2028 = vmatprep.subr.mxu0 0.0
    %2029 = vmatpush1.msra.mxu0 0.0
    %2030 = vmatprep.subr.mxu0 0.0
    %2031 = vmatpush1.msra.mxu0 0.0
    %2032 = vmatprep.subr.mxu0 0.0
    %2033 = vmatpush1.msra.mxu0 0.0
    %2034 = vmatprep.subr.mxu0 0.0
    %2035 = vmatpush1.msra.mxu0 0.0
    %2036 = vmatprep.subr.mxu0 0.0
    %2037 = vmatpush1.msra.mxu0 0.0
    %2038 = vmatprep.subr.mxu0 0.0
    %2039 = vmatpush1.msra.mxu0 0.0
    %2040 = vmatprep.subr.mxu0 0.0
    %2041 = vmatpush1.msra.mxu0 0.0
    %2042 = vmatprep.subr.mxu0 0.0
    %2043 = vmatpush1.msra.mxu0 0.0
    %2044 = vmatprep.subr.mxu0 0.0
    %2045 = vmatpush1.msra.mxu0 0.0
    %2046 = vmatprep.subr.mxu0 0.0
    %2047 = vmatpush1.msra.mxu0 0.0
    %2048 = vmatprep.subr.mxu0 0.0
    %2049 = vmatpush1.msra.mxu0 0.0
    %2050 = vmatprep.subr.mxu0 0.0
    %2051 = vmatpush1.msra.mxu0 0.0
    %2052 = vmatprep.subr.mxu0 0.0
    %2053 = vmatpush1.msra.mxu0 0.0
    %2054 = vmatprep.subr.mxu0 0.0
    %2055 = vmatpush1.msra.mxu0 0.0
    %2056 = vmatprep.subr.mxu0 0.0
    %2057 = vmatpush1.msra.mxu0 0.0
    %2058 = vmatprep.subr.mxu0 0.0
    %2059 = vmatpush1.msra.mxu0 0.0
    %2060 = vmatprep.subr.mxu0 0.0
    %2061 = vmatpush1.msra.mxu0 0.0
    %2062 = vmatprep.subr.mxu0 0.0
    %2063 = vmatpush1.msra.mxu0 0.0
    %2064 = vmatprep.subr.mxu0 0.0
    %2065 = vmatpush1.msra.mxu0 0.0
    %2066 = vmatprep.subr.mxu0 0.0
    %2067 = vmatpush1.msra.mxu0 0.0
    %2068 = vmatprep.subr.mxu0 0.0
    %2069 = vmatpush1.msra.mxu0 0.0
    %2070 = vmatprep.subr.mxu0 0.0
    %2071 = vmatpush1.msra.mxu0 0.0
    %2072 = vmatprep.subr.mxu0 0.0
    %2073 = vmatpush1.msra.mxu0 0.0
    %2074 = vmatprep.subr.mxu0 0.0
    %2075 = vmatpush1.msra.mxu0 0.0
    %2076 = vmatprep.mubr.f32.mxu0 0.0
    %2077 = vmatmul.mubr.f32.gmra.mrb[0].mxu0 %v2010
    %v2078 = vpop.f32.mrb[0].mxu0
    %v2079 = vadd.f32 %v87, %v2078
    %v2080 = vpop.f32.mrb[0].mxu0
    %2081 = vdwg.mxu0
    %v2082 = vsel %vm99, %v2079, -inf
    %2083 = vmax.xlane.f32.xlu0 %v2082
    %v2084 = vpop.xlane.xlu0 %2083
    %vm2085 = vcmp.eq.f32.partialorder %v2079, %v2084
    %v2086 = vsel %vm2085, %v174, 16
    %v2087 = vsel %vm99, %v2086, 2147483647
    %v2088 = vand.u32 %v2087, 65535
    %v2089 = vshra.s32 %v2087, 16
    %v2090 = vcvt.s32.f32 %v2088
    %v2091 = vcvt.s32.f32 %v2089
    %2092 = vmin.xlane.f32.xlu0 %v2091
    %v2093 = vpop.xlane.xlu0 %2092
    %vm2094 = vcmp.eq.f32.partialorder %v2091, %v2093
    %v2095 = vsel %vm2094, %v2090, inf
    %2096 = vmin.xlane.f32.xlu0 %v2095
    %v2097 = vpop.xlane.xlu0 %2096
    %v2098 = vcvt.f32.s32 %v2097
    %v2099 = vcvt.f32.s32 %v2093
    %v2100 = vshll.u32 %v2099, 16
    %v2101 = vadd.s32 %v2100, %v2098
    %vm2102 = vcmp.eq.s32.totalorder %v174, %v2101
    %v2103 = vsel %vm2102, 1, 0
    %v2104 = vcvt.s32.f32 %v2103
    %2106 = vrot.lane.b32.xlu0 %v1905, 48
    %v2107 = vpop.permute.xlu0 %2106
    %v2109 = vsel %vm99, %v2104, %v2107
    %v2111 = vsel %vm303, %v2109, 0
    %2113 = vmatprep.subr.mxu0 0.0
    %2114 = vmatpush1.msra.mxu0 %v51
    %2115 = vmatprep.subr.mxu0 0.0
    %2116 = vmatpush1.msra.mxu0 %v52
    %2117 = vmatprep.subr.mxu0 0.0
    %2118 = vmatpush1.msra.mxu0 %v53
    %2119 = vmatprep.subr.mxu0 0.0
    %2120 = vmatpush1.msra.mxu0 %v54
    %2121 = vmatprep.subr.mxu0 0.0
    %2122 = vmatpush1.msra.mxu0 %v55
    %2123 = vmatprep.subr.mxu0 0.0
    %2124 = vmatpush1.msra.mxu0 %v56
    %2125 = vmatprep.subr.mxu0 0.0
    %2126 = vmatpush1.msra.mxu0 0.0
    %2127 = vmatprep.subr.mxu0 0.0
    %2128 = vmatpush1.msra.mxu0 0.0
    %2129 = vmatprep.subr.mxu0 0.0
    %2130 = vmatpush1.msra.mxu0 0.0
    %2131 = vmatprep.subr.mxu0 0.0
    %2132 = vmatpush1.msra.mxu0 0.0
    %2133 = vmatprep.subr.mxu0 0.0
    %2134 = vmatpush1.msra.mxu0 0.0
    %2135 = vmatprep.subr.mxu0 0.0
    %2136 = vmatpush1.msra.mxu0 0.0
    %2137 = vmatprep.subr.mxu0 0.0
    %2138 = vmatpush1.msra.mxu0 0.0
    %2139 = vmatprep.subr.mxu0 0.0
    %2140 = vmatpush1.msra.mxu0 0.0
    %2141 = vmatprep.subr.mxu0 0.0
    %2142 = vmatpush1.msra.mxu0 0.0
    %2143 = vmatprep.subr.mxu0 0.0
    %2144 = vmatpush1.msra.mxu0 0.0
    %2145 = vmatprep.subr.mxu0 0.0
    %2146 = vmatpush1.msra.mxu0 0.0
    %2147 = vmatprep.subr.mxu0 0.0
    %2148 = vmatpush1.msra.mxu0 0.0
    %2149 = vmatprep.subr.mxu0 0.0
    %2150 = vmatpush1.msra.mxu0 0.0
    %2151 = vmatprep.subr.mxu0 0.0
    %2152 = vmatpush1.msra.mxu0 0.0
    %2153 = vmatprep.subr.mxu0 0.0
    %2154 = vmatpush1.msra.mxu0 0.0
    %2155 = vmatprep.subr.mxu0 0.0
    %2156 = vmatpush1.msra.mxu0 0.0
    %2157 = vmatprep.subr.mxu0 0.0
    %2158 = vmatpush1.msra.mxu0 0.0
    %2159 = vmatprep.subr.mxu0 0.0
    %2160 = vmatpush1.msra.mxu0 0.0
    %2161 = vmatprep.subr.mxu0 0.0
    %2162 = vmatpush1.msra.mxu0 0.0
    %2163 = vmatprep.subr.mxu0 0.0
    %2164 = vmatpush1.msra.mxu0 0.0
    %2165 = vmatprep.subr.mxu0 0.0
    %2166 = vmatpush1.msra.mxu0 0.0
    %2167 = vmatprep.subr.mxu0 0.0
    %2168 = vmatpush1.msra.mxu0 0.0
    %2169 = vmatprep.subr.mxu0 0.0
    %2170 = vmatpush1.msra.mxu0 0.0
    %2171 = vmatprep.subr.mxu0 0.0
    %2172 = vmatpush1.msra.mxu0 0.0
    %2173 = vmatprep.subr.mxu0 0.0
    %2174 = vmatpush1.msra.mxu0 0.0
    %2175 = vmatprep.subr.mxu0 0.0
    %2176 = vmatpush1.msra.mxu0 0.0
    %2177 = vmatprep.mubr.f32.mxu0 0.0
    %2178 = vmatmul.mubr.f32.gmra.mrb[0].mxu0 %v2111
    %v2179 = vpop.f32.mrb[0].mxu0
    %v2180 = vadd.f32 %v80, %v2179
    %v2181 = vpop.f32.mrb[0].mxu0
    %2182 = vdwg.mxu0
    %v2183 = vxor.u32 %v2180, 2147483648
    %v2184 = vmul.f32 %v2183, 1.442695
    %v2185 = vpow.pop %v2184
    %v2186 = vadd.f32 %v2185, 1.0
    %v2187 = vrcp.pop %v2186
    %v2188 = vmul.f32 1.0, %v2187
    %v2189 = vtanh.pop %v2180
    %v2190 = vmul.f32 %v2188, %v1899
    %2192 = vrot.lane.b32.xlu0 %v2189, 64
    %v2193 = vpop.permute.xlu0 %2192
    %v2195 = vmul.f32 %v2188, %v2193
    %2197 = vrot.lane.b32.xlu0 %v2195, 32
    %v2198 = vpop.permute.xlu0 %2197
    %v2200 = vadd.f32 %v2190, %v2198
    %v2201 = vtanh.pop %v2200
    %2203 = vrot.lane.b32.xlu0 %v2201, 64
    %v2204 = vpop.permute.xlu0 %2203
    %v2206 = vmul.f32 %v2188, %v2204
    %2207 = vrot.lane.b32.xlu0 %v2006, 48
    %v2208 = vpop.permute.xlu0 %2207
    %v2210 = vsel %vm99, %v2104, %v2208
    %v2212 = vsel %vm303, %v2210, 0
    %2214 = vmatprep.subr.mxu0 0.0
    %2215 = vmatpush1.msra.mxu0 %v45
    %2216 = vmatprep.subr.mxu0 0.0
    %2217 = vmatpush1.msra.mxu0 %v46
    %2218 = vmatprep.subr.mxu0 0.0
    %2219 = vmatpush1.msra.mxu0 %v47
    %2220 = vmatprep.subr.mxu0 0.0
    %2221 = vmatpush1.msra.mxu0 %v48
    %2222 = vmatprep.subr.mxu0 0.0
    %2223 = vmatpush1.msra.mxu0 %v49
    %2224 = vmatprep.subr.mxu0 0.0
    %2225 = vmatpush1.msra.mxu0 %v50
    %2226 = vmatprep.subr.mxu0 0.0
    %2227 = vmatpush1.msra.mxu0 0.0
    %2228 = vmatprep.subr.mxu0 0.0
    %2229 = vmatpush1.msra.mxu0 0.0
    %2230 = vmatprep.subr.mxu0 0.0
    %2231 = vmatpush1.msra.mxu0 0.0
    %2232 = vmatprep.subr.mxu0 0.0
    %2233 = vmatpush1.msra.mxu0 0.0
    %2234 = vmatprep.subr.mxu0 0.0
    %2235 = vmatpush1.msra.mxu0 0.0
    %2236 = vmatprep.subr.mxu0 0.0
    %2237 = vmatpush1.msra.mxu0 0.0
    %2238 = vmatprep.subr.mxu0 0.0
    %2239 = vmatpush1.msra.mxu0 0.0
    %2240 = vmatprep.subr.mxu0 0.0
    %2241 = vmatpush1.msra.mxu0 0.0
    %2242 = vmatprep.subr.mxu0 0.0
    %2243 = vmatpush1.msra.mxu0 0.0
    %2244 = vmatprep.subr.mxu0 0.0
    %2245 = vmatpush1.msra.mxu0 0.0
    %2246 = vmatprep.subr.mxu0 0.0
    %2247 = vmatpush1.msra.mxu0 0.0
    %2248 = vmatprep.subr.mxu0 0.0
    %2249 = vmatpush1.msra.mxu0 0.0
    %2250 = vmatprep.subr.mxu0 0.0
    %2251 = vmatpush1.msra.mxu0 0.0
    %2252 = vmatprep.subr.mxu0 0.0
    %2253 = vmatpush1.msra.mxu0 0.0
    %2254 = vmatprep.subr.mxu0 0.0
    %2255 = vmatpush1.msra.mxu0 0.0
    %2256 = vmatprep.subr.mxu0 0.0
    %2257 = vmatpush1.msra.mxu0 0.0
    %2258 = vmatprep.subr.mxu0 0.0
    %2259 = vmatpush1.msra.mxu0 0.0
    %2260 = vmatprep.subr.mxu0 0.0
    %2261 = vmatpush1.msra.mxu0 0.0
    %2262 = vmatprep.subr.mxu0 0.0
    %2263 = vmatpush1.msra.mxu0 0.0
    %2264 = vmatprep.subr.mxu0 0.0
    %2265 = vmatpush1.msra.mxu0 0.0
    %2266 = vmatprep.subr.mxu0 0.0
    %2267 = vmatpush1.msra.mxu0 0.0
    %2268 = vmatprep.subr.mxu0 0.0
    %2269 = vmatpush1.msra.mxu0 0.0
    %2270 = vmatprep.subr.mxu0 0.0
    %2271 = vmatpush1.msra.mxu0 0.0
    %2272 = vmatprep.subr.mxu0 0.0
    %2273 = vmatpush1.msra.mxu0 0.0
    %2274 = vmatprep.subr.mxu0 0.0
    %2275 = vmatpush1.msra.mxu0 0.0
    %2276 = vmatprep.subr.mxu0 0.0
    %2277 = vmatpush1.msra.mxu0 0.0
    %2278 = vmatprep.mubr.f32.mxu0 0.0
    %2279 = vmatmul.mubr.f32.gmra.mrb[0].mxu0 %v2212
    %v2280 = vpop.f32.mrb[0].mxu0
    %v2281 = vadd.f32 %v73, %v2280
    %v2282 = vpop.f32.mrb[0].mxu0
    %2283 = vdwg.mxu0
    %v2284 = vxor.u32 %v2281, 2147483648
    %v2285 = vmul.f32 %v2284, 1.442695
    %v2286 = vpow.pop %v2285
    %v2287 = vadd.f32 %v2286, 1.0
    %v2288 = vrcp.pop %v2287
    %v2289 = vmul.f32 1.0, %v2288
    %v2290 = vtanh.pop %v2281
    %v2291 = vmul.f32 %v2289, %v2000
    %2293 = vrot.lane.b32.xlu0 %v2290, 64
    %v2294 = vpop.permute.xlu0 %2293
    %v2296 = vmul.f32 %v2289, %v2294
    %2298 = vrot.lane.b32.xlu0 %v2296, 32
    %v2299 = vpop.permute.xlu0 %2298
    %v2301 = vadd.f32 %v2291, %v2299
    %v2302 = vtanh.pop %v2301
    %2304 = vrot.lane.b32.xlu0 %v2302, 64
    %v2305 = vpop.permute.xlu0 %2304
    %v2307 = vmul.f32 %v2289, %v2305
    %2309 = vrot.lane.b32.xlu0 %v2307, 32
    %v2310 = vpop.permute.xlu0 %2309
    %v2311 = vsel %vm206, %v2310, 0
    %2313 = vmatprep.subr.mxu0 0.0
    %2314 = vmatpush1.msra.mxu0 %v57
    %2315 = vmatprep.subr.mxu0 0.0
    %2316 = vmatpush1.msra.mxu0 %v58
    %2317 = vmatprep.subr.mxu0 0.0
    %2318 = vmatpush1.msra.mxu0 %v59
    %2319 = vmatprep.subr.mxu0 0.0
    %2320 = vmatpush1.msra.mxu0 %v60
    %2321 = vmatprep.subr.mxu0 0.0
    %2322 = vmatpush1.msra.mxu0 0.0
    %2323 = vmatprep.subr.mxu0 0.0
    %2324 = vmatpush1.msra.mxu0 0.0
    %2325 = vmatprep.subr.mxu0 0.0
    %2326 = vmatpush1.msra.mxu0 0.0
    %2327 = vmatprep.subr.mxu0 0.0
    %2328 = vmatpush1.msra.mxu0 0.0
    %2329 = vmatprep.subr.mxu0 0.0
    %2330 = vmatpush1.msra.mxu0 0.0
    %2331 = vmatprep.subr.mxu0 0.0
    %2332 = vmatpush1.msra.mxu0 0.0
    %2333 = vmatprep.subr.mxu0 0.0
    %2334 = vmatpush1.msra.mxu0 0.0
    %2335 = vmatprep.subr.mxu0 0.0
    %2336 = vmatpush1.msra.mxu0 0.0
    %2337 = vmatprep.subr.mxu0 0.0
    %2338 = vmatpush1.msra.mxu0 0.0
    %2339 = vmatprep.subr.mxu0 0.0
    %2340 = vmatpush1.msra.mxu0 0.0
    %2341 = vmatprep.subr.mxu0 0.0
    %2342 = vmatpush1.msra.mxu0 0.0
    %2343 = vmatprep.subr.mxu0 0.0
    %2344 = vmatpush1.msra.mxu0 0.0
    %2345 = vmatprep.subr.mxu0 0.0
    %2346 = vmatpush1.msra.mxu0 0.0
    %2347 = vmatprep.subr.mxu0 0.0
    %2348 = vmatpush1.msra.mxu0 0.0
    %2349 = vmatprep.subr.mxu0 0.0
    %2350 = vmatpush1.msra.mxu0 0.0
    %2351 = vmatprep.subr.mxu0 0.0
    %2352 = vmatpush1.msra.mxu0 0.0
    %2353 = vmatprep.subr.mxu0 0.0
    %2354 = vmatpush1.msra.mxu0 0.0
    %2355 = vmatprep.subr.mxu0 0.0
    %2356 = vmatpush1.msra.mxu0 0.0
    %2357 = vmatprep.subr.mxu0 0.0
    %2358 = vmatpush1.msra.mxu0 0.0
    %2359 = vmatprep.subr.mxu0 0.0
    %2360 = vmatpush1.msra.mxu0 0.0
    %2361 = vmatprep.subr.mxu0 0.0
    %2362 = vmatpush1.msra.mxu0 0.0
    %2363 = vmatprep.subr.mxu0 0.0
    %2364 = vmatpush1.msra.mxu0 0.0
    %2365 = vmatprep.subr.mxu0 0.0
    %2366 = vmatpush1.msra.mxu0 0.0
    %2367 = vmatprep.subr.mxu0 0.0
    %2368 = vmatpush1.msra.mxu0 0.0
    %2369 = vmatprep.subr.mxu0 0.0
    %2370 = vmatpush1.msra.mxu0 0.0
    %2371 = vmatprep.subr.mxu0 0.0
    %2372 = vmatpush1.msra.mxu0 0.0
    %2373 = vmatprep.subr.mxu0 0.0
    %2374 = vmatpush1.msra.mxu0 0.0
    %2375 = vmatprep.subr.mxu0 0.0
    %2376 = vmatpush1.msra.mxu0 0.0
    %2377 = vmatprep.mubr.f32.mxu0 0.0
    %2378 = vmatmul.mubr.f32.gmra.mrb[0].mxu0 %v2311
    %v2379 = vpop.f32.mrb[0].mxu0
    %v2380 = vadd.f32 %v87, %v2379
    %v2381 = vpop.f32.mrb[0].mxu0
    %2382 = vdwg.mxu0
    %v2383 = vsel %vm99, %v2380, -inf
    %2384 = vmax.xlane.f32.xlu0 %v2383
    %v2385 = vpop.xlane.xlu0 %2384
    %vm2386 = vcmp.eq.f32.partialorder %v2380, %v2385
    %v2387 = vsel %vm2386, %v174, 16
    %v2388 = vsel %vm99, %v2387, 2147483647
    %v2389 = vand.u32 %v2388, 65535
    %v2390 = vshra.s32 %v2388, 16
    %v2391 = vcvt.s32.f32 %v2389
    %v2392 = vcvt.s32.f32 %v2390
    %2393 = vmin.xlane.f32.xlu0 %v2392
    %v2394 = vpop.xlane.xlu0 %2393
    %vm2395 = vcmp.eq.f32.partialorder %v2392, %v2394
    %v2396 = vsel %vm2395, %v2391, inf
    %2397 = vmin.xlane.f32.xlu0 %v2396
    %v2398 = vpop.xlane.xlu0 %2397
    %v2399 = vcvt.f32.s32 %v2398
    %v2400 = vcvt.f32.s32 %v2394
    %v2401 = vshll.u32 %v2400, 16
    %v2402 = vadd.s32 %v2401, %v2399
    %vm2403 = vcmp.eq.s32.totalorder %v174, %v2402
    %v2404 = vsel %vm2403, 1, 0
    %v2405 = vcvt.s32.f32 %v2404
    %2407 = vrot.lane.b32.xlu0 %v2206, 48
    %v2408 = vpop.permute.xlu0 %2407
    %v2410 = vsel %vm99, %v2405, %v2408
    %v2412 = vsel %vm303, %v2410, 0
    %2414 = vmatprep.subr.mxu0 0.0
    %2415 = vmatpush1.msra.mxu0 %v51
    %2416 = vmatprep.subr.mxu0 0.0
    %2417 = vmatpush1.msra.mxu0 %v52
    %2418 = vmatprep.subr.mxu0 0.0
    %2419 = vmatpush1.msra.mxu0 %v53
    %2420 = vmatprep.subr.mxu0 0.0
    %2421 = vmatpush1.msra.mxu0 %v54
    %2422 = vmatprep.subr.mxu0 0.0
    %2423 = vmatpush1.msra.mxu0 %v55
    %2424 = vmatprep.subr.mxu0 0.0
    %2425 = vmatpush1.msra.mxu0 %v56
    %2426 = vmatprep.subr.mxu0 0.0
    %2427 = vmatpush1.msra.mxu0 0.0
    %2428 = vmatprep.subr.mxu0 0.0
    %2429 = vmatpush1.msra.mxu0 0.0
    %2430 = vmatprep.subr.mxu0 0.0
    %2431 = vmatpush1.msra.mxu0 0.0
    %2432 = vmatprep.subr.mxu0 0.0
    %2433 = vmatpush1.msra.mxu0 0.0
    %2434 = vmatprep.subr.mxu0 0.0
    %2435 = vmatpush1.msra.mxu0 0.0
    %2436 = vmatprep.subr.mxu0 0.0
    %2437 = vmatpush1.msra.mxu0 0.0
    %2438 = vmatprep.subr.mxu0 0.0
    %2439 = vmatpush1.msra.mxu0 0.0
    %2440 = vmatprep.subr.mxu0 0.0
    %2441 = vmatpush1.msra.mxu0 0.0
    %2442 = vmatprep.subr.mxu0 0.0
    %2443 = vmatpush1.msra.mxu0 0.0
    %2444 = vmatprep.subr.mxu0 0.0
    %2445 = vmatpush1.msra.mxu0 0.0
    %2446 = vmatprep.subr.mxu0 0.0
    %2447 = vmatpush1.msra.mxu0 0.0
    %2448 = vmatprep.subr.mxu0 0.0
    %2449 = vmatpush1.msra.mxu0 0.0
    %2450 = vmatprep.subr.mxu0 0.0
    %2451 = vmatpush1.msra.mxu0 0.0
    %2452 = vmatprep.subr.mxu0 0.0
    %2453 = vmatpush1.msra.mxu0 0.0
    %2454 = vmatprep.subr.mxu0 0.0
    %2455 = vmatpush1.msra.mxu0 0.0
    %2456 = vmatprep.subr.mxu0 0.0
    %2457 = vmatpush1.msra.mxu0 0.0
    %2458 = vmatprep.subr.mxu0 0.0
    %2459 = vmatpush1.msra.mxu0 0.0
    %2460 = vmatprep.subr.mxu0 0.0
    %2461 = vmatpush1.msra.mxu0 0.0
    %2462 = vmatprep.subr.mxu0 0.0
    %2463 = vmatpush1.msra.mxu0 0.0
    %2464 = vmatprep.subr.mxu0 0.0
    %2465 = vmatpush1.msra.mxu0 0.0
    %2466 = vmatprep.subr.mxu0 0.0
    %2467 = vmatpush1.msra.mxu0 0.0
    %2468 = vmatprep.subr.mxu0 0.0
    %2469 = vmatpush1.msra.mxu0 0.0
    %2470 = vmatprep.subr.mxu0 0.0
    %2471 = vmatpush1.msra.mxu0 0.0
    %2472 = vmatprep.subr.mxu0 0.0
    %2473 = vmatpush1.msra.mxu0 0.0
    %2474 = vmatprep.subr.mxu0 0.0
    %2475 = vmatpush1.msra.mxu0 0.0
    %2476 = vmatprep.subr.mxu0 0.0
    %2477 = vmatpush1.msra.mxu0 0.0
    %2478 = vmatprep.mubr.f32.mxu0 0.0
    %2479 = vmatmul.mubr.f32.gmra.mrb[0].mxu0 %v2412
    %v2480 = vpop.f32.mrb[0].mxu0
    %v2481 = vadd.f32 %v80, %v2480
    %v2482 = vpop.f32.mrb[0].mxu0
    %2483 = vdwg.mxu0
    %v2484 = vxor.u32 %v2481, 2147483648
    %v2485 = vmul.f32 %v2484, 1.442695
    %v2486 = vpow.pop %v2485
    %v2487 = vadd.f32 %v2486, 1.0
    %v2488 = vrcp.pop %v2487
    %v2489 = vmul.f32 1.0, %v2488
    %v2490 = vtanh.pop %v2481
    %v2491 = vmul.f32 %v2489, %v2200
    %2493 = vrot.lane.b32.xlu0 %v2490, 64
    %v2494 = vpop.permute.xlu0 %2493
    %v2496 = vmul.f32 %v2489, %v2494
    %2498 = vrot.lane.b32.xlu0 %v2496, 32
    %v2499 = vpop.permute.xlu0 %2498
    %v2501 = vadd.f32 %v2491, %v2499
    %v2502 = vtanh.pop %v2501
    %2504 = vrot.lane.b32.xlu0 %v2502, 64
    %v2505 = vpop.permute.xlu0 %2504
    %v2507 = vmul.f32 %v2489, %v2505
    %v2508 = vld [vmem:[%s10] sm:$0xff]
    %v2509 = vld [vmem:[%s10 + $0x8] sm:$0xff]
    %v2510 = vld [vmem:[%s10 + $0x10] sm:$0xff]
    %v2511 = vld [vmem:[%s10 + $0x18] sm:$0xff]
    %v2512 = vld [vmem:[%s11] sm:$0x1]
    %v2514 = vlaneseq
    %v2515 = vshrl.u32 %v2514, 7
    %v2516 = vsub.s32 0, %v2515
    %v2517 = vrot.slane %v2512, %v2516
    %2520 = vrot.lane.b32.xlu0 %v2507, 32
    %v2521 = vpop.permute.xlu0 %2520
    %v2522 = vsel %vm206, %v2521, 0
    %2524 = vmatprep.subr.mxu0 0.0
    %2525 = vmatpush1.msra.mxu0 %v2508
    %2526 = vmatprep.subr.mxu0 0.0
    %2527 = vmatpush1.msra.mxu0 %v2509
    %2528 = vmatprep.subr.mxu0 0.0
    %2529 = vmatpush1.msra.mxu0 %v2510
    %2530 = vmatprep.subr.mxu0 0.0
    %2531 = vmatpush1.msra.mxu0 %v2511
    %2532 = vmatprep.subr.mxu0 0.0
    %2533 = vmatpush1.msra.mxu0 0.0
    %2534 = vmatprep.subr.mxu0 0.0
    %2535 = vmatpush1.msra.mxu0 0.0
    %2536 = vmatprep.subr.mxu0 0.0
    %2537 = vmatpush1.msra.mxu0 0.0
    %2538 = vmatprep.subr.mxu0 0.0
    %2539 = vmatpush1.msra.mxu0 0.0
    %2540 = vmatprep.subr.mxu0 0.0
    %2541 = vmatpush1.msra.mxu0 0.0
    %2542 = vmatprep.subr.mxu0 0.0
    %2543 = vmatpush1.msra.mxu0 0.0
    %2544 = vmatprep.subr.mxu0 0.0
    %2545 = vmatpush1.msra.mxu0 0.0
    %2546 = vmatprep.subr.mxu0 0.0
    %2547 = vmatpush1.msra.mxu0 0.0
    %2548 = vmatprep.subr.mxu0 0.0
    %2549 = vmatpush1.msra.mxu0 0.0
    %2550 = vmatprep.subr.mxu0 0.0
    %2551 = vmatpush1.msra.mxu0 0.0
    %2552 = vmatprep.subr.mxu0 0.0
    %2553 = vmatpush1.msra.mxu0 0.0
    %2554 = vmatprep.subr.mxu0 0.0
    %2555 = vmatpush1.msra.mxu0 0.0
    %2556 = vmatprep.subr.mxu0 0.0
    %2557 = vmatpush1.msra.mxu0 0.0
    %2558 = vmatprep.subr.mxu0 0.0
    %2559 = vmatpush1.msra.mxu0 0.0
    %2560 = vmatprep.subr.mxu0 0.0
    %2561 = vmatpush1.msra.mxu0 0.0
    %2562 = vmatprep.subr.mxu0 0.0
    %2563 = vmatpush1.msra.mxu0 0.0
    %2564 = vmatprep.subr.mxu0 0.0
    %2565 = vmatpush1.msra.mxu0 0.0
    %2566 = vmatprep.subr.mxu0 0.0
    %2567 = vmatpush1.msra.mxu0 0.0
    %2568 = vmatprep.subr.mxu0 0.0
    %2569 = vmatpush1.msra.mxu0 0.0
    %2570 = vmatprep.subr.mxu0 0.0
    %2571 = vmatpush1.msra.mxu0 0.0
    %2572 = vmatprep.subr.mxu0 0.0
    %2573 = vmatpush1.msra.mxu0 0.0
    %2574 = vmatprep.subr.mxu0 0.0
    %2575 = vmatpush1.msra.mxu0 0.0
    %2576 = vmatprep.subr.mxu0 0.0
    %2577 = vmatpush1.msra.mxu0 0.0
    %2578 = vmatprep.subr.mxu0 0.0
    %2579 = vmatpush1.msra.mxu0 0.0
    %2580 = vmatprep.subr.mxu0 0.0
    %2581 = vmatpush1.msra.mxu0 0.0
    %2582 = vmatprep.subr.mxu0 0.0
    %2583 = vmatpush1.msra.mxu0 0.0
    %2584 = vmatprep.subr.mxu0 0.0
    %2585 = vmatpush1.msra.mxu0 0.0
    %2586 = vmatprep.subr.mxu0 0.0
    %2587 = vmatpush1.msra.mxu0 0.0
    %2588 = vmatprep.mubr.f32.mxu0 0.0
    %2589 = vmatmul.mubr.f32.gmra.mrb[0].mxu0 %v2522
    %v2590 = vpop.f32.mrb[0].mxu0
    %v2591 = vadd.f32 %v2517, %v2590
    %v2592 = vpop.f32.mrb[0].mxu0
    %2593 = vdwg.mxu0
    %2594 = vst.msk [vmem:[#allocation2] sm:$0xff] %vm99, %v2591
    %2596 = vrot.lane.b32.xlu0 %v574, 16
    %v2597 = vpop.permute.xlu0 %2596
    %2600 = vrot.lane.b32.xlu0 %v875, 32
    %v2601 = vpop.permute.xlu0 %2600
    %2604 = vrot.lane.b32.xlu0 %v1176, 48
    %v2605 = vpop.permute.xlu0 %2604
    %2608 = vrot.lane.b32.xlu0 %v1477, 64
    %v2609 = vpop.permute.xlu0 %2608
    %2612 = vrot.lane.b32.xlu0 %v1778, 80
    %v2613 = vpop.permute.xlu0 %2612
    %2616 = vrot.lane.b32.xlu0 %v2079, 96
    %v2617 = vpop.permute.xlu0 %2616
    %2620 = vrot.lane.b32.xlu0 %v2380, 112
    %v2621 = vpop.permute.xlu0 %2620
    %v2623 = vsel %vm99, %v276, %v2597
    %v2624 = vsel %vm206, %v2623, %v2601
    %v2625 = vsel %vm303, %v2624, %v2605
    %vm2626 = vcmask 523264
    %v2627 = vsel %vm2626, %v2625, %v2609
    %vm2628 = vcmask 654336
    %v2629 = vsel %vm2628, %v2627, %v2613
    %vm2630 = vcmask 785408
    %v2631 = vsel %vm2630, %v2629, %v2617
    %vm2632 = vcmask 916480
    %v2633 = vsel %vm2632, %v2631, %v2621
    %2634 = vst [vmem:[%s14] sm:$0xff] %v2633
    %2636 = vrot.lane.b32.xlu0 %v599, 16
    %v2637 = vpop.permute.xlu0 %2636
    %2640 = vrot.lane.b32.xlu0 %v900, 32
    %v2641 = vpop.permute.xlu0 %2640
    %2644 = vrot.lane.b32.xlu0 %v1201, 48
    %v2645 = vpop.permute.xlu0 %2644
    %2648 = vrot.lane.b32.xlu0 %v1502, 64
    %v2649 = vpop.permute.xlu0 %2648
    %2652 = vrot.lane.b32.xlu0 %v1803, 80
    %v2653 = vpop.permute.xlu0 %2652
    %2656 = vrot.lane.b32.xlu0 %v2104, 96
    %v2657 = vpop.permute.xlu0 %2656
    %2660 = vrot.lane.b32.xlu0 %v2405, 112
    %v2661 = vpop.permute.xlu0 %2660
    %v2663 = vsel %vm99, %v301, %v2637
    %v2664 = vsel %vm206, %v2663, %v2641
    %v2665 = vsel %vm303, %v2664, %v2645
    %v2666 = vsel %vm2626, %v2665, %v2649
    %v2667 = vsel %vm2628, %v2666, %v2653
    %v2668 = vsel %vm2630, %v2667, %v2657
    %v2669 = vsel %vm2632, %v2668, %v2661
    %2670 = vst [vmem:[%s13] sm:$0xff] %v2669
    // Predicated region
    $region50: #{vae_lstm_forward.1} parent=1 // pred_check
      _
    $region51: #{vae_lstm_forward.1} parent=1 // pred_check_branch
      %2672 = sbr.rel (0) target = $region53
    $region52: #{vae_lstm_forward.1} parent=1 // pred_region
      %s2674 = ssub.s32 128, 128
      %2675 = vsyncadd [#allocation3], %s2674
      %s2677 = sshll.u32 [#allocation2], 4
      %s2678 = int_to_ptr.vmem [resolvable:$true] %s2677
      %2680 = dma.vmem_to_hbm [thread:$0]  %s2678, 128, %s12, [#allocation3]
    $region53: #{vae_lstm_forward.1} parent=1 // pred_fallthru
      _
    // Predicated region
    $region54: #{vae_lstm_forward.1} parent=1 // pred_check
      _
    $region55: #{vae_lstm_forward.1} parent=1 // pred_check_branch
      %2682 = sbr.rel (0) target = $region57
    $region56: #{vae_lstm_forward.1} parent=1 // pred_region
      _
    $region57: #{vae_lstm_forward.1} parent=1 // pred_fallthru
      _
    // Predicated region
    $region58: #{vae_lstm_forward.1} parent=1 // pred_check
      _
    $region59: #{vae_lstm_forward.1} parent=1 // pred_check_branch
      %2684 = sbr.rel (0) target = $region61
    $region60: #{vae_lstm_forward.1} parent=1 // pred_region
      _
    $region61: #{vae_lstm_forward.1} parent=1 // pred_fallthru
      _
    // Predicated region
    $region62: #{vae_lstm_forward.1} parent=1 // pred_check
      _
    $region63: #{vae_lstm_forward.1} parent=1 // pred_check_branch
      %2686 = sbr.rel (0) target = $region65
    $region64: #{vae_lstm_forward.1} parent=1 // pred_region
      %2687 = dma.done [#allocation3], 128
    $region65: #{vae_lstm_forward.1} parent=1 // pred_fallthru
      _
    // Predicated region
    $region66: #{vae_lstm_forward.1} parent=1 // pred_check
      _
    $region67: #{vae_lstm_forward.1} parent=1 // pred_check_branch
      %2689 = sbr.rel (0) target = $region69
    $region68: #{vae_lstm_forward.1} parent=1 // pred_region
      _
    $region69: #{vae_lstm_forward.1} parent=1 // pred_fallthru
      _
    // Predicated region
    $region70: #{vae_lstm_forward.1} parent=1 // pred_check
      _
    $region71: #{vae_lstm_forward.1} parent=1 // pred_check_branch
      %2691 = sbr.rel (0) target = $region73
    $region72: #{vae_lstm_forward.1} parent=1 // pred_region
      _
    $region73: #{vae_lstm_forward.1} parent=1 // pred_fallthru
      _
    %2692 = vsyncpa [#allocation3], 1

</llo_original>
